<compile_context>
chip_gen: v7x
topology: tpu7x:2x2x1
jax: 0.10.0
libtpu: 0.0.40
codegen_flags: <defaults>
</compile_context>

<pallas_src>
import functools
import math

import numpy as np

import jax
import jax.numpy as jnp
from jax import lax
from jax.experimental import pallas as pl
from jax.experimental.pallas import tpu as pltpu

BN_EPS = 1e-5


# ---------------------------------------------------------------------------
# Conv kernel: stride-1 "same" conv, tap-loop over (kh, kw), bf16 operands,
# f32 accumulation, optional bias, optional per-channel sum / sumsq outputs.
# ---------------------------------------------------------------------------
def _conv_kernel(x_ref, w_ref, *rest, k, oh, apply_bias, with_stats):
    idx = 0
    b_ref = None
    if apply_bias:
        b_ref = rest[idx]
        idx += 1
    y_ref = rest[idx]
    idx += 1
    if with_stats:
        sum_ref = rest[idx]
        sq_ref = rest[idx + 1]

    th = y_ref.shape[1]       # output rows per grid step
    ow = y_ref.shape[2]
    oc = y_ref.shape[3]
    r0 = pl.program_id(1) * th

    if with_stats:
        @pl.when(pl.program_id(1) == 0)
        def _init():
            sum_ref[...] = jnp.zeros_like(sum_ref)
            sq_ref[...] = jnp.zeros_like(sq_ref)

    def row_body(rr, carry):
        s_acc, q_acc = carry
        acc = jnp.zeros((ow, oc), jnp.float32)
        # k*k shifted loads from the resident padded image; each tap is an MXU dot.
        for kh in range(k):
            for kw in range(k):
                xs = x_ref[0, r0 + rr + kh, pl.ds(kw, ow), :]      # (ow, C) bf16
                wt = w_ref[kh * k + kw]                            # (C, oc) bf16
                acc = acc + jnp.dot(xs, wt, preferred_element_type=jnp.float32)
        if apply_bias:
            acc = acc + b_ref[...]                                 # (1, oc) f32
        y_ref[0, rr] = acc.astype(y_ref.dtype)
        if with_stats:
            valid = ((r0 + rr) < oh).astype(jnp.float32)           # mask overrun rows
            s_acc = s_acc + valid * jnp.sum(acc, axis=0, keepdims=True)
            q_acc = q_acc + valid * jnp.sum(acc * acc, axis=0, keepdims=True)
        return s_acc, q_acc

    init = (jnp.zeros((1, oc), jnp.float32), jnp.zeros((1, oc), jnp.float32))
    s_tot, q_tot = lax.fori_loop(0, th, row_body, init)

    if with_stats:
        sum_ref[0] = sum_ref[0] + s_tot
        sq_ref[0] = sq_ref[0] + q_tot


def conv2d_same_pallas(x, w_flat, *, k, pad, pad_mode, bias=None,
                       with_stats=False, th=8):
    """x: (N, H, W, C) float; w_flat: (k*k, C, OC) f32.  Stride-1 'same' conv.

    Returns y: (N, H, W, OC) f32 and, if with_stats, per-channel (sum, sumsq).
    """
    assert 2 * pad == k - 1, "only 'same' stride-1 convs in this network"
    N, H, W, C = x.shape
    OC = w_flat.shape[-1]
    OH, OW = H, W
    th = max(1, min(th, OH))
    nt = pl.cdiv(OH, th)
    Wp = OW + k - 1
    Hp_alloc = nt * th + k - 1            # row-tile overrun stays in-bounds

    if pad_mode == "reflect":
        xp = jnp.pad(x, ((0, 0), (pad, pad), (pad, pad), (0, 0)), mode="reflect")
    else:
        xp = jnp.pad(x, ((0, 0), (pad, pad), (pad, pad), (0, 0)))
    extra_rows = Hp_alloc - xp.shape[1]
    if extra_rows > 0:
        xp = jnp.pad(xp, ((0, 0), (0, extra_rows), (0, 0), (0, 0)))

    xp = xp.astype(jnp.bfloat16)          # MXU operands in bf16
    wq = w_flat.astype(jnp.bfloat16)

    inputs = [xp, wq]
    in_specs = [
        pl.BlockSpec((1, Hp_alloc, Wp, C), lambda b, i: (b, 0, 0, 0)),
        pl.BlockSpec((k * k, C, OC), lambda b, i: (0, 0, 0)),
    ]
    if bias is not None:
        inputs.append(bias.reshape(1, OC).astype(jnp.float32))
        in_specs.append(pl.BlockSpec((1, OC), lambda b, i: (0, 0)))

    out_shape = [jax.ShapeDtypeStruct((N, nt * th, OW, OC), jnp.float32)]
    out_specs = [pl.BlockSpec((1, th, OW, OC), lambda b, i: (b, i, 0, 0))]
    if with_stats:
        out_shape += [jax.ShapeDtypeStruct((N, 1, OC), jnp.float32)] * 2
        out_specs += [pl.BlockSpec((1, 1, OC), lambda b, i: (b, 0, 0))] * 2

    flops = 2 * N * OH * OW * k * k * C * OC
    bytes_acc = xp.size * 2 + wq.size * 2 + N * nt * th * OW * OC * 4

    res = pl.pallas_call(
        functools.partial(_conv_kernel, k=k, oh=OH,
                          apply_bias=bias is not None, with_stats=with_stats),
        out_shape=tuple(out_shape),
        grid=(N, nt),
        in_specs=in_specs,
        out_specs=tuple(out_specs),
        compiler_params=pltpu.CompilerParams(
            dimension_semantics=("parallel", "arbitrary")),
        cost_estimate=pl.CostEstimate(flops=flops, transcendentals=0,
                                      bytes_accessed=bytes_acc),
    )(*inputs)

    y = res[0][:, :OH]
    if with_stats:
        ssum = jnp.sum(res[1][:, 0, :], axis=0)
        ssq = jnp.sum(res[2][:, 0, :], axis=0)
        return y, (ssum, ssq)
    return y, None


# ---------------------------------------------------------------------------
# BatchNorm(apply) + ReLU (+ residual add) kernel, tiled over M = N*H*W.
# ---------------------------------------------------------------------------
def _bn_apply_kernel(*refs, relu, with_residual):
    if with_residual:
        y_ref, s_ref, t_ref, r_ref, o_ref = refs
    else:
        y_ref, s_ref, t_ref, o_ref = refs
    out = y_ref[...] * s_ref[...] + t_ref[...]
    if with_residual:
        out = out + r_ref[...].astype(jnp.float32)
    if relu:
        out = jnp.maximum(out, 0.0)
    o_ref[...] = out.astype(o_ref.dtype)


def bn_apply_pallas(y, scale, shift, *, relu, residual=None,
                    out_dtype=jnp.bfloat16, tb=512):
    """y: (N, H, W, C) f32; per-channel scale/shift; optional residual (same NHWC)."""
    N, H, W, C = y.shape
    M = N * H * W
    Mp = pl.cdiv(M, tb) * tb

    y2 = jnp.pad(y.reshape(M, C), ((0, Mp - M), (0, 0)))
    inputs = [y2,
              scale.reshape(1, C).astype(jnp.float32),
              shift.reshape(1, C).astype(jnp.float32)]
    in_specs = [pl.BlockSpec((tb, C), lambda i: (i, 0)),
                pl.BlockSpec((1, C), lambda i: (0, 0)),
                pl.BlockSpec((1, C), lambda i: (0, 0))]
    if residual is not None:
        r2 = jnp.pad(residual.reshape(M, C), ((0, Mp - M), (0, 0)))
        inputs.append(r2)
        in_specs.append(pl.BlockSpec((tb, C), lambda i: (i, 0)))

    out = pl.pallas_call(
        functools.partial(_bn_apply_kernel, relu=relu,
                          with_residual=residual is not None),
        out_shape=jax.ShapeDtypeStruct((Mp, C), out_dtype),
        grid=(Mp // tb,),
        in_specs=in_specs,
        out_specs=pl.BlockSpec((tb, C), lambda i: (i, 0)),
        compiler_params=pltpu.CompilerParams(dimension_semantics=("parallel",)),
        cost_estimate=pl.CostEstimate(flops=4 * Mp * C, transcendentals=0,
                                      bytes_accessed=Mp * C * 8),
    )(*inputs)
    return out[:M].reshape(N, H, W, C)


def _bn_scale_shift(ssum, ssq, count, gamma, beta, eps=BN_EPS):
    """Training-mode batch-stat BN folded into a per-channel affine."""
    mean = ssum / count
    var = jnp.maximum(ssq / count - mean * mean, 0.0)
    scale = gamma * lax.rsqrt(var + eps)
    shift = beta - mean * scale
    return scale, shift


# ---------------------------------------------------------------------------
# Bilinear upsample (PyTorch nn.Upsample, align_corners=False).
# ---------------------------------------------------------------------------
def _bilinear_coeffs(in_size, out_size):
    scale = in_size / out_size
    i0, i1, w0, w1 = [], [], [], []
    for o in range(out_size):
        src = max((o + 0.5) * scale - 0.5, 0.0)
        f = min(int(math.floor(src)), in_size - 1)
        lam = src - f
        c = min(f + 1, in_size - 1)
        i0.append(f)
        i1.append(c)
        w0.append(1.0 - lam)
        w1.append(lam)
    return i0, i1, w0, w1


def _interp_matrix(in_size, out_size):
    i0, i1, w0, w1 = _bilinear_coeffs(in_size, out_size)
    m = np.zeros((out_size, in_size), np.float32)
    for o in range(out_size):
        m[o, i0[o]] += w0[o]
        m[o, i1[o]] += w1[o]
    return m


def _bilinear_kernel(x_ref, rw_ref, o_ref, t_ref, *, hi0, hi1, hw0, hw1):
    h_in = x_ref.shape[1]
    # Width interpolation: dense (OWo, W) matrix on the MXU, per input row.
    for h in range(h_in):
        t_ref[h] = jnp.dot(rw_ref[...], x_ref[0, h],
                           preferred_element_type=jnp.float32)
    # Height interpolation: statically unrolled two-tap blend per output row.
    for ho in range(o_ref.shape[1]):
        row = hw0[ho] * t_ref[hi0[ho]] + hw1[ho] * t_ref[hi1[ho]]
        o_ref[0, ho] = row.astype(o_ref.dtype)


def bilinear_upsample_pallas(x, out_h, out_w):
    N, H, W, C = x.shape
    rw = jnp.asarray(_interp_matrix(W, out_w))
    hi0, hi1, hw0, hw1 = _bilinear_coeffs(H, out_h)
    return pl.pallas_call(
        functools.partial(_bilinear_kernel, hi0=tuple(hi0), hi1=tuple(hi1),
                          hw0=tuple(hw0), hw1=tuple(hw1)),
        out_shape=jax.ShapeDtypeStruct((N, out_h, out_w, C), jnp.float32),
        grid=(N,),
        in_specs=[pl.BlockSpec((1, H, W, C), lambda b: (b, 0, 0, 0)),
                  pl.BlockSpec((out_w, W), lambda b: (0, 0))],
        out_specs=pl.BlockSpec((1, out_h, out_w, C), lambda b: (b, 0, 0, 0)),
        scratch_shapes=[pltpu.VMEM((H, out_w, C), jnp.float32)],
        compiler_params=pltpu.CompilerParams(dimension_semantics=("parallel",)),
        cost_estimate=pl.CostEstimate(
            flops=2 * N * (H * out_w * W * C + out_h * out_w * C),
            transcendentals=0,
            bytes_accessed=(x.size + N * out_h * out_w * C) * 4),
    )(x.astype(jnp.float32), rw)


# ---------------------------------------------------------------------------
# Parameters + forward (mirrors netG_structure layer structure)
# ---------------------------------------------------------------------------
def init_params(key, input_nc, ngf, output_nc, n_blocks):
    keys = jax.random.split(key, 5 + 6 * n_blocks)
    ki = iter(range(len(keys)))

    def conv_w(k_, ic, oc, ksz):
        bound = 1.0 / math.sqrt(ic * ksz * ksz)
        w = jax.random.uniform(k_, (ksz, ksz, ic, oc), jnp.float32, -bound, bound)
        return w.reshape(ksz * ksz, ic, oc)           # tap-major (kh*k + kw, C, OC)

    params = {}
    params["stem_w"] = conv_w(keys[next(ki)], input_nc, ngf, 7)
    params["stem_gamma"] = 1.0 + 0.1 * jax.random.normal(keys[next(ki)], (ngf,), jnp.float32)
    params["stem_beta"] = 0.1 * jax.random.normal(keys[next(ki)], (ngf,), jnp.float32)

    blocks = []
    for _ in range(n_blocks):
        b = {}
        b["w1"] = conv_w(keys[next(ki)], ngf, ngf, 3)
        b["gamma1"] = 1.0 + 0.1 * jax.random.normal(keys[next(ki)], (ngf,), jnp.float32)
        b["beta1"] = 0.1 * jax.random.normal(keys[next(ki)], (ngf,), jnp.float32)
        b["w2"] = conv_w(keys[next(ki)], ngf, ngf, 3)
        b["gamma2"] = 1.0 + 0.1 * jax.random.normal(keys[next(ki)], (ngf,), jnp.float32)
        b["beta2"] = 0.1 * jax.random.normal(keys[next(ki)], (ngf,), jnp.float32)
        blocks.append(b)
    params["blocks"] = blocks

    bound = 1.0 / math.sqrt(ngf * 9)
    params["head_w"] = conv_w(keys[next(ki)], ngf, output_nc, 3)
    params["head_b"] = jax.random.uniform(keys[next(ki)], (output_nc,),
                                          jnp.float32, -bound, bound)
    return params


def netg_structure_forward(x_nchw, params, out_size):
    x = jnp.transpose(x_nchw, (0, 2, 3, 1)).astype(jnp.float32)   # NCHW -> NHWC
    N, H, W, _ = x.shape
    cnt = float(N * H * W)

    # Stem: Conv7x7(p=3) -> BN(train stats) -> ReLU.  Conv bias omitted (BN cancels it).
    y, (s, q) = conv2d_same_pallas(x, params["stem_w"], k=7, pad=3,
                                   pad_mode="zero", with_stats=True)
    scale, shift = _bn_scale_shift(s, q, cnt, params["stem_gamma"], params["stem_beta"])
    h = bn_apply_pallas(y, scale, shift, relu=True)               # bf16 NHWC

    # Resnet blocks: reflect-pad 3x3 conv -> BN -> ReLU -> reflect-pad 3x3 conv -> BN, + x
    for blk in params["blocks"]:
        y1, (s1, q1) = conv2d_same_pallas(h, blk["w1"], k=3, pad=1,
                                          pad_mode="reflect", with_stats=True)
        sc1, sh1 = _bn_scale_shift(s1, q1, cnt, blk["gamma1"], blk["beta1"])
        a = bn_apply_pallas(y1, sc1, sh1, relu=True)
        y2, (s2, q2) = conv2d_same_pallas(a, blk["w2"], k=3, pad=1,
                                          pad_mode="reflect", with_stats=True)
        sc2, sh2 = _bn_scale_shift(s2, q2, cnt, blk["gamma2"], blk["beta2"])
        h = bn_apply_pallas(y2, sc2, sh2, relu=False, residual=h)  # fused residual add

    # Head: Conv3x3(p=1) with bias, no norm / activation.
    y, _ = conv2d_same_pallas(h, params["head_w"], k=3, pad=1, pad_mode="zero",
                              bias=params["head_b"], with_stats=False)

    # Bilinear upsample to the target size (align_corners=False).
    up = bilinear_upsample_pallas(y, out_size[0], out_size[1])
    return jnp.transpose(up, (0, 3, 1, 2))                        # back to NCHW


# ---------------------------------------------------------------------------
# Pure-JAX reference (for correctness check)
# ---------------------------------------------------------------------------
def _reference_bilinear(x, out_h, out_w):
    rh = jnp.asarray(_interp_matrix(x.shape[1], out_h))
    rw = jnp.asarray(_interp_matrix(x.shape[2], out_w))
    t = jnp.einsum("oh,nhwc->nowc", rh, x)
    return jnp.einsum("pw,nowc->nopc", rw, t)


def reference_forward(x_nchw, params, out_size):
    x = jnp.transpose(x_nchw, (0, 2, 3, 1)).astype(jnp.float32)

    def conv(h, w_flat, ksz, pad, mode, bias=None):
        if mode == "reflect":
            hp = jnp.pad(h, ((0, 0), (pad, pad), (pad, pad), (0, 0)), mode="reflect")
        else:
            hp = jnp.pad(h, ((0, 0), (pad, pad), (pad, pad), (0, 0)))
        ic, oc = h.shape[-1], w_flat.shape[-1]
        w = w_flat.reshape(ksz, ksz, ic, oc)
        y = lax.conv_general_dilated(hp, w, (1, 1), "VALID",
                                     dimension_numbers=("NHWC", "HWIO", "NHWC"))
        if bias is not None:
            y = y + bias
        return y

    def bn(y, gamma, beta):
        mean = jnp.mean(y, axis=(0, 1, 2))
        var = jnp.mean(jnp.square(y - mean), axis=(0, 1, 2))
        return (y - mean) * lax.rsqrt(var + BN_EPS) * gamma + beta

    h = jax.nn.relu(bn(conv(x, params["stem_w"], 7, 3, "zero"),
                       params["stem_gamma"], params["stem_beta"]))
    for blk in params["blocks"]:
        a = jax.nn.relu(bn(conv(h, blk["w1"], 3, 1, "reflect"),
                           blk["gamma1"], blk["beta1"]))
        c = bn(conv(a, blk["w2"], 3, 1, "reflect"), blk["gamma2"], blk["beta2"])
        h = h + c
    y = conv(h, params["head_w"], 3, 1, "zero", bias=params["head_b"])
    up = _reference_bilinear(y, out_size[0], out_size[1])
    return jnp.transpose(up, (0, 3, 1, 2))


if __name__ == "__main__":
    # Small config consistent with the module structure
    # (full module: input_nc=512, ngf=128, output_nc=12, n_blocks=3, size=(241,121)).
    N, INPUT_NC, NGF, OUTPUT_NC, N_BLOCKS = 2, 8, 16, 12, 2
    H, W = 12, 10
    OUT_SIZE = (21, 17)

    key = jax.random.PRNGKey(0)
    kp, kx = jax.random.split(key)
    params = init_params(kp, INPUT_NC, NGF, OUTPUT_NC, N_BLOCKS)
    x = jax.random.normal(kx, (N, INPUT_NC, H, W), jnp.float32)

    out = jax.block_until_ready(netg_structure_forward(x, params, OUT_SIZE))
    ref = jax.block_until_ready(reference_forward(x, params, OUT_SIZE))

    assert out.shape == ref.shape == (N, OUTPUT_NC, OUT_SIZE[0], OUT_SIZE[1]), (
        out.shape, ref.shape)
    err = float(jnp.max(jnp.abs(out - ref)))
    scale = float(jnp.max(jnp.abs(ref)))
    # bf16 matmul operands + bf16 inter-layer activations vs the all-f32 reference.
    assert err <= 0.05 * scale + 1e-3, ("mismatch vs reference", err, scale)

    print("KERNEL_OK")
</pallas_src>

<mosaic_0001>
module attributes {stable_mosaic.version = 11 : i64} {
  func.func @_conv_kernel(%arg0: i32, %arg1: i32, %arg2: memref<1x22x16x8xbf16, #tpu.memory_space<vmem>>, %arg3: memref<49x8x16xbf16, #tpu.memory_space<vmem>>, %arg4: memref<1x8x10x16xf32, #tpu.memory_space<vmem>>, %arg5: memref<1x1x16xf32, #tpu.memory_space<vmem>>, %arg6: memref<1x1x16xf32, #tpu.memory_space<vmem>>) attributes {dimension_semantics = [#tpu.dimension_semantics<parallel>, #tpu.dimension_semantics<arbitrary>], iteration_bounds = array<i64: 2, 2>, scalar_prefetch = 0 : i64, scratch_operands = 0 : i64, tpu.core_type = #tpu.core_type<tc>, window_params = [{transform_indices = @transform_0, window_bounds = array<i64: 1, 22, 16, 8>}, {pipeline_mode = #tpu.pipeline_mode<synchronous>, transform_indices = @transform_1, window_bounds = array<i64: 49, 8, 16>}, {transform_indices = @transform_2, window_bounds = array<i64: 1, 8, 10, 16>}, {transform_indices = @transform_3, window_bounds = array<i64: 1, 1, 16>}, {transform_indices = @transform_4, window_bounds = array<i64: 1, 1, 16>}]} {
    %c8_i32 = arith.constant 8 : i32
    %0 = arith.muli %arg1, %c8_i32 : i32
    %c0_i32 = arith.constant 0 : i32
    %1 = arith.cmpi eq, %arg1, %c0_i32 : i32
    %2 = arith.extui %1 : i1 to i32
    %c0_i32_0 = arith.constant 0 : i32
    %3 = arith.cmpi ne, %2, %c0_i32_0 : i32
    scf.if %3 {
      %cst_16 = arith.constant 0.000000e+00 : f32
      %20 = vector.broadcast %cst_16 : f32 to vector<1x1x16xf32>
      %c0_17 = arith.constant 0 : index
      %c0_18 = arith.constant 0 : index
      %c0_19 = arith.constant 0 : index
      %21 = vector.load %arg5[%c0_17, %c0_18, %c0_19] : memref<1x1x16xf32, #tpu.memory_space<vmem>>, vector<1x1x16xf32>
      tpu.vector_store %arg5[%c0_17, %c0_18, %c0_19], %20 {strides = array<i32>} : memref<1x1x16xf32, #tpu.memory_space<vmem>>, vector<1x1x16xf32>,
      %cst_20 = arith.constant 0.000000e+00 : f32
      %22 = vector.broadcast %cst_20 : f32 to vector<1x1x16xf32>
      %c0_21 = arith.constant 0 : index
      %c0_22 = arith.constant 0 : index
      %c0_23 = arith.constant 0 : index
      %23 = vector.load %arg6[%c0_21, %c0_22, %c0_23] : memref<1x1x16xf32, #tpu.memory_space<vmem>>, vector<1x1x16xf32>
      tpu.vector_store %arg6[%c0_21, %c0_22, %c0_23], %22 {strides = array<i32>} : memref<1x1x16xf32, #tpu.memory_space<vmem>>, vector<1x1x16xf32>,
    } else {
    }
    %cst = arith.constant 0.000000e+00 : f32
    %4 = vector.broadcast %cst : f32 to vector<1x16xf32>
    %cst_1 = arith.constant 0.000000e+00 : f32
    %5 = vector.broadcast %cst_1 : f32 to vector<1x16xf32>
    %c0_i32_2 = arith.constant 0 : i32
    %c8_i32_3 = arith.constant 8 : i32
    %6 = arith.addi %c0_i32_2, %c8_i32_3 : i32
    %c1_i32 = arith.constant 1 : i32
    %7:2 = scf.for %arg7 = %c0_i32_2 to %6 step %c1_i32 iter_args(%arg8 = %4, %arg9 = %5) -> (vector<1x16xf32>, vector<1x16xf32>)  : i32 {
      %cst_16 = arith.constant 0.000000e+00 : f32
      %20 = vector.broadcast %cst_16 : f32 to vector<10x16xf32>
      %21 = arith.addi %0, %arg7 : i32
      %c0_i32_17 = arith.constant 0 : i32
      %22 = arith.addi %21, %c0_i32_17 : i32
      %c0_18 = arith.constant 0 : index
      %23 = arith.index_cast %22 : i32 to index
      %c0_19 = arith.constant 0 : index
      %c0_20 = arith.constant 0 : index
      %24 = vector.load %arg2[%c0_18, %23, %c0_19, %c0_20] : memref<1x22x16x8xbf16, #tpu.memory_space<vmem>>, vector<1x1x10x8xbf16>
      %25 = vector.shape_cast %24 : vector<1x1x10x8xbf16> to vector<10x8xbf16>
      %c0_21 = arith.constant 0 : index
      %c0_22 = arith.constant 0 : index
      %c0_23 = arith.constant 0 : index
      %26 = vector.load %arg3[%c0_21, %c0_22, %c0_23] : memref<49x8x16xbf16, #tpu.memory_space<vmem>>, vector<1x8x16xbf16>
      %27 = vector.shape_cast %26 : vector<1x8x16xbf16> to vector<8x16xbf16>
      %cst_24 = arith.constant dense<0.000000e+00> : vector<10x16xf32>
      %28 = tpu.matmul %25, %27, %cst_24 {dimension_numbers = #tpu.dot_dimension_numbers<[1], [0], [0], [1], [0, 0, 1, 1], [], []>} : vector<10x8xbf16>, vector<8x16xbf16>, vector<10x16xf32> -> vector<10x16xf32>
      %29 = arith.addf %20, %28 : vector<10x16xf32>
      %30 = arith.addi %0, %arg7 : i32
      %c0_i32_25 = arith.constant 0 : i32
      %31 = arith.addi %30, %c0_i32_25 : i32
      %c0_26 = arith.constant 0 : index
      %32 = arith.index_cast %31 : i32 to index
      %c1 = arith.constant 1 : index
      %c0_27 = arith.constant 0 : index
      %33 = vector.load %arg2[%c0_26, %32, %c1, %c0_27] : memref<1x22x16x8xbf16, #tpu.memory_space<vmem>>, vector<1x1x10x8xbf16>
      %34 = vector.shape_cast %33 : vector<1x1x10x8xbf16> to vector<10x8xbf16>
      %c1_28 = arith.constant 1 : index
      %c0_29 = arith.constant 0 : index
      %c0_30 = arith.constant 0 : index
      %35 = vector.load %arg3[%c1_28, %c0_29, %c0_30] : memref<49x8x16xbf16, #tpu.memory_space<vmem>>, vector<1x8x16xbf16>
      %36 = vector.shape_cast %35 : vector<1x8x16xbf16> to vector<8x16xbf16>
      %cst_31 = arith.constant dense<0.000000e+00> : vector<10x16xf32>
      %37 = tpu.matmul %34, %36, %cst_31 {dimension_numbers = #tpu.dot_dimension_numbers<[1], [0], [0], [1], [0, 0, 1, 1], [], []>} : vector<10x8xbf16>, vector<8x16xbf16>, vector<10x16xf32> -> vector<10x16xf32>
      %38 = arith.addf %29, %37 : vector<10x16xf32>
      %39 = arith.addi %0, %arg7 : i32
      %c0_i32_32 = arith.constant 0 : i32
      %40 = arith.addi %39, %c0_i32_32 : i32
      %c0_33 = arith.constant 0 : index
      %41 = arith.index_cast %40 : i32 to index
      %c2 = arith.constant 2 : index
      %c0_34 = arith.constant 0 : index
      %42 = vector.load %arg2[%c0_33, %41, %c2, %c0_34] : memref<1x22x16x8xbf16, #tpu.memory_space<vmem>>, vector<1x1x10x8xbf16>
      %43 = vector.shape_cast %42 : vector<1x1x10x8xbf16> to vector<10x8xbf16>
      %c2_35 = arith.constant 2 : index
      %c0_36 = arith.constant 0 : index
      %c0_37 = arith.constant 0 : index
      %44 = vector.load %arg3[%c2_35, %c0_36, %c0_37] : memref<49x8x16xbf16, #tpu.memory_space<vmem>>, vector<1x8x16xbf16>
      %45 = vector.shape_cast %44 : vector<1x8x16xbf16> to vector<8x16xbf16>
      %cst_38 = arith.constant dense<0.000000e+00> : vector<10x16xf32>
      %46 = tpu.matmul %43, %45, %cst_38 {dimension_numbers = #tpu.dot_dimension_numbers<[1], [0], [0], [1], [0, 0, 1, 1], [], []>} : vector<10x8xbf16>, vector<8x16xbf16>, vector<10x16xf32> -> vector<10x16xf32>
      %47 = arith.addf %38, %46 : vector<10x16xf32>
      %48 = arith.addi %0, %arg7 : i32
      %c0_i32_39 = arith.constant 0 : i32
      %49 = arith.addi %48, %c0_i32_39 : i32
      %c0_40 = arith.constant 0 : index
      %50 = arith.index_cast %49 : i32 to index
      %c3 = arith.constant 3 : index
      %c0_41 = arith.constant 0 : index
      %51 = vector.load %arg2[%c0_40, %50, %c3, %c0_41] : memref<1x22x16x8xbf16, #tpu.memory_space<vmem>>, vector<1x1x10x8xbf16>
      %52 = vector.shape_cast %51 : vector<1x1x10x8xbf16> to vector<10x8xbf16>
      %c3_42 = arith.constant 3 : index
      %c0_43 = arith.constant 0 : index
      %c0_44 = arith.constant 0 : index
      %53 = vector.load %arg3[%c3_42, %c0_43, %c0_44] : memref<49x8x16xbf16, #tpu.memory_space<vmem>>, vector<1x8x16xbf16>
      %54 = vector.shape_cast %53 : vector<1x8x16xbf16> to vector<8x16xbf16>
      %cst_45 = arith.constant dense<0.000000e+00> : vector<10x16xf32>
      %55 = tpu.matmul %52, %54, %cst_45 {dimension_numbers = #tpu.dot_dimension_numbers<[1], [0], [0], [1], [0, 0, 1, 1], [], []>} : vector<10x8xbf16>, vector<8x16xbf16>, vector<10x16xf32> -> vector<10x16xf32>
      %56 = arith.addf %47, %55 : vector<10x16xf32>
      %57 = arith.addi %0, %arg7 : i32
      %c0_i32_46 = arith.constant 0 : i32
      %58 = arith.addi %57, %c0_i32_46 : i32
      %c0_47 = arith.constant 0 : index
      %59 = arith.index_cast %58 : i32 to index
      %c4 = arith.constant 4 : index
      %c0_48 = arith.constant 0 : index
      %60 = vector.load %arg2[%c0_47, %59, %c4, %c0_48] : memref<1x22x16x8xbf16, #tpu.memory_space<vmem>>, vector<1x1x10x8xbf16>
      %61 = vector.shape_cast %60 : vector<1x1x10x8xbf16> to vector<10x8xbf16>
      %c4_49 = arith.constant 4 : index
      %c0_50 = arith.constant 0 : index
      %c0_51 = arith.constant 0 : index
      %62 = vector.load %arg3[%c4_49, %c0_50, %c0_51] : memref<49x8x16xbf16, #tpu.memory_space<vmem>>, vector<1x8x16xbf16>
      %63 = vector.shape_cast %62 : vector<1x8x16xbf16> to vector<8x16xbf16>
      %cst_52 = arith.constant dense<0.000000e+00> : vector<10x16xf32>
      %64 = tpu.matmul %61, %63, %cst_52 {dimension_numbers = #tpu.dot_dimension_numbers<[1], [0], [0], [1], [0, 0, 1, 1], [], []>} : vector<10x8xbf16>, vector<8x16xbf16>, vector<10x16xf32> -> vector<10x16xf32>
      %65 = arith.addf %56, %64 : vector<10x16xf32>
      %66 = arith.addi %0, %arg7 : i32
      %c0_i32_53 = arith.constant 0 : i32
      %67 = arith.addi %66, %c0_i32_53 : i32
      %c0_54 = arith.constant 0 : index
      %68 = arith.index_cast %67 : i32 to index
      %c5 = arith.constant 5 : index
      %c0_55 = arith.constant 0 : index
      %69 = vector.load %arg2[%c0_54, %68, %c5, %c0_55] : memref<1x22x16x8xbf16, #tpu.memory_space<vmem>>, vector<1x1x10x8xbf16>
      %70 = vector.shape_cast %69 : vector<1x1x10x8xbf16> to vector<10x8xbf16>
      %c5_56 = arith.constant 5 : index
      %c0_57 = arith.constant 0 : index
      %c0_58 = arith.constant 0 : index
      %71 = vector.load %arg3[%c5_56, %c0_57, %c0_58] : memref<49x8x16xbf16, #tpu.memory_space<vmem>>, vector<1x8x16xbf16>
      %72 = vector.shape_cast %71 : vector<1x8x16xbf16> to vector<8x16xbf16>
      %cst_59 = arith.constant dense<0.000000e+00> : vector<10x16xf32>
      %73 = tpu.matmul %70, %72, %cst_59 {dimension_numbers = #tpu.dot_dimension_numbers<[1], [0], [0], [1], [0, 0, 1, 1], [], []>} : vector<10x8xbf16>, vector<8x16xbf16>, vector<10x16xf32> -> vector<10x16xf32>
      %74 = arith.addf %65, %73 : vector<10x16xf32>
      %75 = arith.addi %0, %arg7 : i32
      %c0_i32_60 = arith.constant 0 : i32
      %76 = arith.addi %75, %c0_i32_60 : i32
      %c0_61 = arith.constant 0 : index
      %77 = arith.index_cast %76 : i32 to index
      %c6 = arith.constant 6 : index
      %c0_62 = arith.constant 0 : index
      %78 = vector.load %arg2[%c0_61, %77, %c6, %c0_62] : memref<1x22x16x8xbf16, #tpu.memory_space<vmem>>, vector<1x1x10x8xbf16>
      %79 = vector.shape_cast %78 : vector<1x1x10x8xbf16> to vector<10x8xbf16>
      %c6_63 = arith.constant 6 : index
      %c0_64 = arith.constant 0 : index
      %c0_65 = arith.constant 0 : index
      %80 = vector.load %arg3[%c6_63, %c0_64, %c0_65] : memref<49x8x16xbf16, #tpu.memory_space<vmem>>, vector<1x8x16xbf16>
      %81 = vector.shape_cast %80 : vector<1x8x16xbf16> to vector<8x16xbf16>
      %cst_66 = arith.constant dense<0.000000e+00> : vector<10x16xf32>
      %82 = tpu.matmul %79, %81, %cst_66 {dimension_numbers = #tpu.dot_dimension_numbers<[1], [0], [0], [1], [0, 0, 1, 1], [], []>} : vector<10x8xbf16>, vector<8x16xbf16>, vector<10x16xf32> -> vector<10x16xf32>
      %83 = arith.addf %74, %82 : vector<10x16xf32>
      %84 = arith.addi %0, %arg7 : i32
      %c1_i32_67 = arith.constant 1 : i32
      %85 = arith.addi %84, %c1_i32_67 : i32
      %c0_68 = arith.constant 0 : index
      %86 = arith.index_cast %85 : i32 to index
      %c0_69 = arith.constant 0 : index
      %c0_70 = arith.constant 0 : index
      %87 = vector.load %arg2[%c0_68, %86, %c0_69, %c0_70] : memref<1x22x16x8xbf16, #tpu.memory_space<vmem>>, vector<1x1x10x8xbf16>
      %88 = vector.shape_cast %87 : vector<1x1x10x8xbf16> to vector<10x8xbf16>
      %c7 = arith.constant 7 : index
      %c0_71 = arith.constant 0 : index
      %c0_72 = arith.constant 0 : index
      %89 = vector.load %arg3[%c7, %c0_71, %c0_72] : memref<49x8x16xbf16, #tpu.memory_space<vmem>>, vector<1x8x16xbf16>
      %90 = vector.shape_cast %89 : vector<1x8x16xbf16> to vector<8x16xbf16>
      %cst_73 = arith.constant dense<0.000000e+00> : vector<10x16xf32>
      %91 = tpu.matmul %88, %90, %cst_73 {dimension_numbers = #tpu.dot_dimension_numbers<[1], [0], [0], [1], [0, 0, 1, 1], [], []>} : vector<10x8xbf16>, vector<8x16xbf16>, vector<10x16xf32> -> vector<10x16xf32>
      %92 = arith.addf %83, %91 : vector<10x16xf32>
      %93 = arith.addi %0, %arg7 : i32
      %c1_i32_74 = arith.constant 1 : i32
      %94 = arith.addi %93, %c1_i32_74 : i32
      %c0_75 = arith.constant 0 : index
      %95 = arith.index_cast %94 : i32 to index
      %c1_76 = arith.constant 1 : index
      %c0_77 = arith.constant 0 : index
      %96 = vector.load %arg2[%c0_75, %95, %c1_76, %c0_77] : memref<1x22x16x8xbf16, #tpu.memory_space<vmem>>, vector<1x1x10x8xbf16>
      %97 = vector.shape_cast %96 : vector<1x1x10x8xbf16> to vector<10x8xbf16>
      %c8 = arith.constant 8 : index
      %c0_78 = arith.constant 0 : index
      %c0_79 = arith.constant 0 : index
      %98 = vector.load %arg3[%c8, %c0_78, %c0_79] : memref<49x8x16xbf16, #tpu.memory_space<vmem>>, vector<1x8x16xbf16>
      %99 = vector.shape_cast %98 : vector<1x8x16xbf16> to vector<8x16xbf16>
      %cst_80 = arith.constant dense<0.000000e+00> : vector<10x16xf32>
      %100 = tpu.matmul %97, %99, %cst_80 {dimension_numbers = #tpu.dot_dimension_numbers<[1], [0], [0], [1], [0, 0, 1, 1], [], []>} : vector<10x8xbf16>, vector<8x16xbf16>, vector<10x16xf32> -> vector<10x16xf32>
      %101 = arith.addf %92, %100 : vector<10x16xf32>
      %102 = arith.addi %0, %arg7 : i32
      %c1_i32_81 = arith.constant 1 : i32
      %103 = arith.addi %102, %c1_i32_81 : i32
      %c0_82 = arith.constant 0 : index
      %104 = arith.index_cast %103 : i32 to index
      %c2_83 = arith.constant 2 : index
      %c0_84 = arith.constant 0 : index
      %105 = vector.load %arg2[%c0_82, %104, %c2_83, %c0_84] : memref<1x22x16x8xbf16, #tpu.memory_space<vmem>>, vector<1x1x10x8xbf16>
      %106 = vector.shape_cast %105 : vector<1x1x10x8xbf16> to vector<10x8xbf16>
      %c9 = arith.constant 9 : index
      %c0_85 = arith.constant 0 : index
      %c0_86 = arith.constant 0 : index
      %107 = vector.load %arg3[%c9, %c0_85, %c0_86] : memref<49x8x16xbf16, #tpu.memory_space<vmem>>, vector<1x8x16xbf16>
      %108 = vector.shape_cast %107 : vector<1x8x16xbf16> to vector<8x16xbf16>
      %cst_87 = arith.constant dense<0.000000e+00> : vector<10x16xf32>
      %109 = tpu.matmul %106, %108, %cst_87 {dimension_numbers = #tpu.dot_dimension_numbers<[1], [0], [0], [1], [0, 0, 1, 1], [], []>} : vector<10x8xbf16>, vector<8x16xbf16>, vector<10x16xf32> -> vector<10x16xf32>
      %110 = arith.addf %101, %109 : vector<10x16xf32>
      %111 = arith.addi %0, %arg7 : i32
      %c1_i32_88 = arith.constant 1 : i32
      %112 = arith.addi %111, %c1_i32_88 : i32
      %c0_89 = arith.constant 0 : index
      %113 = arith.index_cast %112 : i32 to index
      %c3_90 = arith.constant 3 : index
      %c0_91 = arith.constant 0 : index
      %114 = vector.load %arg2[%c0_89, %113, %c3_90, %c0_91] : memref<1x22x16x8xbf16, #tpu.memory_space<vmem>>, vector<1x1x10x8xbf16>
      %115 = vector.shape_cast %114 : vector<1x1x10x8xbf16> to vector<10x8xbf16>
      %c10 = arith.constant 10 : index
      %c0_92 = arith.constant 0 : index
      %c0_93 = arith.constant 0 : index
      %116 = vector.load %arg3[%c10, %c0_92, %c0_93] : memref<49x8x16xbf16, #tpu.memory_space<vmem>>, vector<1x8x16xbf16>
      %117 = vector.shape_cast %116 : vector<1x8x16xbf16> to vector<8x16xbf16>
      %cst_94 = arith.constant dense<0.000000e+00> : vector<10x16xf32>
      %118 = tpu.matmul %115, %117, %cst_94 {dimension_numbers = #tpu.dot_dimension_numbers<[1], [0], [0], [1], [0, 0, 1, 1], [], []>} : vector<10x8xbf16>, vector<8x16xbf16>, vector<10x16xf32> -> vector<10x16xf32>
      %119 = arith.addf %110, %118 : vector<10x16xf32>
      %120 = arith.addi %0, %arg7 : i32
      %c1_i32_95 = arith.constant 1 : i32
      %121 = arith.addi %120, %c1_i32_95 : i32
      %c0_96 = arith.constant 0 : index
      %122 = arith.index_cast %121 : i32 to index
      %c4_97 = arith.constant 4 : index
      %c0_98 = arith.constant 0 : index
      %123 = vector.load %arg2[%c0_96, %122, %c4_97, %c0_98] : memref<1x22x16x8xbf16, #tpu.memory_space<vmem>>, vector<1x1x10x8xbf16>
      %124 = vector.shape_cast %123 : vector<1x1x10x8xbf16> to vector<10x8xbf16>
      %c11 = arith.constant 11 : index
      %c0_99 = arith.constant 0 : index
      %c0_100 = arith.constant 0 : index
      %125 = vector.load %arg3[%c11, %c0_99, %c0_100] : memref<49x8x16xbf16, #tpu.memory_space<vmem>>, vector<1x8x16xbf16>
      %126 = vector.shape_cast %125 : vector<1x8x16xbf16> to vector<8x16xbf16>
      %cst_101 = arith.constant dense<0.000000e+00> : vector<10x16xf32>
      %127 = tpu.matmul %124, %126, %cst_101 {dimension_numbers = #tpu.dot_dimension_numbers<[1], [0], [0], [1], [0, 0, 1, 1], [], []>} : vector<10x8xbf16>, vector<8x16xbf16>, vector<10x16xf32> -> vector<10x16xf32>
      %128 = arith.addf %119, %127 : vector<10x16xf32>
      %129 = arith.addi %0, %arg7 : i32
      %c1_i32_102 = arith.constant 1 : i32
      %130 = arith.addi %129, %c1_i32_102 : i32
      %c0_103 = arith.constant 0 : index
      %131 = arith.index_cast %130 : i32 to index
      %c5_104 = arith.constant 5 : index
      %c0_105 = arith.constant 0 : index
      %132 = vector.load %arg2[%c0_103, %131, %c5_104, %c0_105] : memref<1x22x16x8xbf16, #tpu.memory_space<vmem>>, vector<1x1x10x8xbf16>
      %133 = vector.shape_cast %132 : vector<1x1x10x8xbf16> to vector<10x8xbf16>
      %c12 = arith.constant 12 : index
      %c0_106 = arith.constant 0 : index
      %c0_107 = arith.constant 0 : index
      %134 = vector.load %arg3[%c12, %c0_106, %c0_107] : memref<49x8x16xbf16, #tpu.memory_space<vmem>>, vector<1x8x16xbf16>
      %135 = vector.shape_cast %134 : vector<1x8x16xbf16> to vector<8x16xbf16>
      %cst_108 = arith.constant dense<0.000000e+00> : vector<10x16xf32>
      %136 = tpu.matmul %133, %135, %cst_108 {dimension_numbers = #tpu.dot_dimension_numbers<[1], [0], [0], [1], [0, 0, 1, 1], [], []>} : vector<10x8xbf16>, vector<8x16xbf16>, vector<10x16xf32> -> vector<10x16xf32>
      %137 = arith.addf %128, %136 : vector<10x16xf32>
      %138 = arith.addi %0, %arg7 : i32
      %c1_i32_109 = arith.constant 1 : i32
      %139 = arith.addi %138, %c1_i32_109 : i32
      %c0_110 = arith.constant 0 : index
      %140 = arith.index_cast %139 : i32 to index
      %c6_111 = arith.constant 6 : index
      %c0_112 = arith.constant 0 : index
      %141 = vector.load %arg2[%c0_110, %140, %c6_111, %c0_112] : memref<1x22x16x8xbf16, #tpu.memory_space<vmem>>, vector<1x1x10x8xbf16>
      %142 = vector.shape_cast %141 : vector<1x1x10x8xbf16> to vector<10x8xbf16>
      %c13 = arith.constant 13 : index
      %c0_113 = arith.constant 0 : index
      %c0_114 = arith.constant 0 : index
      %143 = vector.load %arg3[%c13, %c0_113, %c0_114] : memref<49x8x16xbf16, #tpu.memory_space<vmem>>, vector<1x8x16xbf16>
      %144 = vector.shape_cast %143 : vector<1x8x16xbf16> to vector<8x16xbf16>
      %cst_115 = arith.constant dense<0.000000e+00> : vector<10x16xf32>
      %145 = tpu.matmul %142, %144, %cst_115 {dimension_numbers = #tpu.dot_dimension_numbers<[1], [0], [0], [1], [0, 0, 1, 1], [], []>} : vector<10x8xbf16>, vector<8x16xbf16>, vector<10x16xf32> -> vector<10x16xf32>
      %146 = arith.addf %137, %145 : vector<10x16xf32>
      %147 = arith.addi %0, %arg7 : i32
      %c2_i32 = arith.constant 2 : i32
      %148 = arith.addi %147, %c2_i32 : i32
      %c0_116 = arith.constant 0 : index
      %149 = arith.index_cast %148 : i32 to index
      %c0_117 = arith.constant 0 : index
      %c0_118 = arith.constant 0 : index
      %150 = vector.load %arg2[%c0_116, %149, %c0_117, %c0_118] : memref<1x22x16x8xbf16, #tpu.memory_space<vmem>>, vector<1x1x10x8xbf16>
      %151 = vector.shape_cast %150 : vector<1x1x10x8xbf16> to vector<10x8xbf16>
      %c14 = arith.constant 14 : index
      %c0_119 = arith.constant 0 : index
      %c0_120 = arith.constant 0 : index
      %152 = vector.load %arg3[%c14, %c0_119, %c0_120] : memref<49x8x16xbf16, #tpu.memory_space<vmem>>, vector<1x8x16xbf16>
      %153 = vector.shape_cast %152 : vector<1x8x16xbf16> to vector<8x16xbf16>
      %cst_121 = arith.constant dense<0.000000e+00> : vector<10x16xf32>
      %154 = tpu.matmul %151, %153, %cst_121 {dimension_numbers = #tpu.dot_dimension_numbers<[1], [0], [0], [1], [0, 0, 1, 1], [], []>} : vector<10x8xbf16>, vector<8x16xbf16>, vector<10x16xf32> -> vector<10x16xf32>
      %155 = arith.addf %146, %154 : vector<10x16xf32>
      %156 = arith.addi %0, %arg7 : i32
      %c2_i32_122 = arith.constant 2 : i32
      %157 = arith.addi %156, %c2_i32_122 : i32
      %c0_123 = arith.constant 0 : index
      %158 = arith.index_cast %157 : i32 to index
      %c1_124 = arith.constant 1 : index
      %c0_125 = arith.constant 0 : index
      %159 = vector.load %arg2[%c0_123, %158, %c1_124, %c0_125] : memref<1x22x16x8xbf16, #tpu.memory_space<vmem>>, vector<1x1x10x8xbf16>
      %160 = vector.shape_cast %159 : vector<1x1x10x8xbf16> to vector<10x8xbf16>
      %c15 = arith.constant 15 : index
      %c0_126 = arith.constant 0 : index
      %c0_127 = arith.constant 0 : index
      %161 = vector.load %arg3[%c15, %c0_126, %c0_127] : memref<49x8x16xbf16, #tpu.memory_space<vmem>>, vector<1x8x16xbf16>
      %162 = vector.shape_cast %161 : vector<1x8x16xbf16> to vector<8x16xbf16>
      %cst_128 = arith.constant dense<0.000000e+00> : vector<10x16xf32>
      %163 = tpu.matmul %160, %162, %cst_128 {dimension_numbers = #tpu.dot_dimension_numbers<[1], [0], [0], [1], [0, 0, 1, 1], [], []>} : vector<10x8xbf16>, vector<8x16xbf16>, vector<10x16xf32> -> vector<10x16xf32>
      %164 = arith.addf %155, %163 : vector<10x16xf32>
      %165 = arith.addi %0, %arg7 : i32
      %c2_i32_129 = arith.constant 2 : i32
      %166 = arith.addi %165, %c2_i32_129 : i32
      %c0_130 = arith.constant 0 : index
      %167 = arith.index_cast %166 : i32 to index
      %c2_131 = arith.constant 2 : index
      %c0_132 = arith.constant 0 : index
      %168 = vector.load %arg2[%c0_130, %167, %c2_131, %c0_132] : memref<1x22x16x8xbf16, #tpu.memory_space<vmem>>, vector<1x1x10x8xbf16>
      %169 = vector.shape_cast %168 : vector<1x1x10x8xbf16> to vector<10x8xbf16>
      %c16 = arith.constant 16 : index
      %c0_133 = arith.constant 0 : index
      %c0_134 = arith.constant 0 : index
      %170 = vector.load %arg3[%c16, %c0_133, %c0_134] : memref<49x8x16xbf16, #tpu.memory_space<vmem>>, vector<1x8x16xbf16>
      %171 = vector.shape_cast %170 : vector<1x8x16xbf16> to vector<8x16xbf16>
      %cst_135 = arith.constant dense<0.000000e+00> : vector<10x16xf32>
      %172 = tpu.matmul %169, %171, %cst_135 {dimension_numbers = #tpu.dot_dimension_numbers<[1], [0], [0], [1], [0, 0, 1, 1], [], []>} : vector<10x8xbf16>, vector<8x16xbf16>, vector<10x16xf32> -> vector<10x16xf32>
      %173 = arith.addf %164, %172 : vector<10x16xf32>
      %174 = arith.addi %0, %arg7 : i32
      %c2_i32_136 = arith.constant 2 : i32
      %175 = arith.addi %174, %c2_i32_136 : i32
      %c0_137 = arith.constant 0 : index
      %176 = arith.index_cast %175 : i32 to index
      %c3_138 = arith.constant 3 : index
      %c0_139 = arith.constant 0 : index
      %177 = vector.load %arg2[%c0_137, %176, %c3_138, %c0_139] : memref<1x22x16x8xbf16, #tpu.memory_space<vmem>>, vector<1x1x10x8xbf16>
      %178 = vector.shape_cast %177 : vector<1x1x10x8xbf16> to vector<10x8xbf16>
      %c17 = arith.constant 17 : index
      %c0_140 = arith.constant 0 : index
      %c0_141 = arith.constant 0 : index
      %179 = vector.load %arg3[%c17, %c0_140, %c0_141] : memref<49x8x16xbf16, #tpu.memory_space<vmem>>, vector<1x8x16xbf16>
      %180 = vector.shape_cast %179 : vector<1x8x16xbf16> to vector<8x16xbf16>
      %cst_142 = arith.constant dense<0.000000e+00> : vector<10x16xf32>
      %181 = tpu.matmul %178, %180, %cst_142 {dimension_numbers = #tpu.dot_dimension_numbers<[1], [0], [0], [1], [0, 0, 1, 1], [], []>} : vector<10x8xbf16>, vector<8x16xbf16>, vector<10x16xf32> -> vector<10x16xf32>
      %182 = arith.addf %173, %181 : vector<10x16xf32>
      %183 = arith.addi %0, %arg7 : i32
      %c2_i32_143 = arith.constant 2 : i32
      %184 = arith.addi %183, %c2_i32_143 : i32
      %c0_144 = arith.constant 0 : index
      %185 = arith.index_cast %184 : i32 to index
      %c4_145 = arith.constant 4 : index
      %c0_146 = arith.constant 0 : index
      %186 = vector.load %arg2[%c0_144, %185, %c4_145, %c0_146] : memref<1x22x16x8xbf16, #tpu.memory_space<vmem>>, vector<1x1x10x8xbf16>
      %187 = vector.shape_cast %186 : vector<1x1x10x8xbf16> to vector<10x8xbf16>
      %c18 = arith.constant 18 : index
      %c0_147 = arith.constant 0 : index
      %c0_148 = arith.constant 0 : index
      %188 = vector.load %arg3[%c18, %c0_147, %c0_148] : memref<49x8x16xbf16, #tpu.memory_space<vmem>>, vector<1x8x16xbf16>
      %189 = vector.shape_cast %188 : vector<1x8x16xbf16> to vector<8x16xbf16>
      %cst_149 = arith.constant dense<0.000000e+00> : vector<10x16xf32>
      %190 = tpu.matmul %187, %189, %cst_149 {dimension_numbers = #tpu.dot_dimension_numbers<[1], [0], [0], [1], [0, 0, 1, 1], [], []>} : vector<10x8xbf16>, vector<8x16xbf16>, vector<10x16xf32> -> vector<10x16xf32>
      %191 = arith.addf %182, %190 : vector<10x16xf32>
      %192 = arith.addi %0, %arg7 : i32
      %c2_i32_150 = arith.constant 2 : i32
      %193 = arith.addi %192, %c2_i32_150 : i32
      %c0_151 = arith.constant 0 : index
      %194 = arith.index_cast %193 : i32 to index
      %c5_152 = arith.constant 5 : index
      %c0_153 = arith.constant 0 : index
      %195 = vector.load %arg2[%c0_151, %194, %c5_152, %c0_153] : memref<1x22x16x8xbf16, #tpu.memory_space<vmem>>, vector<1x1x10x8xbf16>
      %196 = vector.shape_cast %195 : vector<1x1x10x8xbf16> to vector<10x8xbf16>
      %c19 = arith.constant 19 : index
      %c0_154 = arith.constant 0 : index
      %c0_155 = arith.constant 0 : index
      %197 = vector.load %arg3[%c19, %c0_154, %c0_155] : memref<49x8x16xbf16, #tpu.memory_space<vmem>>, vector<1x8x16xbf16>
      %198 = vector.shape_cast %197 : vector<1x8x16xbf16> to vector<8x16xbf16>
      %cst_156 = arith.constant dense<0.000000e+00> : vector<10x16xf32>
      %199 = tpu.matmul %196, %198, %cst_156 {dimension_numbers = #tpu.dot_dimension_numbers<[1], [0], [0], [1], [0, 0, 1, 1], [], []>} : vector<10x8xbf16>, vector<8x16xbf16>, vector<10x16xf32> -> vector<10x16xf32>
      %200 = arith.addf %191, %199 : vector<10x16xf32>
      %201 = arith.addi %0, %arg7 : i32
      %c2_i32_157 = arith.constant 2 : i32
      %202 = arith.addi %201, %c2_i32_157 : i32
      %c0_158 = arith.constant 0 : index
      %203 = arith.index_cast %202 : i32 to index
      %c6_159 = arith.constant 6 : index
      %c0_160 = arith.constant 0 : index
      %204 = vector.load %arg2[%c0_158, %203, %c6_159, %c0_160] : memref<1x22x16x8xbf16, #tpu.memory_space<vmem>>, vector<1x1x10x8xbf16>
      %205 = vector.shape_cast %204 : vector<1x1x10x8xbf16> to vector<10x8xbf16>
      %c20 = arith.constant 20 : index
      %c0_161 = arith.constant 0 : index
      %c0_162 = arith.constant 0 : index
      %206 = vector.load %arg3[%c20, %c0_161, %c0_162] : memref<49x8x16xbf16, #tpu.memory_space<vmem>>, vector<1x8x16xbf16>
      %207 = vector.shape_cast %206 : vector<1x8x16xbf16> to vector<8x16xbf16>
      %cst_163 = arith.constant dense<0.000000e+00> : vector<10x16xf32>
      %208 = tpu.matmul %205, %207, %cst_163 {dimension_numbers = #tpu.dot_dimension_numbers<[1], [0], [0], [1], [0, 0, 1, 1], [], []>} : vector<10x8xbf16>, vector<8x16xbf16>, vector<10x16xf32> -> vector<10x16xf32>
      %209 = arith.addf %200, %208 : vector<10x16xf32>
      %210 = arith.addi %0, %arg7 : i32
      %c3_i32 = arith.constant 3 : i32
      %211 = arith.addi %210, %c3_i32 : i32
      %c0_164 = arith.constant 0 : index
      %212 = arith.index_cast %211 : i32 to index
      %c0_165 = arith.constant 0 : index
      %c0_166 = arith.constant 0 : index
      %213 = vector.load %arg2[%c0_164, %212, %c0_165, %c0_166] : memref<1x22x16x8xbf16, #tpu.memory_space<vmem>>, vector<1x1x10x8xbf16>
      %214 = vector.shape_cast %213 : vector<1x1x10x8xbf16> to vector<10x8xbf16>
      %c21 = arith.constant 21 : index
      %c0_167 = arith.constant 0 : index
      %c0_168 = arith.constant 0 : index
      %215 = vector.load %arg3[%c21, %c0_167, %c0_168] : memref<49x8x16xbf16, #tpu.memory_space<vmem>>, vector<1x8x16xbf16>
      %216 = vector.shape_cast %215 : vector<1x8x16xbf16> to vector<8x16xbf16>
      %cst_169 = arith.constant dense<0.000000e+00> : vector<10x16xf32>
      %217 = tpu.matmul %214, %216, %cst_169 {dimension_numbers = #tpu.dot_dimension_numbers<[1], [0], [0], [1], [0, 0, 1, 1], [], []>} : vector<10x8xbf16>, vector<8x16xbf16>, vector<10x16xf32> -> vector<10x16xf32>
      %218 = arith.addf %209, %217 : vector<10x16xf32>
      %219 = arith.addi %0, %arg7 : i32
      %c3_i32_170 = arith.constant 3 : i32
      %220 = arith.addi %219, %c3_i32_170 : i32
      %c0_171 = arith.constant 0 : index
      %221 = arith.index_cast %220 : i32 to index
      %c1_172 = arith.constant 1 : index
      %c0_173 = arith.constant 0 : index
      %222 = vector.load %arg2[%c0_171, %221, %c1_172, %c0_173] : memref<1x22x16x8xbf16, #tpu.memory_space<vmem>>, vector<1x1x10x8xbf16>
      %223 = vector.shape_cast %222 : vector<1x1x10x8xbf16> to vector<10x8xbf16>
      %c22 = arith.constant 22 : index
      %c0_174 = arith.constant 0 : index
      %c0_175 = arith.constant 0 : index
      %224 = vector.load %arg3[%c22, %c0_174, %c0_175] : memref<49x8x16xbf16, #tpu.memory_space<vmem>>, vector<1x8x16xbf16>
      %225 = vector.shape_cast %224 : vector<1x8x16xbf16> to vector<8x16xbf16>
      %cst_176 = arith.constant dense<0.000000e+00> : vector<10x16xf32>
      %226 = tpu.matmul %223, %225, %cst_176 {dimension_numbers = #tpu.dot_dimension_numbers<[1], [0], [0], [1], [0, 0, 1, 1], [], []>} : vector<10x8xbf16>, vector<8x16xbf16>, vector<10x16xf32> -> vector<10x16xf32>
      %227 = arith.addf %218, %226 : vector<10x16xf32>
      %228 = arith.addi %0, %arg7 : i32
      %c3_i32_177 = arith.constant 3 : i32
      %229 = arith.addi %228, %c3_i32_177 : i32
      %c0_178 = arith.constant 0 : index
      %230 = arith.index_cast %229 : i32 to index
      %c2_179 = arith.constant 2 : index
      %c0_180 = arith.constant 0 : index
      %231 = vector.load %arg2[%c0_178, %230, %c2_179, %c0_180] : memref<1x22x16x8xbf16, #tpu.memory_space<vmem>>, vector<1x1x10x8xbf16>
      %232 = vector.shape_cast %231 : vector<1x1x10x8xbf16> to vector<10x8xbf16>
      %c23 = arith.constant 23 : index
      %c0_181 = arith.constant 0 : index
      %c0_182 = arith.constant 0 : index
      %233 = vector.load %arg3[%c23, %c0_181, %c0_182] : memref<49x8x16xbf16, #tpu.memory_space<vmem>>, vector<1x8x16xbf16>
      %234 = vector.shape_cast %233 : vector<1x8x16xbf16> to vector<8x16xbf16>
      %cst_183 = arith.constant dense<0.000000e+00> : vector<10x16xf32>
      %235 = tpu.matmul %232, %234, %cst_183 {dimension_numbers = #tpu.dot_dimension_numbers<[1], [0], [0], [1], [0, 0, 1, 1], [], []>} : vector<10x8xbf16>, vector<8x16xbf16>, vector<10x16xf32> -> vector<10x16xf32>
      %236 = arith.addf %227, %235 : vector<10x16xf32>
      %237 = arith.addi %0, %arg7 : i32
      %c3_i32_184 = arith.constant 3 : i32
      %238 = arith.addi %237, %c3_i32_184 : i32
      %c0_185 = arith.constant 0 : index
      %239 = arith.index_cast %238 : i32 to index
      %c3_186 = arith.constant 3 : index
      %c0_187 = arith.constant 0 : index
      %240 = vector.load %arg2[%c0_185, %239, %c3_186, %c0_187] : memref<1x22x16x8xbf16, #tpu.memory_space<vmem>>, vector<1x1x10x8xbf16>
      %241 = vector.shape_cast %240 : vector<1x1x10x8xbf16> to vector<10x8xbf16>
      %c24 = arith.constant 24 : index
      %c0_188 = arith.constant 0 : index
      %c0_189 = arith.constant 0 : index
      %242 = vector.load %arg3[%c24, %c0_188, %c0_189] : memref<49x8x16xbf16, #tpu.memory_space<vmem>>, vector<1x8x16xbf16>
      %243 = vector.shape_cast %242 : vector<1x8x16xbf16> to vector<8x16xbf16>
      %cst_190 = arith.constant dense<0.000000e+00> : vector<10x16xf32>
      %244 = tpu.matmul %241, %243, %cst_190 {dimension_numbers = #tpu.dot_dimension_numbers<[1], [0], [0], [1], [0, 0, 1, 1], [], []>} : vector<10x8xbf16>, vector<8x16xbf16>, vector<10x16xf32> -> vector<10x16xf32>
      %245 = arith.addf %236, %244 : vector<10x16xf32>
      %246 = arith.addi %0, %arg7 : i32
      %c3_i32_191 = arith.constant 3 : i32
      %247 = arith.addi %246, %c3_i32_191 : i32
      %c0_192 = arith.constant 0 : index
      %248 = arith.index_cast %247 : i32 to index
      %c4_193 = arith.constant 4 : index
      %c0_194 = arith.constant 0 : index
      %249 = vector.load %arg2[%c0_192, %248, %c4_193, %c0_194] : memref<1x22x16x8xbf16, #tpu.memory_space<vmem>>, vector<1x1x10x8xbf16>
      %250 = vector.shape_cast %249 : vector<1x1x10x8xbf16> to vector<10x8xbf16>
      %c25 = arith.constant 25 : index
      %c0_195 = arith.constant 0 : index
      %c0_196 = arith.constant 0 : index
      %251 = vector.load %arg3[%c25, %c0_195, %c0_196] : memref<49x8x16xbf16, #tpu.memory_space<vmem>>, vector<1x8x16xbf16>
      %252 = vector.shape_cast %251 : vector<1x8x16xbf16> to vector<8x16xbf16>
      %cst_197 = arith.constant dense<0.000000e+00> : vector<10x16xf32>
      %253 = tpu.matmul %250, %252, %cst_197 {dimension_numbers = #tpu.dot_dimension_numbers<[1], [0], [0], [1], [0, 0, 1, 1], [], []>} : vector<10x8xbf16>, vector<8x16xbf16>, vector<10x16xf32> -> vector<10x16xf32>
      %254 = arith.addf %245, %253 : vector<10x16xf32>
      %255 = arith.addi %0, %arg7 : i32
      %c3_i32_198 = arith.constant 3 : i32
      %256 = arith.addi %255, %c3_i32_198 : i32
      %c0_199 = arith.constant 0 : index
      %257 = arith.index_cast %256 : i32 to index
      %c5_200 = arith.constant 5 : index
      %c0_201 = arith.constant 0 : index
      %258 = vector.load %arg2[%c0_199, %257, %c5_200, %c0_201] : memref<1x22x16x8xbf16, #tpu.memory_space<vmem>>, vector<1x1x10x8xbf16>
      %259 = vector.shape_cast %258 : vector<1x1x10x8xbf16> to vector<10x8xbf16>
      %c26 = arith.constant 26 : index
      %c0_202 = arith.constant 0 : index
      %c0_203 = arith.constant 0 : index
      %260 = vector.load %arg3[%c26, %c0_202, %c0_203] : memref<49x8x16xbf16, #tpu.memory_space<vmem>>, vector<1x8x16xbf16>
      %261 = vector.shape_cast %260 : vector<1x8x16xbf16> to vector<8x16xbf16>
      %cst_204 = arith.constant dense<0.000000e+00> : vector<10x16xf32>
      %262 = tpu.matmul %259, %261, %cst_204 {dimension_numbers = #tpu.dot_dimension_numbers<[1], [0], [0], [1], [0, 0, 1, 1], [], []>} : vector<10x8xbf16>, vector<8x16xbf16>, vector<10x16xf32> -> vector<10x16xf32>
      %263 = arith.addf %254, %262 : vector<10x16xf32>
      %264 = arith.addi %0, %arg7 : i32
      %c3_i32_205 = arith.constant 3 : i32
      %265 = arith.addi %264, %c3_i32_205 : i32
      %c0_206 = arith.constant 0 : index
      %266 = arith.index_cast %265 : i32 to index
      %c6_207 = arith.constant 6 : index
      %c0_208 = arith.constant 0 : index
      %267 = vector.load %arg2[%c0_206, %266, %c6_207, %c0_208] : memref<1x22x16x8xbf16, #tpu.memory_space<vmem>>, vector<1x1x10x8xbf16>
      %268 = vector.shape_cast %267 : vector<1x1x10x8xbf16> to vector<10x8xbf16>
      %c27 = arith.constant 27 : index
      %c0_209 = arith.constant 0 : index
      %c0_210 = arith.constant 0 : index
      %269 = vector.load %arg3[%c27, %c0_209, %c0_210] : memref<49x8x16xbf16, #tpu.memory_space<vmem>>, vector<1x8x16xbf16>
      %270 = vector.shape_cast %269 : vector<1x8x16xbf16> to vector<8x16xbf16>
      %cst_211 = arith.constant dense<0.000000e+00> : vector<10x16xf32>
      %271 = tpu.matmul %268, %270, %cst_211 {dimension_numbers = #tpu.dot_dimension_numbers<[1], [0], [0], [1], [0, 0, 1, 1], [], []>} : vector<10x8xbf16>, vector<8x16xbf16>, vector<10x16xf32> -> vector<10x16xf32>
      %272 = arith.addf %263, %271 : vector<10x16xf32>
      %273 = arith.addi %0, %arg7 : i32
      %c4_i32 = arith.constant 4 : i32
      %274 = arith.addi %273, %c4_i32 : i32
      %c0_212 = arith.constant 0 : index
      %275 = arith.index_cast %274 : i32 to index
      %c0_213 = arith.constant 0 : index
      %c0_214 = arith.constant 0 : index
      %276 = vector.load %arg2[%c0_212, %275, %c0_213, %c0_214] : memref<1x22x16x8xbf16, #tpu.memory_space<vmem>>, vector<1x1x10x8xbf16>
      %277 = vector.shape_cast %276 : vector<1x1x10x8xbf16> to vector<10x8xbf16>
      %c28 = arith.constant 28 : index
      %c0_215 = arith.constant 0 : index
      %c0_216 = arith.constant 0 : index
      %278 = vector.load %arg3[%c28, %c0_215, %c0_216] : memref<49x8x16xbf16, #tpu.memory_space<vmem>>, vector<1x8x16xbf16>
      %279 = vector.shape_cast %278 : vector<1x8x16xbf16> to vector<8x16xbf16>
      %cst_217 = arith.constant dense<0.000000e+00> : vector<10x16xf32>
      %280 = tpu.matmul %277, %279, %cst_217 {dimension_numbers = #tpu.dot_dimension_numbers<[1], [0], [0], [1], [0, 0, 1, 1], [], []>} : vector<10x8xbf16>, vector<8x16xbf16>, vector<10x16xf32> -> vector<10x16xf32>
      %281 = arith.addf %272, %280 : vector<10x16xf32>
      %282 = arith.addi %0, %arg7 : i32
      %c4_i32_218 = arith.constant 4 : i32
      %283 = arith.addi %282, %c4_i32_218 : i32
      %c0_219 = arith.constant 0 : index
      %284 = arith.index_cast %283 : i32 to index
      %c1_220 = arith.constant 1 : index
      %c0_221 = arith.constant 0 : index
      %285 = vector.load %arg2[%c0_219, %284, %c1_220, %c0_221] : memref<1x22x16x8xbf16, #tpu.memory_space<vmem>>, vector<1x1x10x8xbf16>
      %286 = vector.shape_cast %285 : vector<1x1x10x8xbf16> to vector<10x8xbf16>
      %c29 = arith.constant 29 : index
      %c0_222 = arith.constant 0 : index
      %c0_223 = arith.constant 0 : index
      %287 = vector.load %arg3[%c29, %c0_222, %c0_223] : memref<49x8x16xbf16, #tpu.memory_space<vmem>>, vector<1x8x16xbf16>
      %288 = vector.shape_cast %287 : vector<1x8x16xbf16> to vector<8x16xbf16>
      %cst_224 = arith.constant dense<0.000000e+00> : vector<10x16xf32>
      %289 = tpu.matmul %286, %288, %cst_224 {dimension_numbers = #tpu.dot_dimension_numbers<[1], [0], [0], [1], [0, 0, 1, 1], [], []>} : vector<10x8xbf16>, vector<8x16xbf16>, vector<10x16xf32> -> vector<10x16xf32>
      %290 = arith.addf %281, %289 : vector<10x16xf32>
      %291 = arith.addi %0, %arg7 : i32
      %c4_i32_225 = arith.constant 4 : i32
      %292 = arith.addi %291, %c4_i32_225 : i32
      %c0_226 = arith.constant 0 : index
      %293 = arith.index_cast %292 : i32 to index
      %c2_227 = arith.constant 2 : index
      %c0_228 = arith.constant 0 : index
      %294 = vector.load %arg2[%c0_226, %293, %c2_227, %c0_228] : memref<1x22x16x8xbf16, #tpu.memory_space<vmem>>, vector<1x1x10x8xbf16>
      %295 = vector.shape_cast %294 : vector<1x1x10x8xbf16> to vector<10x8xbf16>
      %c30 = arith.constant 30 : index
      %c0_229 = arith.constant 0 : index
      %c0_230 = arith.constant 0 : index
      %296 = vector.load %arg3[%c30, %c0_229, %c0_230] : memref<49x8x16xbf16, #tpu.memory_space<vmem>>, vector<1x8x16xbf16>
      %297 = vector.shape_cast %296 : vector<1x8x16xbf16> to vector<8x16xbf16>
      %cst_231 = arith.constant dense<0.000000e+00> : vector<10x16xf32>
      %298 = tpu.matmul %295, %297, %cst_231 {dimension_numbers = #tpu.dot_dimension_numbers<[1], [0], [0], [1], [0, 0, 1, 1], [], []>} : vector<10x8xbf16>, vector<8x16xbf16>, vector<10x16xf32> -> vector<10x16xf32>
      %299 = arith.addf %290, %298 : vector<10x16xf32>
      %300 = arith.addi %0, %arg7 : i32
      %c4_i32_232 = arith.constant 4 : i32
      %301 = arith.addi %300, %c4_i32_232 : i32
      %c0_233 = arith.constant 0 : index
      %302 = arith.index_cast %301 : i32 to index
      %c3_234 = arith.constant 3 : index
      %c0_235 = arith.constant 0 : index
      %303 = vector.load %arg2[%c0_233, %302, %c3_234, %c0_235] : memref<1x22x16x8xbf16, #tpu.memory_space<vmem>>, vector<1x1x10x8xbf16>
      %304 = vector.shape_cast %303 : vector<1x1x10x8xbf16> to vector<10x8xbf16>
      %c31 = arith.constant 31 : index
      %c0_236 = arith.constant 0 : index
      %c0_237 = arith.constant 0 : index
      %305 = vector.load %arg3[%c31, %c0_236, %c0_237] : memref<49x8x16xbf16, #tpu.memory_space<vmem>>, vector<1x8x16xbf16>
      %306 = vector.shape_cast %305 : vector<1x8x16xbf16> to vector<8x16xbf16>
      %cst_238 = arith.constant dense<0.000000e+00> : vector<10x16xf32>
      %307 = tpu.matmul %304, %306, %cst_238 {dimension_numbers = #tpu.dot_dimension_numbers<[1], [0], [0], [1], [0, 0, 1, 1], [], []>} : vector<10x8xbf16>, vector<8x16xbf16>, vector<10x16xf32> -> vector<10x16xf32>
      %308 = arith.addf %299, %307 : vector<10x16xf32>
      %309 = arith.addi %0, %arg7 : i32
      %c4_i32_239 = arith.constant 4 : i32
      %310 = arith.addi %309, %c4_i32_239 : i32
      %c0_240 = arith.constant 0 : index
      %311 = arith.index_cast %310 : i32 to index
      %c4_241 = arith.constant 4 : index
      %c0_242 = arith.constant 0 : index
      %312 = vector.load %arg2[%c0_240, %311, %c4_241, %c0_242] : memref<1x22x16x8xbf16, #tpu.memory_space<vmem>>, vector<1x1x10x8xbf16>
      %313 = vector.shape_cast %312 : vector<1x1x10x8xbf16> to vector<10x8xbf16>
      %c32 = arith.constant 32 : index
      %c0_243 = arith.constant 0 : index
      %c0_244 = arith.constant 0 : index
      %314 = vector.load %arg3[%c32, %c0_243, %c0_244] : memref<49x8x16xbf16, #tpu.memory_space<vmem>>, vector<1x8x16xbf16>
      %315 = vector.shape_cast %314 : vector<1x8x16xbf16> to vector<8x16xbf16>
      %cst_245 = arith.constant dense<0.000000e+00> : vector<10x16xf32>
      %316 = tpu.matmul %313, %315, %cst_245 {dimension_numbers = #tpu.dot_dimension_numbers<[1], [0], [0], [1], [0, 0, 1, 1], [], []>} : vector<10x8xbf16>, vector<8x16xbf16>, vector<10x16xf32> -> vector<10x16xf32>
      %317 = arith.addf %308, %316 : vector<10x16xf32>
      %318 = arith.addi %0, %arg7 : i32
      %c4_i32_246 = arith.constant 4 : i32
      %319 = arith.addi %318, %c4_i32_246 : i32
      %c0_247 = arith.constant 0 : index
      %320 = arith.index_cast %319 : i32 to index
      %c5_248 = arith.constant 5 : index
      %c0_249 = arith.constant 0 : index
      %321 = vector.load %arg2[%c0_247, %320, %c5_248, %c0_249] : memref<1x22x16x8xbf16, #tpu.memory_space<vmem>>, vector<1x1x10x8xbf16>
      %322 = vector.shape_cast %321 : vector<1x1x10x8xbf16> to vector<10x8xbf16>
      %c33 = arith.constant 33 : index
      %c0_250 = arith.constant 0 : index
      %c0_251 = arith.constant 0 : index
      %323 = vector.load %arg3[%c33, %c0_250, %c0_251] : memref<49x8x16xbf16, #tpu.memory_space<vmem>>, vector<1x8x16xbf16>
      %324 = vector.shape_cast %323 : vector<1x8x16xbf16> to vector<8x16xbf16>
      %cst_252 = arith.constant dense<0.000000e+00> : vector<10x16xf32>
      %325 = tpu.matmul %322, %324, %cst_252 {dimension_numbers = #tpu.dot_dimension_numbers<[1], [0], [0], [1], [0, 0, 1, 1], [], []>} : vector<10x8xbf16>, vector<8x16xbf16>, vector<10x16xf32> -> vector<10x16xf32>
      %326 = arith.addf %317, %325 : vector<10x16xf32>
      %327 = arith.addi %0, %arg7 : i32
      %c4_i32_253 = arith.constant 4 : i32
      %328 = arith.addi %327, %c4_i32_253 : i32
      %c0_254 = arith.constant 0 : index
      %329 = arith.index_cast %328 : i32 to index
      %c6_255 = arith.constant 6 : index
      %c0_256 = arith.constant 0 : index
      %330 = vector.load %arg2[%c0_254, %329, %c6_255, %c0_256] : memref<1x22x16x8xbf16, #tpu.memory_space<vmem>>, vector<1x1x10x8xbf16>
      %331 = vector.shape_cast %330 : vector<1x1x10x8xbf16> to vector<10x8xbf16>
      %c34 = arith.constant 34 : index
      %c0_257 = arith.constant 0 : index
      %c0_258 = arith.constant 0 : index
      %332 = vector.load %arg3[%c34, %c0_257, %c0_258] : memref<49x8x16xbf16, #tpu.memory_space<vmem>>, vector<1x8x16xbf16>
      %333 = vector.shape_cast %332 : vector<1x8x16xbf16> to vector<8x16xbf16>
      %cst_259 = arith.constant dense<0.000000e+00> : vector<10x16xf32>
      %334 = tpu.matmul %331, %333, %cst_259 {dimension_numbers = #tpu.dot_dimension_numbers<[1], [0], [0], [1], [0, 0, 1, 1], [], []>} : vector<10x8xbf16>, vector<8x16xbf16>, vector<10x16xf32> -> vector<10x16xf32>
      %335 = arith.addf %326, %334 : vector<10x16xf32>
      %336 = arith.addi %0, %arg7 : i32
      %c5_i32 = arith.constant 5 : i32
      %337 = arith.addi %336, %c5_i32 : i32
      %c0_260 = arith.constant 0 : index
      %338 = arith.index_cast %337 : i32 to index
      %c0_261 = arith.constant 0 : index
      %c0_262 = arith.constant 0 : index
      %339 = vector.load %arg2[%c0_260, %338, %c0_261, %c0_262] : memref<1x22x16x8xbf16, #tpu.memory_space<vmem>>, vector<1x1x10x8xbf16>
      %340 = vector.shape_cast %339 : vector<1x1x10x8xbf16> to vector<10x8xbf16>
      %c35 = arith.constant 35 : index
      %c0_263 = arith.constant 0 : index
      %c0_264 = arith.constant 0 : index
      %341 = vector.load %arg3[%c35, %c0_263, %c0_264] : memref<49x8x16xbf16, #tpu.memory_space<vmem>>, vector<1x8x16xbf16>
      %342 = vector.shape_cast %341 : vector<1x8x16xbf16> to vector<8x16xbf16>
      %cst_265 = arith.constant dense<0.000000e+00> : vector<10x16xf32>
      %343 = tpu.matmul %340, %342, %cst_265 {dimension_numbers = #tpu.dot_dimension_numbers<[1], [0], [0], [1], [0, 0, 1, 1], [], []>} : vector<10x8xbf16>, vector<8x16xbf16>, vector<10x16xf32> -> vector<10x16xf32>
      %344 = arith.addf %335, %343 : vector<10x16xf32>
      %345 = arith.addi %0, %arg7 : i32
      %c5_i32_266 = arith.constant 5 : i32
      %346 = arith.addi %345, %c5_i32_266 : i32
      %c0_267 = arith.constant 0 : index
      %347 = arith.index_cast %346 : i32 to index
      %c1_268 = arith.constant 1 : index
      %c0_269 = arith.constant 0 : index
      %348 = vector.load %arg2[%c0_267, %347, %c1_268, %c0_269] : memref<1x22x16x8xbf16, #tpu.memory_space<vmem>>, vector<1x1x10x8xbf16>
      %349 = vector.shape_cast %348 : vector<1x1x10x8xbf16> to vector<10x8xbf16>
      %c36 = arith.constant 36 : index
      %c0_270 = arith.constant 0 : index
      %c0_271 = arith.constant 0 : index
      %350 = vector.load %arg3[%c36, %c0_270, %c0_271] : memref<49x8x16xbf16, #tpu.memory_space<vmem>>, vector<1x8x16xbf16>
      %351 = vector.shape_cast %350 : vector<1x8x16xbf16> to vector<8x16xbf16>
      %cst_272 = arith.constant dense<0.000000e+00> : vector<10x16xf32>
      %352 = tpu.matmul %349, %351, %cst_272 {dimension_numbers = #tpu.dot_dimension_numbers<[1], [0], [0], [1], [0, 0, 1, 1], [], []>} : vector<10x8xbf16>, vector<8x16xbf16>, vector<10x16xf32> -> vector<10x16xf32>
      %353 = arith.addf %344, %352 : vector<10x16xf32>
      %354 = arith.addi %0, %arg7 : i32
      %c5_i32_273 = arith.constant 5 : i32
      %355 = arith.addi %354, %c5_i32_273 : i32
      %c0_274 = arith.constant 0 : index
      %356 = arith.index_cast %355 : i32 to index
      %c2_275 = arith.constant 2 : index
      %c0_276 = arith.constant 0 : index
      %357 = vector.load %arg2[%c0_274, %356, %c2_275, %c0_276] : memref<1x22x16x8xbf16, #tpu.memory_space<vmem>>, vector<1x1x10x8xbf16>
      %358 = vector.shape_cast %357 : vector<1x1x10x8xbf16> to vector<10x8xbf16>
      %c37 = arith.constant 37 : index
      %c0_277 = arith.constant 0 : index
      %c0_278 = arith.constant 0 : index
      %359 = vector.load %arg3[%c37, %c0_277, %c0_278] : memref<49x8x16xbf16, #tpu.memory_space<vmem>>, vector<1x8x16xbf16>
      %360 = vector.shape_cast %359 : vector<1x8x16xbf16> to vector<8x16xbf16>
      %cst_279 = arith.constant dense<0.000000e+00> : vector<10x16xf32>
      %361 = tpu.matmul %358, %360, %cst_279 {dimension_numbers = #tpu.dot_dimension_numbers<[1], [0], [0], [1], [0, 0, 1, 1], [], []>} : vector<10x8xbf16>, vector<8x16xbf16>, vector<10x16xf32> -> vector<10x16xf32>
      %362 = arith.addf %353, %361 : vector<10x16xf32>
      %363 = arith.addi %0, %arg7 : i32
      %c5_i32_280 = arith.constant 5 : i32
      %364 = arith.addi %363, %c5_i32_280 : i32
      %c0_281 = arith.constant 0 : index
      %365 = arith.index_cast %364 : i32 to index
      %c3_282 = arith.constant 3 : index
      %c0_283 = arith.constant 0 : index
      %366 = vector.load %arg2[%c0_281, %365, %c3_282, %c0_283] : memref<1x22x16x8xbf16, #tpu.memory_space<vmem>>, vector<1x1x10x8xbf16>
      %367 = vector.shape_cast %366 : vector<1x1x10x8xbf16> to vector<10x8xbf16>
      %c38 = arith.constant 38 : index
      %c0_284 = arith.constant 0 : index
      %c0_285 = arith.constant 0 : index
      %368 = vector.load %arg3[%c38, %c0_284, %c0_285] : memref<49x8x16xbf16, #tpu.memory_space<vmem>>, vector<1x8x16xbf16>
      %369 = vector.shape_cast %368 : vector<1x8x16xbf16> to vector<8x16xbf16>
      %cst_286 = arith.constant dense<0.000000e+00> : vector<10x16xf32>
      %370 = tpu.matmul %367, %369, %cst_286 {dimension_numbers = #tpu.dot_dimension_numbers<[1], [0], [0], [1], [0, 0, 1, 1], [], []>} : vector<10x8xbf16>, vector<8x16xbf16>, vector<10x16xf32> -> vector<10x16xf32>
      %371 = arith.addf %362, %370 : vector<10x16xf32>
      %372 = arith.addi %0, %arg7 : i32
      %c5_i32_287 = arith.constant 5 : i32
      %373 = arith.addi %372, %c5_i32_287 : i32
      %c0_288 = arith.constant 0 : index
      %374 = arith.index_cast %373 : i32 to index
      %c4_289 = arith.constant 4 : index
      %c0_290 = arith.constant 0 : index
      %375 = vector.load %arg2[%c0_288, %374, %c4_289, %c0_290] : memref<1x22x16x8xbf16, #tpu.memory_space<vmem>>, vector<1x1x10x8xbf16>
      %376 = vector.shape_cast %375 : vector<1x1x10x8xbf16> to vector<10x8xbf16>
      %c39 = arith.constant 39 : index
      %c0_291 = arith.constant 0 : index
      %c0_292 = arith.constant 0 : index
      %377 = vector.load %arg3[%c39, %c0_291, %c0_292] : memref<49x8x16xbf16, #tpu.memory_space<vmem>>, vector<1x8x16xbf16>
      %378 = vector.shape_cast %377 : vector<1x8x16xbf16> to vector<8x16xbf16>
      %cst_293 = arith.constant dense<0.000000e+00> : vector<10x16xf32>
      %379 = tpu.matmul %376, %378, %cst_293 {dimension_numbers = #tpu.dot_dimension_numbers<[1], [0], [0], [1], [0, 0, 1, 1], [], []>} : vector<10x8xbf16>, vector<8x16xbf16>, vector<10x16xf32> -> vector<10x16xf32>
      %380 = arith.addf %371, %379 : vector<10x16xf32>
      %381 = arith.addi %0, %arg7 : i32
      %c5_i32_294 = arith.constant 5 : i32
      %382 = arith.addi %381, %c5_i32_294 : i32
      %c0_295 = arith.constant 0 : index
      %383 = arith.index_cast %382 : i32 to index
      %c5_296 = arith.constant 5 : index
      %c0_297 = arith.constant 0 : index
      %384 = vector.load %arg2[%c0_295, %383, %c5_296, %c0_297] : memref<1x22x16x8xbf16, #tpu.memory_space<vmem>>, vector<1x1x10x8xbf16>
      %385 = vector.shape_cast %384 : vector<1x1x10x8xbf16> to vector<10x8xbf16>
      %c40 = arith.constant 40 : index
      %c0_298 = arith.constant 0 : index
      %c0_299 = arith.constant 0 : index
      %386 = vector.load %arg3[%c40, %c0_298, %c0_299] : memref<49x8x16xbf16, #tpu.memory_space<vmem>>, vector<1x8x16xbf16>
      %387 = vector.shape_cast %386 : vector<1x8x16xbf16> to vector<8x16xbf16>
      %cst_300 = arith.constant dense<0.000000e+00> : vector<10x16xf32>
      %388 = tpu.matmul %385, %387, %cst_300 {dimension_numbers = #tpu.dot_dimension_numbers<[1], [0], [0], [1], [0, 0, 1, 1], [], []>} : vector<10x8xbf16>, vector<8x16xbf16>, vector<10x16xf32> -> vector<10x16xf32>
      %389 = arith.addf %380, %388 : vector<10x16xf32>
      %390 = arith.addi %0, %arg7 : i32
      %c5_i32_301 = arith.constant 5 : i32
      %391 = arith.addi %390, %c5_i32_301 : i32
      %c0_302 = arith.constant 0 : index
      %392 = arith.index_cast %391 : i32 to index
      %c6_303 = arith.constant 6 : index
      %c0_304 = arith.constant 0 : index
      %393 = vector.load %arg2[%c0_302, %392, %c6_303, %c0_304] : memref<1x22x16x8xbf16, #tpu.memory_space<vmem>>, vector<1x1x10x8xbf16>
      %394 = vector.shape_cast %393 : vector<1x1x10x8xbf16> to vector<10x8xbf16>
      %c41 = arith.constant 41 : index
      %c0_305 = arith.constant 0 : index
      %c0_306 = arith.constant 0 : index
      %395 = vector.load %arg3[%c41, %c0_305, %c0_306] : memref<49x8x16xbf16, #tpu.memory_space<vmem>>, vector<1x8x16xbf16>
      %396 = vector.shape_cast %395 : vector<1x8x16xbf16> to vector<8x16xbf16>
      %cst_307 = arith.constant dense<0.000000e+00> : vector<10x16xf32>
      %397 = tpu.matmul %394, %396, %cst_307 {dimension_numbers = #tpu.dot_dimension_numbers<[1], [0], [0], [1], [0, 0, 1, 1], [], []>} : vector<10x8xbf16>, vector<8x16xbf16>, vector<10x16xf32> -> vector<10x16xf32>
      %398 = arith.addf %389, %397 : vector<10x16xf32>
      %399 = arith.addi %0, %arg7 : i32
      %c6_i32 = arith.constant 6 : i32
      %400 = arith.addi %399, %c6_i32 : i32
      %c0_308 = arith.constant 0 : index
      %401 = arith.index_cast %400 : i32 to index
      %c0_309 = arith.constant 0 : index
      %c0_310 = arith.constant 0 : index
      %402 = vector.load %arg2[%c0_308, %401, %c0_309, %c0_310] : memref<1x22x16x8xbf16, #tpu.memory_space<vmem>>, vector<1x1x10x8xbf16>
      %403 = vector.shape_cast %402 : vector<1x1x10x8xbf16> to vector<10x8xbf16>
      %c42 = arith.constant 42 : index
      %c0_311 = arith.constant 0 : index
      %c0_312 = arith.constant 0 : index
      %404 = vector.load %arg3[%c42, %c0_311, %c0_312] : memref<49x8x16xbf16, #tpu.memory_space<vmem>>, vector<1x8x16xbf16>
      %405 = vector.shape_cast %404 : vector<1x8x16xbf16> to vector<8x16xbf16>
      %cst_313 = arith.constant dense<0.000000e+00> : vector<10x16xf32>
      %406 = tpu.matmul %403, %405, %cst_313 {dimension_numbers = #tpu.dot_dimension_numbers<[1], [0], [0], [1], [0, 0, 1, 1], [], []>} : vector<10x8xbf16>, vector<8x16xbf16>, vector<10x16xf32> -> vector<10x16xf32>
      %407 = arith.addf %398, %406 : vector<10x16xf32>
      %408 = arith.addi %0, %arg7 : i32
      %c6_i32_314 = arith.constant 6 : i32
      %409 = arith.addi %408, %c6_i32_314 : i32
      %c0_315 = arith.constant 0 : index
      %410 = arith.index_cast %409 : i32 to index
      %c1_316 = arith.constant 1 : index
      %c0_317 = arith.constant 0 : index
      %411 = vector.load %arg2[%c0_315, %410, %c1_316, %c0_317] : memref<1x22x16x8xbf16, #tpu.memory_space<vmem>>, vector<1x1x10x8xbf16>
      %412 = vector.shape_cast %411 : vector<1x1x10x8xbf16> to vector<10x8xbf16>
      %c43 = arith.constant 43 : index
      %c0_318 = arith.constant 0 : index
      %c0_319 = arith.constant 0 : index
      %413 = vector.load %arg3[%c43, %c0_318, %c0_319] : memref<49x8x16xbf16, #tpu.memory_space<vmem>>, vector<1x8x16xbf16>
      %414 = vector.shape_cast %413 : vector<1x8x16xbf16> to vector<8x16xbf16>
      %cst_320 = arith.constant dense<0.000000e+00> : vector<10x16xf32>
      %415 = tpu.matmul %412, %414, %cst_320 {dimension_numbers = #tpu.dot_dimension_numbers<[1], [0], [0], [1], [0, 0, 1, 1], [], []>} : vector<10x8xbf16>, vector<8x16xbf16>, vector<10x16xf32> -> vector<10x16xf32>
      %416 = arith.addf %407, %415 : vector<10x16xf32>
      %417 = arith.addi %0, %arg7 : i32
      %c6_i32_321 = arith.constant 6 : i32
      %418 = arith.addi %417, %c6_i32_321 : i32
      %c0_322 = arith.constant 0 : index
      %419 = arith.index_cast %418 : i32 to index
      %c2_323 = arith.constant 2 : index
      %c0_324 = arith.constant 0 : index
      %420 = vector.load %arg2[%c0_322, %419, %c2_323, %c0_324] : memref<1x22x16x8xbf16, #tpu.memory_space<vmem>>, vector<1x1x10x8xbf16>
      %421 = vector.shape_cast %420 : vector<1x1x10x8xbf16> to vector<10x8xbf16>
      %c44 = arith.constant 44 : index
      %c0_325 = arith.constant 0 : index
      %c0_326 = arith.constant 0 : index
      %422 = vector.load %arg3[%c44, %c0_325, %c0_326] : memref<49x8x16xbf16, #tpu.memory_space<vmem>>, vector<1x8x16xbf16>
      %423 = vector.shape_cast %422 : vector<1x8x16xbf16> to vector<8x16xbf16>
      %cst_327 = arith.constant dense<0.000000e+00> : vector<10x16xf32>
      %424 = tpu.matmul %421, %423, %cst_327 {dimension_numbers = #tpu.dot_dimension_numbers<[1], [0], [0], [1], [0, 0, 1, 1], [], []>} : vector<10x8xbf16>, vector<8x16xbf16>, vector<10x16xf32> -> vector<10x16xf32>
      %425 = arith.addf %416, %424 : vector<10x16xf32>
      %426 = arith.addi %0, %arg7 : i32
      %c6_i32_328 = arith.constant 6 : i32
      %427 = arith.addi %426, %c6_i32_328 : i32
      %c0_329 = arith.constant 0 : index
      %428 = arith.index_cast %427 : i32 to index
      %c3_330 = arith.constant 3 : index
      %c0_331 = arith.constant 0 : index
      %429 = vector.load %arg2[%c0_329, %428, %c3_330, %c0_331] : memref<1x22x16x8xbf16, #tpu.memory_space<vmem>>, vector<1x1x10x8xbf16>
      %430 = vector.shape_cast %429 : vector<1x1x10x8xbf16> to vector<10x8xbf16>
      %c45 = arith.constant 45 : index
      %c0_332 = arith.constant 0 : index
      %c0_333 = arith.constant 0 : index
      %431 = vector.load %arg3[%c45, %c0_332, %c0_333] : memref<49x8x16xbf16, #tpu.memory_space<vmem>>, vector<1x8x16xbf16>
      %432 = vector.shape_cast %431 : vector<1x8x16xbf16> to vector<8x16xbf16>
      %cst_334 = arith.constant dense<0.000000e+00> : vector<10x16xf32>
      %433 = tpu.matmul %430, %432, %cst_334 {dimension_numbers = #tpu.dot_dimension_numbers<[1], [0], [0], [1], [0, 0, 1, 1], [], []>} : vector<10x8xbf16>, vector<8x16xbf16>, vector<10x16xf32> -> vector<10x16xf32>
      %434 = arith.addf %425, %433 : vector<10x16xf32>
      %435 = arith.addi %0, %arg7 : i32
      %c6_i32_335 = arith.constant 6 : i32
      %436 = arith.addi %435, %c6_i32_335 : i32
      %c0_336 = arith.constant 0 : index
      %437 = arith.index_cast %436 : i32 to index
      %c4_337 = arith.constant 4 : index
      %c0_338 = arith.constant 0 : index
      %438 = vector.load %arg2[%c0_336, %437, %c4_337, %c0_338] : memref<1x22x16x8xbf16, #tpu.memory_space<vmem>>, vector<1x1x10x8xbf16>
      %439 = vector.shape_cast %438 : vector<1x1x10x8xbf16> to vector<10x8xbf16>
      %c46 = arith.constant 46 : index
      %c0_339 = arith.constant 0 : index
      %c0_340 = arith.constant 0 : index
      %440 = vector.load %arg3[%c46, %c0_339, %c0_340] : memref<49x8x16xbf16, #tpu.memory_space<vmem>>, vector<1x8x16xbf16>
      %441 = vector.shape_cast %440 : vector<1x8x16xbf16> to vector<8x16xbf16>
      %cst_341 = arith.constant dense<0.000000e+00> : vector<10x16xf32>
      %442 = tpu.matmul %439, %441, %cst_341 {dimension_numbers = #tpu.dot_dimension_numbers<[1], [0], [0], [1], [0, 0, 1, 1], [], []>} : vector<10x8xbf16>, vector<8x16xbf16>, vector<10x16xf32> -> vector<10x16xf32>
      %443 = arith.addf %434, %442 : vector<10x16xf32>
      %444 = arith.addi %0, %arg7 : i32
      %c6_i32_342 = arith.constant 6 : i32
      %445 = arith.addi %444, %c6_i32_342 : i32
      %c0_343 = arith.constant 0 : index
      %446 = arith.index_cast %445 : i32 to index
      %c5_344 = arith.constant 5 : index
      %c0_345 = arith.constant 0 : index
      %447 = vector.load %arg2[%c0_343, %446, %c5_344, %c0_345] : memref<1x22x16x8xbf16, #tpu.memory_space<vmem>>, vector<1x1x10x8xbf16>
      %448 = vector.shape_cast %447 : vector<1x1x10x8xbf16> to vector<10x8xbf16>
      %c47 = arith.constant 47 : index
      %c0_346 = arith.constant 0 : index
      %c0_347 = arith.constant 0 : index
      %449 = vector.load %arg3[%c47, %c0_346, %c0_347] : memref<49x8x16xbf16, #tpu.memory_space<vmem>>, vector<1x8x16xbf16>
      %450 = vector.shape_cast %449 : vector<1x8x16xbf16> to vector<8x16xbf16>
      %cst_348 = arith.constant dense<0.000000e+00> : vector<10x16xf32>
      %451 = tpu.matmul %448, %450, %cst_348 {dimension_numbers = #tpu.dot_dimension_numbers<[1], [0], [0], [1], [0, 0, 1, 1], [], []>} : vector<10x8xbf16>, vector<8x16xbf16>, vector<10x16xf32> -> vector<10x16xf32>
      %452 = arith.addf %443, %451 : vector<10x16xf32>
      %453 = arith.addi %0, %arg7 : i32
      %c6_i32_349 = arith.constant 6 : i32
      %454 = arith.addi %453, %c6_i32_349 : i32
      %c0_350 = arith.constant 0 : index
      %455 = arith.index_cast %454 : i32 to index
      %c6_351 = arith.constant 6 : index
      %c0_352 = arith.constant 0 : index
      %456 = vector.load %arg2[%c0_350, %455, %c6_351, %c0_352] : memref<1x22x16x8xbf16, #tpu.memory_space<vmem>>, vector<1x1x10x8xbf16>
      %457 = vector.shape_cast %456 : vector<1x1x10x8xbf16> to vector<10x8xbf16>
      %c48 = arith.constant 48 : index
      %c0_353 = arith.constant 0 : index
      %c0_354 = arith.constant 0 : index
      %458 = vector.load %arg3[%c48, %c0_353, %c0_354] : memref<49x8x16xbf16, #tpu.memory_space<vmem>>, vector<1x8x16xbf16>
      %459 = vector.shape_cast %458 : vector<1x8x16xbf16> to vector<8x16xbf16>
      %cst_355 = arith.constant dense<0.000000e+00> : vector<10x16xf32>
      %460 = tpu.matmul %457, %459, %cst_355 {dimension_numbers = #tpu.dot_dimension_numbers<[1], [0], [0], [1], [0, 0, 1, 1], [], []>} : vector<10x8xbf16>, vector<8x16xbf16>, vector<10x16xf32> -> vector<10x16xf32>
      %461 = arith.addf %452, %460 : vector<10x16xf32>
      %c0_356 = arith.constant 0 : index
      %462 = arith.index_cast %arg7 : i32 to index
      %c0_357 = arith.constant 0 : index
      %c0_358 = arith.constant 0 : index
      %463 = vector.load %arg4[%c0_356, %462, %c0_357, %c0_358] : memref<1x8x10x16xf32, #tpu.memory_space<vmem>>, vector<1x1x10x16xf32>
      %464 = vector.shape_cast %463 : vector<1x1x10x16xf32> to vector<10x16xf32>
      %465 = vector.shape_cast %461 : vector<10x16xf32> to vector<1x1x10x16xf32>
      tpu.vector_store %arg4[%c0_356, %462, %c0_357, %c0_358], %465 {strides = array<i32>} : memref<1x8x10x16xf32, #tpu.memory_space<vmem>>, vector<1x1x10x16xf32>,
      %466 = arith.addi %0, %arg7 : i32
      %c12_i32 = arith.constant 12 : i32
      %467 = arith.cmpi slt, %466, %c12_i32 : i32
      %468 = arith.extui %467 : i1 to i32
      %469 = arith.sitofp %468 : i32 to f32
      %cst_359 = arith.constant dense<0.000000e+00> : vector<16xf32>
      %470 = vector.multi_reduction <add>, %461, %cst_359 [0] : vector<10x16xf32> to vector<16xf32>
      %471 = vector.shape_cast %470 : vector<16xf32> to vector<1x16xf32>
      %472 = vector.broadcast %469 : f32 to vector<1x16xf32>
      %473 = arith.mulf %472, %471 : vector<1x16xf32>
      %474 = arith.addf %arg8, %473 : vector<1x16xf32>
      %475 = arith.mulf %461, %461 : vector<10x16xf32>
      %cst_360 = arith.constant dense<0.000000e+00> : vector<16xf32>
      %476 = vector.multi_reduction <add>, %475, %cst_360 [0] : vector<10x16xf32> to vector<16xf32>
      %477 = vector.shape_cast %476 : vector<16xf32> to vector<1x16xf32>
      %478 = vector.broadcast %469 : f32 to vector<1x16xf32>
      %479 = arith.mulf %478, %477 : vector<1x16xf32>
      %480 = arith.addf %arg9, %479 : vector<1x16xf32>
      scf.yield %474, %480 : vector<1x16xf32>, vector<1x16xf32>
    }
    %c8_i32_4 = arith.constant 8 : i32
    %c0 = arith.constant 0 : index
    %c0_5 = arith.constant 0 : index
    %c0_6 = arith.constant 0 : index
    %8 = vector.load %arg5[%c0, %c0_5, %c0_6] : memref<1x1x16xf32, #tpu.memory_space<vmem>>, vector<1x1x16xf32>
    %9 = vector.shape_cast %8 : vector<1x1x16xf32> to vector<1x16xf32>
    %10 = arith.addf %9, %7#0 : vector<1x16xf32>
    %c0_7 = arith.constant 0 : index
    %c0_8 = arith.constant 0 : index
    %c0_9 = arith.constant 0 : index
    %11 = vector.load %arg5[%c0_7, %c0_8, %c0_9] : memref<1x1x16xf32, #tpu.memory_space<vmem>>, vector<1x1x16xf32>
    %12 = vector.shape_cast %11 : vector<1x1x16xf32> to vector<1x16xf32>
    %13 = vector.shape_cast %10 : vector<1x16xf32> to vector<1x1x16xf32>
    tpu.vector_store %arg5[%c0_7, %c0_8, %c0_9], %13 {strides = array<i32>} : memref<1x1x16xf32, #tpu.memory_space<vmem>>, vector<1x1x16xf32>,
    %c0_10 = arith.constant 0 : index
    %c0_11 = arith.constant 0 : index
    %c0_12 = arith.constant 0 : index
    %14 = vector.load %arg6[%c0_10, %c0_11, %c0_12] : memref<1x1x16xf32, #tpu.memory_space<vmem>>, vector<1x1x16xf32>
    %15 = vector.shape_cast %14 : vector<1x1x16xf32> to vector<1x16xf32>
    %16 = arith.addf %15, %7#1 : vector<1x16xf32>
    %c0_13 = arith.constant 0 : index
    %c0_14 = arith.constant 0 : index
    %c0_15 = arith.constant 0 : index
    %17 = vector.load %arg6[%c0_13, %c0_14, %c0_15] : memref<1x1x16xf32, #tpu.memory_space<vmem>>, vector<1x1x16xf32>
    %18 = vector.shape_cast %17 : vector<1x1x16xf32> to vector<1x16xf32>
    %19 = vector.shape_cast %16 : vector<1x16xf32> to vector<1x1x16xf32>
    tpu.vector_store %arg6[%c0_13, %c0_14, %c0_15], %19 {strides = array<i32>} : memref<1x1x16xf32, #tpu.memory_space<vmem>>, vector<1x1x16xf32>,
    return
  }
  func.func @transform_0(%arg0: i32, %arg1: i32) -> (i32, i32, i32, i32) {
    %c0_i32 = arith.constant 0 : i32
    %c0_i32_0 = arith.constant 0 : i32
    %c0_i32_1 = arith.constant 0 : i32
    %c0_i32_2 = arith.constant 0 : i32
    return %arg0, %c0_i32, %c0_i32_0, %c0_i32_1 : i32, i32, i32, i32
  }
  func.func @transform_1(%arg0: i32, %arg1: i32) -> (i32, i32, i32) {
    %c0_i32 = arith.constant 0 : i32
    %c0_i32_0 = arith.constant 0 : i32
    %c0_i32_1 = arith.constant 0 : i32
    %c0_i32_2 = arith.constant 0 : i32
    return %c0_i32, %c0_i32_0, %c0_i32_1 : i32, i32, i32
  }
  func.func @transform_2(%arg0: i32, %arg1: i32) -> (i32, i32, i32, i32) {
    %c0_i32 = arith.constant 0 : i32
    %c0_i32_0 = arith.constant 0 : i32
    %c0_i32_1 = arith.constant 0 : i32
    return %arg0, %arg1, %c0_i32, %c0_i32_0 : i32, i32, i32, i32
  }
  func.func @transform_3(%arg0: i32, %arg1: i32) -> (i32, i32, i32) {
    %c0_i32 = arith.constant 0 : i32
    %c0_i32_0 = arith.constant 0 : i32
    %c0_i32_1 = arith.constant 0 : i32
    return %arg0, %c0_i32, %c0_i32_0 : i32, i32, i32
  }
  func.func @transform_4(%arg0: i32, %arg1: i32) -> (i32, i32, i32) {
    %c0_i32 = arith.constant 0 : i32
    %c0_i32_0 = arith.constant 0 : i32
    %c0_i32_1 = arith.constant 0 : i32
    return %arg0, %c0_i32, %c0_i32_0 : i32, i32, i32
  }
}

</mosaic_0001>

<llo_original>
// kernel: tpu_custom_call.1
$region0: #{tpu_custom_call.1}
  #allocation0 [shape = 'u32[]', space=smem, size = 0x4, offset = 0x4, fixed_abs, tag = 'smem constant byte address 0x4 - core index']
  #allocation1 [shape = 'u32[144,128]{1,0:T(1,128)}', space=vmem, size = 0x12000, scoped, tag = 'internal scratch']
  %s0 = inlined_call_operand.vmem [shape: bf16[2,22,16,8], index: 0, kind: input, shape index: {}]
  %s1 = inlined_call_operand.vmem [shape: bf16[49,8,16], index: 1, kind: input, shape index: {}]
  %s2 = inlined_call_operand.vmem [shape: f32[2,16,10,16], index: 2, kind: output, shape index: {0}]
  %s3 = inlined_call_operand.hbm [shape: f32[2,1,16], index: 3, kind: output, shape index: {1}]
  %s4 = inlined_call_operand.hbm [shape: f32[2,1,16], index: 4, kind: output, shape index: {2}]
  %5 = xla_tuple %s2, %s3, %s4
  %s6 = sld [smem:[#allocation0]]
  $region68: #{tpu_custom_call.1} parent=0
    _
  %s8 = ssub.s32 1, %s6
  %s9 = scalar_select 0, %s8, %s6
  $region1: #{tpu_custom_call.1} parent=0
    #allocation2 [shape = 'u8[1024]{0}', space=vmem, size = 0x400, scoped, tag = 'output window, operand 1']
    #allocation3 [shape = 's32[2]{0}', space=sflag, size = 0x8, scoped, tag = 'scoped memory for tpu_custom_call.1']
    #allocation4 [shape = 'u8[1024]{0}', space=vmem, size = 0x400, scoped, tag = 'output window, operand 2']
    #allocation5 [shape = 's32[2]{0}', space=sflag, size = 0x8, scoped, tag = 'scoped memory for tpu_custom_call.1']
    %10 = vsyncpa [#allocation3], 0
    %s11 = scalar_lea.sflag [#allocation3], 1
    %12 = vsyncpa %s11, 0
    %13 = vsyncpa [#allocation5], 0
    %s14 = scalar_lea.sflag [#allocation5], 1
    %15 = vsyncpa %s14, 0
    loop: start=0, step=1, limit=6
    $region2: #{tpu_custom_call.1} parent=1 // loop_pre_header
      _
    $region3: #{tpu_custom_call.1} parent=1 // loop_header
      %s17 = sphi 0, %s21
      %p18 = scmp.ge.s32.totalorder %s17, 6
      %s24 = sphi 0, %s36
      %s25 = sphi 0, %s32
      %s26 = sphi 0, %s24
      %s27 = sphi 0, %s25
      %s28 = sphi 0, %s26
      %s29 = sphi 0, %s27
      %s39 = sphi 0, %s41
      %s42 = sphi 0, %s39
      %s43 = sphi 0, %s42
      %s59 = sphi 0, %s43
      %s63 = sphi 0, %s63
      %s65 = sphi 0, %s63
      %s66 = sphi 0, %s65
      %s80 = sphi 0, %s66
      %s88 = sphi 0, %s90
      %s91 = sphi 0, %s88
      %s92 = sphi 0, %s91
      %s108 = sphi 0, %s92
      %s114 = sphi 0, %s116
      %s117 = sphi 0, %s114
      %s118 = sphi 0, %s117
      %s134 = sphi 0, %s118
      %s140 = sphi 0, %s142
      %s143 = sphi 0, %s140
      %s144 = sphi 0, %s143
      %s160 = sphi 0, %s144
    $region4: #{tpu_custom_call.1} parent=1 // loop_header_branch
      %20 = sbr.rel (%p18) target = $region8
    $region5: #{tpu_custom_call.1} parent=1 // loop_body
      %s22 = ssub.s32 %s17, 1
      %s23 = ssub.s32 %s17, 2
      %s30 = sadd.s32 1, %s25
      %p31 = scmp.ge.s32.totalorder %s30, 2
      %s32 = scalar_select %p31, 0, %s30
      %s33 = sadd.s32 1, %s24
      %s34 = scalar_select %p31, %s33, %s24
      %p35 = scmp.ge.s32.totalorder %s34, 2
      %s36 = scalar_select %p35, 0, %s34
      %s37 = ssub.s32 %s24, %s36
      %p38 = scmp.eq.s32.totalorder %s37, 0
      %s40 = sadd.s32 %s39, 1
      %s41 = scalar_select %p38, %s39, %s40
      %p44 = pneg %p38
      %p45 = scmp.eq.s32.totalorder %s17, 3
      %p46 = por %p44, %p45
      %p47 = scmp.ne.s32.totalorder %s39, %s42
      %p48 = scmp.eq.s32.totalorder %s17, 0
      %p49 = por %p47, %p48
      %p50 = scmp.ne.s32.totalorder %s39, %s42
      %p51 = scmp.eq.s32.totalorder %s22, 3
      %p52 = por %p50, %p51
      %p53 = scmp.ne.s32.totalorder %s42, %s43
      %p54 = scmp.eq.s32.totalorder %s22, 0
      %p55 = por %p53, %p54
      %p56 = scmp.ne.s32.totalorder %s42, %s43
      %p57 = scmp.eq.s32.totalorder %s23, 3
      %p58 = por %p56, %p57
      %p60 = scmp.ne.s32.totalorder %s43, %s59
      %p61 = scmp.eq.s32.totalorder %s23, 0
      %p62 = por %p60, %p61
      %s64 = sadd.s32 %s63, 1
      %p67 = scmp.eq.s32.totalorder %s17, 3
      %p68 = scmp.ne.s32.totalorder %s63, %s65
      %p69 = scmp.eq.s32.totalorder %s17, 0
      %p70 = por %p68, %p69
      %p71 = scmp.ne.s32.totalorder %s63, %s65
      %p72 = scmp.eq.s32.totalorder %s22, 3
      %p73 = por %p71, %p72
      %p74 = scmp.ne.s32.totalorder %s65, %s66
      %p75 = scmp.eq.s32.totalorder %s22, 0
      %p76 = por %p74, %p75
      %p77 = scmp.ne.s32.totalorder %s65, %s66
      %p78 = scmp.eq.s32.totalorder %s23, 3
      %p79 = por %p77, %p78
      %p81 = scmp.ne.s32.totalorder %s66, %s80
      %p82 = scmp.eq.s32.totalorder %s23, 0
      %p83 = por %p81, %p82
      %s84 = ssub.s32 %s24, %s36
      %s85 = ssub.s32 %s25, %s32
      %s86 = sor.u32 %s84, %s85
      %p87 = scmp.eq.s32.totalorder %s86, 0
      %s89 = sadd.s32 %s88, 1
      %s90 = scalar_select %p87, %s88, %s89
      %p93 = pneg %p87
      %p94 = scmp.eq.s32.totalorder %s17, 3
      %p95 = por %p93, %p94
      %p96 = scmp.ne.s32.totalorder %s88, %s91
      %p97 = scmp.eq.s32.totalorder %s17, 0
      %p98 = por %p96, %p97
      %p99 = scmp.ne.s32.totalorder %s88, %s91
      %p100 = scmp.eq.s32.totalorder %s22, 3
      %p101 = por %p99, %p100
      %p102 = scmp.ne.s32.totalorder %s91, %s92
      %p103 = scmp.eq.s32.totalorder %s22, 0
      %p104 = por %p102, %p103
      %p105 = scmp.ne.s32.totalorder %s91, %s92
      %p106 = scmp.eq.s32.totalorder %s23, 3
      %p107 = por %p105, %p106
      %p109 = scmp.ne.s32.totalorder %s92, %s108
      %p110 = scmp.eq.s32.totalorder %s23, 0
      %p111 = por %p109, %p110
      %s112 = ssub.s32 %s24, %s36
      %p113 = scmp.eq.s32.totalorder %s112, 0
      %s115 = sadd.s32 %s114, 1
      %s116 = scalar_select %p113, %s114, %s115
      %p119 = pneg %p113
      %p120 = scmp.eq.s32.totalorder %s17, 3
      %p121 = por %p119, %p120
      %p122 = scmp.ne.s32.totalorder %s114, %s117
      %p123 = scmp.eq.s32.totalorder %s17, 0
      %p124 = por %p122, %p123
      %p125 = scmp.ne.s32.totalorder %s114, %s117
      %p126 = scmp.eq.s32.totalorder %s22, 3
      %p127 = por %p125, %p126
      %p128 = scmp.ne.s32.totalorder %s117, %s118
      %p129 = scmp.eq.s32.totalorder %s22, 0
      %p130 = por %p128, %p129
      %p131 = scmp.ne.s32.totalorder %s117, %s118
      %p132 = scmp.eq.s32.totalorder %s23, 3
      %p133 = por %p131, %p132
      %p135 = scmp.ne.s32.totalorder %s118, %s134
      %p136 = scmp.eq.s32.totalorder %s23, 0
      %p137 = por %p135, %p136
      %s138 = ssub.s32 %s24, %s36
      %p139 = scmp.eq.s32.totalorder %s138, 0
      %s141 = sadd.s32 %s140, 1
      %s142 = scalar_select %p139, %s140, %s141
      %p145 = pneg %p139
      %p146 = scmp.eq.s32.totalorder %s17, 3
      %p147 = por %p145, %p146
      %p148 = scmp.ne.s32.totalorder %s140, %s143
      %p149 = scmp.eq.s32.totalorder %s17, 0
      %p150 = por %p148, %p149
      %p151 = scmp.ne.s32.totalorder %s140, %s143
      %p152 = scmp.eq.s32.totalorder %s22, 3
      %p153 = por %p151, %p152
      %p154 = scmp.ne.s32.totalorder %s143, %s144
      %p155 = scmp.eq.s32.totalorder %s22, 0
      %p156 = por %p154, %p155
      %p157 = scmp.ne.s32.totalorder %s143, %s144
      %p158 = scmp.eq.s32.totalorder %s23, 3
      %p159 = por %p157, %p158
      %p161 = scmp.ne.s32.totalorder %s144, %s160
      %p162 = scmp.eq.s32.totalorder %s23, 0
      %p163 = por %p161, %p162
      %p164 = scmp.le.s32.totalorder 1, %s17
      %p165 = scmp.lt.s32.totalorder %s17, 5
      %p166 = pnand %p164, %p165
      %p167 = pneg %p166
      // Predicated region
      $region9: #{tpu_custom_call.1} parent=5 // pred_check
        _
      $region10: #{tpu_custom_call.1} parent=5 // pred_check_branch
        %169 = sbr.rel (%p166) target = $region12
      $region11: #{tpu_custom_call.1} parent=5 // pred_region
        %s170 = ssub.s32 %s17, 1
        // Predicated region
        $region13: #{tpu_custom_call.1} parent=11 // pred_check
          %p171 = pneg %p76
        $region14: #{tpu_custom_call.1} parent=11 // pred_check_branch
          %173 = sbr.rel (%p171) target = $region16
        $region15: #{tpu_custom_call.1} parent=11 // pred_region
          _
        $region16: #{tpu_custom_call.1} parent=11 // pred_fallthru
          _
      $region12: #{tpu_custom_call.1} parent=5 // pred_fallthru
        _
      %p174 = scmp.lt.s32.totalorder %s17, 4
      // Predicated region
      $region17: #{tpu_custom_call.1} parent=5 // pred_check
        %p175 = pneg %p174
      $region18: #{tpu_custom_call.1} parent=5 // pred_check_branch
        %177 = sbr.rel (%p175) target = $region20
      $region19: #{tpu_custom_call.1} parent=5 // pred_region
        // Predicated region
        $region21: #{tpu_custom_call.1} parent=19 // pred_check
          %p178 = pneg %p49
        $region22: #{tpu_custom_call.1} parent=19 // pred_check_branch
          %180 = sbr.rel (%p178) target = $region24
        $region23: #{tpu_custom_call.1} parent=19 // pred_region
          %p181 = scmp.lt.s32.totalorder %s24, 1
          %s182 = scalar_select %p181, %s24, 1
          %s183 = smul.addr %s182, 44
          %s184 = smul.addr %s183, 4
          %s185 = scalar_lea.vmem %s0, %s184
        $region24: #{tpu_custom_call.1} parent=19 // pred_fallthru
          _
      $region20: #{tpu_custom_call.1} parent=5 // pred_fallthru
        _
      %p186 = scmp.le.s32.totalorder 1, %s17
      %p187 = scmp.lt.s32.totalorder %s17, 5
      %p188 = pnand %p186, %p187
      %p189 = pneg %p188
      // Predicated region
      $region25: #{tpu_custom_call.1} parent=5 // pred_check
        _
      $region26: #{tpu_custom_call.1} parent=5 // pred_check_branch
        %191 = sbr.rel (%p188) target = $region28
      $region27: #{tpu_custom_call.1} parent=5 // pred_region
        %s192 = ssub.s32 %s17, 1
        %p193 = scmp.lt.s32.totalorder %s26, 1
        %s194 = scalar_select %p193, %s26, 1
        %s195 = smul.addr %s194, 44
        %s196 = smul.addr %s195, 4
        %s197 = scalar_lea.vmem %s0, %s196
        %p198 = pneg %p55
        %p199 = pneg %p52
        %p200 = pneg %p76
        %p201 = pneg %p73
        %p202 = pneg %p104
        %p203 = pneg %p101
        %s204 = smul.u32 8, %s27
        %p205 = scmp.lt.s32.totalorder %s26, 1
        %s206 = scalar_select %p205, %s26, 1
        %p207 = scmp.lt.s32.totalorder %s204, 15
        %s208 = scalar_select %p207, %s204, 15
        %s209 = smul.addr %s208, 2
        %s210 = smul.addr %s206, 32
        %s211 = sadd.s32 %s209, %s210
        %s212 = smul.addr %s211, 8
        %s213 = scalar_lea.vmem %s2, %s212
        %p214 = pneg %p130
        %p215 = pneg %p127
        %s216 = sand.u32 %s117, 1
        %s217 = scalar_lea.sflag [#allocation3], %s216
        %s218 = sand.u32 %s117, 1
        %s219 = scalar_lea.vmem [#allocation2], %s218
        %p220 = pneg %p156
        %p221 = pneg %p153
        %s222 = sand.u32 %s143, 1
        %s223 = scalar_lea.sflag [#allocation5], %s222
        %s224 = sand.u32 %s143, 1
        %s225 = scalar_lea.vmem [#allocation4], %s224
        %p226 = scmp.lt.s32.totalorder %s26, 1
        %s227 = scalar_select %p226, %s26, 1
        %s228 = smul.addr %s227, 44
        %s229 = smul.addr %s228, 4
        %s230 = scalar_lea.vmem %s0, %s229
        %s231 = smul.u32 8, %s27
        %p232 = scmp.lt.s32.totalorder %s26, 1
        %s233 = scalar_select %p232, %s26, 1
        %p234 = scmp.lt.s32.totalorder %s231, 15
        %s235 = scalar_select %p234, %s231, 15
        %s236 = smul.addr %s235, 2
        %s237 = smul.addr %s233, 32
        %s238 = sadd.s32 %s236, %s237
        %s239 = smul.addr %s238, 8
        %s240 = scalar_lea.vmem %s2, %s239
        %s241 = smul.u32 8, %s27
        %s243 = smul.u32 %s27, 8
        %p244 = scmp.eq.s32.totalorder %s27, 0
        // Predicated region
        $region29: #{tpu_custom_call.1} parent=27 // pred_check
          %p245 = pneg %p244
        $region30: #{tpu_custom_call.1} parent=27 // pred_check_branch
          %247 = sbr.rel (%p245) target = $region32
        $region31: #{tpu_custom_call.1} parent=27 // pred_region
          %vm248 = vcmask 122880
          %249 = vst.msk [vmem:[%s219] sm:$0x1] %vm248, 0.0
          %250 = vst.msk [vmem:[%s225] sm:$0x1] %vm248, 0.0
        $region32: #{tpu_custom_call.1} parent=27 // pred_fallthru
          _
        loop: start=0, step=1, limit=8
        $region33: #{tpu_custom_call.1} parent=27 // loop_pre_header
          _
        $region34: #{tpu_custom_call.1} parent=27 // loop_header
          %s252 = sphi 0, %s256
          %p253 = scmp.ge.s32.totalorder %s252, 8
          %v257 = vphi 0.0, %v3202
          %v258 = vphi 0.0, %v3215
        $region35: #{tpu_custom_call.1} parent=27 // loop_header_branch
          %255 = sbr.rel (%p253) target = $region39
        $region36: #{tpu_custom_call.1} parent=27 // loop_body
          %s259 = sadd.s32 %s243, %s252
          %s260 = smul.u32 %s259, 2
          %s261 = smul.addr %s260, 4
          %s262 = scalar_lea.vmem %s230, %s261
          %v263 = vld [vmem:[%s262] sm:$0xf]
          %v264 = vld [vmem:[%s262 + $0x4] sm:$0x1]
          %v265 = vld [vmem:[%s1] sm:$0xf]
          %v266 = vld [vmem:[%s262 + $0x4] sm:$0x3]
          %s267 = scalar_lea.vmem %s1, 4
          %v268 = vld [vmem:[%s267] sm:$0xf]
          %v271 = vunpack.c.l.b16 %v263
          %v272 = vunpack.c.l.b16 %v266
          %v273 = vpack.c.b16 %v272, %v271
          %v275 = vshrl.u32 %v273, 16
          %v277 = vshll.u32 %v273, 16
          %v279 = vrot.slane %v277, 1
          %v280 = vor.u32 %v275, %v279
          %vm281 = vcmask 64512
          %v283 = vsel %vm281, %v280, 0
          %vm285 = vcmask 1043456
          %v287 = vsel %vm285, %v268, 0
          %289 = vmatprep.subr.bf16.mxu0 0
          %290 = vmatpush1.bf16.msra.mxu0 %v287
          %291 = vmatprep.subr.bf16.mxu0 0
          %292 = vmatpush1.bf16.msra.mxu0 0
          %293 = vmatprep.subr.bf16.mxu0 0
          %294 = vmatpush1.bf16.msra.mxu0 0
          %295 = vmatprep.subr.bf16.mxu0 0
          %296 = vmatpush1.bf16.msra.mxu0 0
          %297 = vmatprep.subr.bf16.mxu0 0
          %298 = vmatpush1.bf16.msra.mxu0 0
          %299 = vmatprep.subr.bf16.mxu0 0
          %300 = vmatpush1.bf16.msra.mxu0 0
          %301 = vmatprep.subr.bf16.mxu0 0
          %302 = vmatpush1.bf16.msra.mxu0 0
          %303 = vmatprep.subr.bf16.mxu0 0
          %304 = vmatpush1.bf16.msra.mxu0 0
          %305 = vmatprep.subr.bf16.mxu0 0
          %306 = vmatpush1.bf16.msra.mxu0 0
          %307 = vmatprep.subr.bf16.mxu0 0
          %308 = vmatpush1.bf16.msra.mxu0 0
          %309 = vmatprep.subr.bf16.mxu0 0
          %310 = vmatpush1.bf16.msra.mxu0 0
          %311 = vmatprep.subr.bf16.mxu0 0
          %312 = vmatpush1.bf16.msra.mxu0 0
          %313 = vmatprep.subr.bf16.mxu0 0
          %314 = vmatpush1.bf16.msra.mxu0 0
          %315 = vmatprep.subr.bf16.mxu0 0
          %316 = vmatpush1.bf16.msra.mxu0 0
          %317 = vmatprep.subr.bf16.mxu0 0
          %318 = vmatpush1.bf16.msra.mxu0 0
          %319 = vmatprep.subr.bf16.mxu0 0
          %320 = vmatpush1.bf16.msra.mxu0 0
          %321 = vmatprep.mubr.bf16.mxu0 0
          %322 = vmatmul.mubr.bf16.gmra.mrb[0].mxu0 %v283
          %v323 = vpop.f32.mrb[0].mxu0
          %v324 = vadd.f32 0.0, %v323
          %v325 = vpop.f32.mrb[0].mxu0
          %v326 = vpop.f32.mrb[0].mxu0
          %v327 = vadd.f32 0.0, %v326
          %v328 = vpop.f32.mrb[0].mxu0
          %329 = vdwg.mxu0
          %v331 = vunpack.c.l.b16 %v264
          %v332 = vpack.c.b16 %v331, %v271
          %v334 = vsel %vm281, %v332, 0
          %v337 = vsel %vm285, %v265, 0
          %339 = vmatprep.subr.bf16.mxu0 0
          %340 = vmatpush1.bf16.msra.mxu0 %v337
          %341 = vmatprep.subr.bf16.mxu0 0
          %342 = vmatpush1.bf16.msra.mxu0 0
          %343 = vmatprep.subr.bf16.mxu0 0
          %344 = vmatpush1.bf16.msra.mxu0 0
          %345 = vmatprep.subr.bf16.mxu0 0
          %346 = vmatpush1.bf16.msra.mxu0 0
          %347 = vmatprep.subr.bf16.mxu0 0
          %348 = vmatpush1.bf16.msra.mxu0 0
          %349 = vmatprep.subr.bf16.mxu0 0
          %350 = vmatpush1.bf16.msra.mxu0 0
          %351 = vmatprep.subr.bf16.mxu0 0
          %352 = vmatpush1.bf16.msra.mxu0 0
          %353 = vmatprep.subr.bf16.mxu0 0
          %354 = vmatpush1.bf16.msra.mxu0 0
          %355 = vmatprep.subr.bf16.mxu0 0
          %356 = vmatpush1.bf16.msra.mxu0 0
          %357 = vmatprep.subr.bf16.mxu0 0
          %358 = vmatpush1.bf16.msra.mxu0 0
          %359 = vmatprep.subr.bf16.mxu0 0
          %360 = vmatpush1.bf16.msra.mxu0 0
          %361 = vmatprep.subr.bf16.mxu0 0
          %362 = vmatpush1.bf16.msra.mxu0 0
          %363 = vmatprep.subr.bf16.mxu0 0
          %364 = vmatpush1.bf16.msra.mxu0 0
          %365 = vmatprep.subr.bf16.mxu0 0
          %366 = vmatpush1.bf16.msra.mxu0 0
          %367 = vmatprep.subr.bf16.mxu0 0
          %368 = vmatpush1.bf16.msra.mxu0 0
          %369 = vmatprep.subr.bf16.mxu0 0
          %370 = vmatpush1.bf16.msra.mxu0 0
          %371 = vmatprep.mubr.bf16.mxu0 0
          %372 = vmatmul.mubr.bf16.gmra.mrb[0].mxu0 %v334
          %v373 = vpop.f32.mrb[0].mxu0
          %v374 = vadd.f32 %v324, %v373
          %v375 = vpop.f32.mrb[0].mxu0
          %v376 = vpop.f32.mrb[0].mxu0
          %v377 = vadd.f32 %v327, %v376
          %v378 = vpop.f32.mrb[0].mxu0
          %379 = vdwg.mxu0
          %v380 = vld [vmem:[%s262] sm:$0xe]
          %s381 = scalar_lea.vmem %s1, 8
          %v382 = vld [vmem:[%s381] sm:$0xf]
          %v384 = vunpack.c.l.b16 %v380
          %v385 = vpack.c.b16 %v272, %v384
          %v386 = vrot.slane %v385, 1
          %v388 = vsel %vm281, %v386, 0
          %v391 = vsel %vm285, %v382, 0
          %393 = vmatprep.subr.bf16.mxu0 0
          %394 = vmatpush1.bf16.msra.mxu0 %v391
          %395 = vmatprep.subr.bf16.mxu0 0
          %396 = vmatpush1.bf16.msra.mxu0 0
          %397 = vmatprep.subr.bf16.mxu0 0
          %398 = vmatpush1.bf16.msra.mxu0 0
          %399 = vmatprep.subr.bf16.mxu0 0
          %400 = vmatpush1.bf16.msra.mxu0 0
          %401 = vmatprep.subr.bf16.mxu0 0
          %402 = vmatpush1.bf16.msra.mxu0 0
          %403 = vmatprep.subr.bf16.mxu0 0
          %404 = vmatpush1.bf16.msra.mxu0 0
          %405 = vmatprep.subr.bf16.mxu0 0
          %406 = vmatpush1.bf16.msra.mxu0 0
          %407 = vmatprep.subr.bf16.mxu0 0
          %408 = vmatpush1.bf16.msra.mxu0 0
          %409 = vmatprep.subr.bf16.mxu0 0
          %410 = vmatpush1.bf16.msra.mxu0 0
          %411 = vmatprep.subr.bf16.mxu0 0
          %412 = vmatpush1.bf16.msra.mxu0 0
          %413 = vmatprep.subr.bf16.mxu0 0
          %414 = vmatpush1.bf16.msra.mxu0 0
          %415 = vmatprep.subr.bf16.mxu0 0
          %416 = vmatpush1.bf16.msra.mxu0 0
          %417 = vmatprep.subr.bf16.mxu0 0
          %418 = vmatpush1.bf16.msra.mxu0 0
          %419 = vmatprep.subr.bf16.mxu0 0
          %420 = vmatpush1.bf16.msra.mxu0 0
          %421 = vmatprep.subr.bf16.mxu0 0
          %422 = vmatpush1.bf16.msra.mxu0 0
          %423 = vmatprep.subr.bf16.mxu0 0
          %424 = vmatpush1.bf16.msra.mxu0 0
          %425 = vmatprep.mubr.bf16.mxu0 0
          %426 = vmatmul.mubr.bf16.gmra.mrb[0].mxu0 %v388
          %v427 = vpop.f32.mrb[0].mxu0
          %v428 = vadd.f32 0.0, %v427
          %v429 = vpop.f32.mrb[0].mxu0
          %v430 = vpop.f32.mrb[0].mxu0
          %v431 = vadd.f32 0.0, %v430
          %v432 = vpop.f32.mrb[0].mxu0
          %433 = vdwg.mxu0
          %v434 = vadd.f32 %v374, %v428
          %v435 = vadd.f32 %v377, %v431
          %v436 = vld [vmem:[%s262 + $0x4] sm:$0x7]
          %s437 = scalar_lea.vmem %s1, 12
          %v438 = vld [vmem:[%s437] sm:$0xf]
          %v440 = vunpack.c.l.b16 %v436
          %v441 = vpack.c.b16 %v440, %v384
          %v443 = vshrl.u32 %v441, 16
          %v445 = vrot.slane %v443, 1
          %v446 = vshll.u32 %v441, 16
          %v448 = vrot.slane %v446, 2
          %v449 = vor.u32 %v445, %v448
          %v451 = vsel %vm281, %v449, 0
          %v454 = vsel %vm285, %v438, 0
          %456 = vmatprep.subr.bf16.mxu0 0
          %457 = vmatpush1.bf16.msra.mxu0 %v454
          %458 = vmatprep.subr.bf16.mxu0 0
          %459 = vmatpush1.bf16.msra.mxu0 0
          %460 = vmatprep.subr.bf16.mxu0 0
          %461 = vmatpush1.bf16.msra.mxu0 0
          %462 = vmatprep.subr.bf16.mxu0 0
          %463 = vmatpush1.bf16.msra.mxu0 0
          %464 = vmatprep.subr.bf16.mxu0 0
          %465 = vmatpush1.bf16.msra.mxu0 0
          %466 = vmatprep.subr.bf16.mxu0 0
          %467 = vmatpush1.bf16.msra.mxu0 0
          %468 = vmatprep.subr.bf16.mxu0 0
          %469 = vmatpush1.bf16.msra.mxu0 0
          %470 = vmatprep.subr.bf16.mxu0 0
          %471 = vmatpush1.bf16.msra.mxu0 0
          %472 = vmatprep.subr.bf16.mxu0 0
          %473 = vmatpush1.bf16.msra.mxu0 0
          %474 = vmatprep.subr.bf16.mxu0 0
          %475 = vmatpush1.bf16.msra.mxu0 0
          %476 = vmatprep.subr.bf16.mxu0 0
          %477 = vmatpush1.bf16.msra.mxu0 0
          %478 = vmatprep.subr.bf16.mxu0 0
          %479 = vmatpush1.bf16.msra.mxu0 0
          %480 = vmatprep.subr.bf16.mxu0 0
          %481 = vmatpush1.bf16.msra.mxu0 0
          %482 = vmatprep.subr.bf16.mxu0 0
          %483 = vmatpush1.bf16.msra.mxu0 0
          %484 = vmatprep.subr.bf16.mxu0 0
          %485 = vmatpush1.bf16.msra.mxu0 0
          %486 = vmatprep.subr.bf16.mxu0 0
          %487 = vmatpush1.bf16.msra.mxu0 0
          %488 = vmatprep.mubr.bf16.mxu0 0
          %489 = vmatmul.mubr.bf16.gmra.mrb[0].mxu0 %v451
          %v490 = vpop.f32.mrb[0].mxu0
          %v491 = vadd.f32 0.0, %v490
          %v492 = vpop.f32.mrb[0].mxu0
          %v493 = vpop.f32.mrb[0].mxu0
          %v494 = vadd.f32 0.0, %v493
          %v495 = vpop.f32.mrb[0].mxu0
          %496 = vdwg.mxu0
          %v497 = vadd.f32 %v434, %v491
          %v498 = vadd.f32 %v435, %v494
          %v499 = vld [vmem:[%s262] sm:$0xc]
          %s500 = scalar_lea.vmem %s1, 16
          %v501 = vld [vmem:[%s500] sm:$0xf]
          %v503 = vunpack.c.l.b16 %v499
          %v504 = vpack.c.b16 %v440, %v503
          %v505 = vrot.slane %v504, 2
          %v507 = vsel %vm281, %v505, 0
          %v510 = vsel %vm285, %v501, 0
          %512 = vmatprep.subr.bf16.mxu0 0
          %513 = vmatpush1.bf16.msra.mxu0 %v510
          %514 = vmatprep.subr.bf16.mxu0 0
          %515 = vmatpush1.bf16.msra.mxu0 0
          %516 = vmatprep.subr.bf16.mxu0 0
          %517 = vmatpush1.bf16.msra.mxu0 0
          %518 = vmatprep.subr.bf16.mxu0 0
          %519 = vmatpush1.bf16.msra.mxu0 0
          %520 = vmatprep.subr.bf16.mxu0 0
          %521 = vmatpush1.bf16.msra.mxu0 0
          %522 = vmatprep.subr.bf16.mxu0 0
          %523 = vmatpush1.bf16.msra.mxu0 0
          %524 = vmatprep.subr.bf16.mxu0 0
          %525 = vmatpush1.bf16.msra.mxu0 0
          %526 = vmatprep.subr.bf16.mxu0 0
          %527 = vmatpush1.bf16.msra.mxu0 0
          %528 = vmatprep.subr.bf16.mxu0 0
          %529 = vmatpush1.bf16.msra.mxu0 0
          %530 = vmatprep.subr.bf16.mxu0 0
          %531 = vmatpush1.bf16.msra.mxu0 0
          %532 = vmatprep.subr.bf16.mxu0 0
          %533 = vmatpush1.bf16.msra.mxu0 0
          %534 = vmatprep.subr.bf16.mxu0 0
          %535 = vmatpush1.bf16.msra.mxu0 0
          %536 = vmatprep.subr.bf16.mxu0 0
          %537 = vmatpush1.bf16.msra.mxu0 0
          %538 = vmatprep.subr.bf16.mxu0 0
          %539 = vmatpush1.bf16.msra.mxu0 0
          %540 = vmatprep.subr.bf16.mxu0 0
          %541 = vmatpush1.bf16.msra.mxu0 0
          %542 = vmatprep.subr.bf16.mxu0 0
          %543 = vmatpush1.bf16.msra.mxu0 0
          %544 = vmatprep.mubr.bf16.mxu0 0
          %545 = vmatmul.mubr.bf16.gmra.mrb[0].mxu0 %v507
          %v546 = vpop.f32.mrb[0].mxu0
          %v547 = vadd.f32 0.0, %v546
          %v548 = vpop.f32.mrb[0].mxu0
          %v549 = vpop.f32.mrb[0].mxu0
          %v550 = vadd.f32 0.0, %v549
          %v551 = vpop.f32.mrb[0].mxu0
          %552 = vdwg.mxu0
          %v553 = vadd.f32 %v497, %v547
          %v554 = vadd.f32 %v498, %v550
          %v555 = vld [vmem:[%s262 + $0x4] sm:$0xf]
          %s556 = scalar_lea.vmem %s1, 20
          %v557 = vld [vmem:[%s556] sm:$0xf]
          %v559 = vunpack.c.l.b16 %v555
          %v560 = vpack.c.b16 %v559, %v503
          %v562 = vshrl.u32 %v560, 16
          %v564 = vrot.slane %v562, 2
          %v565 = vshll.u32 %v560, 16
          %v567 = vrot.slane %v565, 3
          %v568 = vor.u32 %v564, %v567
          %v570 = vsel %vm281, %v568, 0
          %v573 = vsel %vm285, %v557, 0
          %575 = vmatprep.subr.bf16.mxu0 0
          %576 = vmatpush1.bf16.msra.mxu0 %v573
          %577 = vmatprep.subr.bf16.mxu0 0
          %578 = vmatpush1.bf16.msra.mxu0 0
          %579 = vmatprep.subr.bf16.mxu0 0
          %580 = vmatpush1.bf16.msra.mxu0 0
          %581 = vmatprep.subr.bf16.mxu0 0
          %582 = vmatpush1.bf16.msra.mxu0 0
          %583 = vmatprep.subr.bf16.mxu0 0
          %584 = vmatpush1.bf16.msra.mxu0 0
          %585 = vmatprep.subr.bf16.mxu0 0
          %586 = vmatpush1.bf16.msra.mxu0 0
          %587 = vmatprep.subr.bf16.mxu0 0
          %588 = vmatpush1.bf16.msra.mxu0 0
          %589 = vmatprep.subr.bf16.mxu0 0
          %590 = vmatpush1.bf16.msra.mxu0 0
          %591 = vmatprep.subr.bf16.mxu0 0
          %592 = vmatpush1.bf16.msra.mxu0 0
          %593 = vmatprep.subr.bf16.mxu0 0
          %594 = vmatpush1.bf16.msra.mxu0 0
          %595 = vmatprep.subr.bf16.mxu0 0
          %596 = vmatpush1.bf16.msra.mxu0 0
          %597 = vmatprep.subr.bf16.mxu0 0
          %598 = vmatpush1.bf16.msra.mxu0 0
          %599 = vmatprep.subr.bf16.mxu0 0
          %600 = vmatpush1.bf16.msra.mxu0 0
          %601 = vmatprep.subr.bf16.mxu0 0
          %602 = vmatpush1.bf16.msra.mxu0 0
          %603 = vmatprep.subr.bf16.mxu0 0
          %604 = vmatpush1.bf16.msra.mxu0 0
          %605 = vmatprep.subr.bf16.mxu0 0
          %606 = vmatpush1.bf16.msra.mxu0 0
          %607 = vmatprep.mubr.bf16.mxu0 0
          %608 = vmatmul.mubr.bf16.gmra.mrb[0].mxu0 %v570
          %v609 = vpop.f32.mrb[0].mxu0
          %v610 = vadd.f32 0.0, %v609
          %v611 = vpop.f32.mrb[0].mxu0
          %v612 = vpop.f32.mrb[0].mxu0
          %v613 = vadd.f32 0.0, %v612
          %v614 = vpop.f32.mrb[0].mxu0
          %615 = vdwg.mxu0
          %v616 = vadd.f32 %v553, %v610
          %v617 = vadd.f32 %v554, %v613
          %v618 = vld [vmem:[%s262] sm:$0x8]
          %s619 = scalar_lea.vmem %s1, 24
          %v620 = vld [vmem:[%s619] sm:$0xf]
          %v622 = vunpack.c.l.b16 %v618
          %v623 = vpack.c.b16 %v559, %v622
          %v624 = vrot.slane %v623, 3
          %v626 = vsel %vm281, %v624, 0
          %v629 = vsel %vm285, %v620, 0
          %631 = vmatprep.subr.bf16.mxu0 0
          %632 = vmatpush1.bf16.msra.mxu0 %v629
          %633 = vmatprep.subr.bf16.mxu0 0
          %634 = vmatpush1.bf16.msra.mxu0 0
          %635 = vmatprep.subr.bf16.mxu0 0
          %636 = vmatpush1.bf16.msra.mxu0 0
          %637 = vmatprep.subr.bf16.mxu0 0
          %638 = vmatpush1.bf16.msra.mxu0 0
          %639 = vmatprep.subr.bf16.mxu0 0
          %640 = vmatpush1.bf16.msra.mxu0 0
          %641 = vmatprep.subr.bf16.mxu0 0
          %642 = vmatpush1.bf16.msra.mxu0 0
          %643 = vmatprep.subr.bf16.mxu0 0
          %644 = vmatpush1.bf16.msra.mxu0 0
          %645 = vmatprep.subr.bf16.mxu0 0
          %646 = vmatpush1.bf16.msra.mxu0 0
          %647 = vmatprep.subr.bf16.mxu0 0
          %648 = vmatpush1.bf16.msra.mxu0 0
          %649 = vmatprep.subr.bf16.mxu0 0
          %650 = vmatpush1.bf16.msra.mxu0 0
          %651 = vmatprep.subr.bf16.mxu0 0
          %652 = vmatpush1.bf16.msra.mxu0 0
          %653 = vmatprep.subr.bf16.mxu0 0
          %654 = vmatpush1.bf16.msra.mxu0 0
          %655 = vmatprep.subr.bf16.mxu0 0
          %656 = vmatpush1.bf16.msra.mxu0 0
          %657 = vmatprep.subr.bf16.mxu0 0
          %658 = vmatpush1.bf16.msra.mxu0 0
          %659 = vmatprep.subr.bf16.mxu0 0
          %660 = vmatpush1.bf16.msra.mxu0 0
          %661 = vmatprep.subr.bf16.mxu0 0
          %662 = vmatpush1.bf16.msra.mxu0 0
          %663 = vmatprep.mubr.bf16.mxu0 0
          %664 = vmatmul.mubr.bf16.gmra.mrb[0].mxu0 %v626
          %v665 = vpop.f32.mrb[0].mxu0
          %v666 = vadd.f32 0.0, %v665
          %v667 = vpop.f32.mrb[0].mxu0
          %v668 = vpop.f32.mrb[0].mxu0
          %v669 = vadd.f32 0.0, %v668
          %v670 = vpop.f32.mrb[0].mxu0
          %671 = vdwg.mxu0
          %v672 = vadd.f32 %v616, %v666
          %v673 = vadd.f32 %v617, %v669
          %s674 = sadd.s32 %s259, 1
          %s675 = smul.u32 %s674, 2
          %s676 = smul.addr %s675, 4
          %s677 = scalar_lea.vmem %s230, %s676
          %v678 = vld [vmem:[%s677] sm:$0xf]
          %v679 = vld [vmem:[%s677 + $0x4] sm:$0x1]
          %s680 = scalar_lea.vmem %s1, 28
          %v681 = vld [vmem:[%s680] sm:$0xf]
          %v684 = vunpack.c.l.b16 %v678
          %v685 = vunpack.c.l.b16 %v679
          %v686 = vpack.c.b16 %v685, %v684
          %v688 = vsel %vm281, %v686, 0
          %v691 = vsel %vm285, %v681, 0
          %693 = vmatprep.subr.bf16.mxu0 0
          %694 = vmatpush1.bf16.msra.mxu0 %v691
          %695 = vmatprep.subr.bf16.mxu0 0
          %696 = vmatpush1.bf16.msra.mxu0 0
          %697 = vmatprep.subr.bf16.mxu0 0
          %698 = vmatpush1.bf16.msra.mxu0 0
          %699 = vmatprep.subr.bf16.mxu0 0
          %700 = vmatpush1.bf16.msra.mxu0 0
          %701 = vmatprep.subr.bf16.mxu0 0
          %702 = vmatpush1.bf16.msra.mxu0 0
          %703 = vmatprep.subr.bf16.mxu0 0
          %704 = vmatpush1.bf16.msra.mxu0 0
          %705 = vmatprep.subr.bf16.mxu0 0
          %706 = vmatpush1.bf16.msra.mxu0 0
          %707 = vmatprep.subr.bf16.mxu0 0
          %708 = vmatpush1.bf16.msra.mxu0 0
          %709 = vmatprep.subr.bf16.mxu0 0
          %710 = vmatpush1.bf16.msra.mxu0 0
          %711 = vmatprep.subr.bf16.mxu0 0
          %712 = vmatpush1.bf16.msra.mxu0 0
          %713 = vmatprep.subr.bf16.mxu0 0
          %714 = vmatpush1.bf16.msra.mxu0 0
          %715 = vmatprep.subr.bf16.mxu0 0
          %716 = vmatpush1.bf16.msra.mxu0 0
          %717 = vmatprep.subr.bf16.mxu0 0
          %718 = vmatpush1.bf16.msra.mxu0 0
          %719 = vmatprep.subr.bf16.mxu0 0
          %720 = vmatpush1.bf16.msra.mxu0 0
          %721 = vmatprep.subr.bf16.mxu0 0
          %722 = vmatpush1.bf16.msra.mxu0 0
          %723 = vmatprep.subr.bf16.mxu0 0
          %724 = vmatpush1.bf16.msra.mxu0 0
          %725 = vmatprep.mubr.bf16.mxu0 0
          %726 = vmatmul.mubr.bf16.gmra.mrb[0].mxu0 %v688
          %v727 = vpop.f32.mrb[0].mxu0
          %v728 = vadd.f32 0.0, %v727
          %v729 = vpop.f32.mrb[0].mxu0
          %v730 = vpop.f32.mrb[0].mxu0
          %v731 = vadd.f32 0.0, %v730
          %v732 = vpop.f32.mrb[0].mxu0
          %733 = vdwg.mxu0
          %v734 = vadd.f32 %v672, %v728
          %v735 = vadd.f32 %v673, %v731
          %v736 = vld [vmem:[%s677 + $0x4] sm:$0x3]
          %s737 = scalar_lea.vmem %s1, 32
          %v738 = vld [vmem:[%s737] sm:$0xf]
          %v740 = vunpack.c.l.b16 %v736
          %v741 = vpack.c.b16 %v740, %v684
          %v743 = vshrl.u32 %v741, 16
          %v745 = vshll.u32 %v741, 16
          %v747 = vrot.slane %v745, 1
          %v748 = vor.u32 %v743, %v747
          %v750 = vsel %vm281, %v748, 0
          %v753 = vsel %vm285, %v738, 0
          %755 = vmatprep.subr.bf16.mxu0 0
          %756 = vmatpush1.bf16.msra.mxu0 %v753
          %757 = vmatprep.subr.bf16.mxu0 0
          %758 = vmatpush1.bf16.msra.mxu0 0
          %759 = vmatprep.subr.bf16.mxu0 0
          %760 = vmatpush1.bf16.msra.mxu0 0
          %761 = vmatprep.subr.bf16.mxu0 0
          %762 = vmatpush1.bf16.msra.mxu0 0
          %763 = vmatprep.subr.bf16.mxu0 0
          %764 = vmatpush1.bf16.msra.mxu0 0
          %765 = vmatprep.subr.bf16.mxu0 0
          %766 = vmatpush1.bf16.msra.mxu0 0
          %767 = vmatprep.subr.bf16.mxu0 0
          %768 = vmatpush1.bf16.msra.mxu0 0
          %769 = vmatprep.subr.bf16.mxu0 0
          %770 = vmatpush1.bf16.msra.mxu0 0
          %771 = vmatprep.subr.bf16.mxu0 0
          %772 = vmatpush1.bf16.msra.mxu0 0
          %773 = vmatprep.subr.bf16.mxu0 0
          %774 = vmatpush1.bf16.msra.mxu0 0
          %775 = vmatprep.subr.bf16.mxu0 0
          %776 = vmatpush1.bf16.msra.mxu0 0
          %777 = vmatprep.subr.bf16.mxu0 0
          %778 = vmatpush1.bf16.msra.mxu0 0
          %779 = vmatprep.subr.bf16.mxu0 0
          %780 = vmatpush1.bf16.msra.mxu0 0
          %781 = vmatprep.subr.bf16.mxu0 0
          %782 = vmatpush1.bf16.msra.mxu0 0
          %783 = vmatprep.subr.bf16.mxu0 0
          %784 = vmatpush1.bf16.msra.mxu0 0
          %785 = vmatprep.subr.bf16.mxu0 0
          %786 = vmatpush1.bf16.msra.mxu0 0
          %787 = vmatprep.mubr.bf16.mxu0 0
          %788 = vmatmul.mubr.bf16.gmra.mrb[0].mxu0 %v750
          %v789 = vpop.f32.mrb[0].mxu0
          %v790 = vadd.f32 0.0, %v789
          %v791 = vpop.f32.mrb[0].mxu0
          %v792 = vpop.f32.mrb[0].mxu0
          %v793 = vadd.f32 0.0, %v792
          %v794 = vpop.f32.mrb[0].mxu0
          %795 = vdwg.mxu0
          %v796 = vadd.f32 %v734, %v790
          %v797 = vadd.f32 %v735, %v793
          %v798 = vld [vmem:[%s677] sm:$0xe]
          %s799 = scalar_lea.vmem %s1, 36
          %v800 = vld [vmem:[%s799] sm:$0xf]
          %v802 = vunpack.c.l.b16 %v798
          %v803 = vpack.c.b16 %v740, %v802
          %v804 = vrot.slane %v803, 1
          %v806 = vsel %vm281, %v804, 0
          %v809 = vsel %vm285, %v800, 0
          %811 = vmatprep.subr.bf16.mxu0 0
          %812 = vmatpush1.bf16.msra.mxu0 %v809
          %813 = vmatprep.subr.bf16.mxu0 0
          %814 = vmatpush1.bf16.msra.mxu0 0
          %815 = vmatprep.subr.bf16.mxu0 0
          %816 = vmatpush1.bf16.msra.mxu0 0
          %817 = vmatprep.subr.bf16.mxu0 0
          %818 = vmatpush1.bf16.msra.mxu0 0
          %819 = vmatprep.subr.bf16.mxu0 0
          %820 = vmatpush1.bf16.msra.mxu0 0
          %821 = vmatprep.subr.bf16.mxu0 0
          %822 = vmatpush1.bf16.msra.mxu0 0
          %823 = vmatprep.subr.bf16.mxu0 0
          %824 = vmatpush1.bf16.msra.mxu0 0
          %825 = vmatprep.subr.bf16.mxu0 0
          %826 = vmatpush1.bf16.msra.mxu0 0
          %827 = vmatprep.subr.bf16.mxu0 0
          %828 = vmatpush1.bf16.msra.mxu0 0
          %829 = vmatprep.subr.bf16.mxu0 0
          %830 = vmatpush1.bf16.msra.mxu0 0
          %831 = vmatprep.subr.bf16.mxu0 0
          %832 = vmatpush1.bf16.msra.mxu0 0
          %833 = vmatprep.subr.bf16.mxu0 0
          %834 = vmatpush1.bf16.msra.mxu0 0
          %835 = vmatprep.subr.bf16.mxu0 0
          %836 = vmatpush1.bf16.msra.mxu0 0
          %837 = vmatprep.subr.bf16.mxu0 0
          %838 = vmatpush1.bf16.msra.mxu0 0
          %839 = vmatprep.subr.bf16.mxu0 0
          %840 = vmatpush1.bf16.msra.mxu0 0
          %841 = vmatprep.subr.bf16.mxu0 0
          %842 = vmatpush1.bf16.msra.mxu0 0
          %843 = vmatprep.mubr.bf16.mxu0 0
          %844 = vmatmul.mubr.bf16.gmra.mrb[0].mxu0 %v806
          %v845 = vpop.f32.mrb[0].mxu0
          %v846 = vadd.f32 0.0, %v845
          %v847 = vpop.f32.mrb[0].mxu0
          %v848 = vpop.f32.mrb[0].mxu0
          %v849 = vadd.f32 0.0, %v848
          %v850 = vpop.f32.mrb[0].mxu0
          %851 = vdwg.mxu0
          %v852 = vadd.f32 %v796, %v846
          %v853 = vadd.f32 %v797, %v849
          %v854 = vld [vmem:[%s677 + $0x4] sm:$0x7]
          %s855 = scalar_lea.vmem %s1, 40
          %v856 = vld [vmem:[%s855] sm:$0xf]
          %v858 = vunpack.c.l.b16 %v854
          %v859 = vpack.c.b16 %v858, %v802
          %v861 = vshrl.u32 %v859, 16
          %v863 = vrot.slane %v861, 1
          %v864 = vshll.u32 %v859, 16
          %v866 = vrot.slane %v864, 2
          %v867 = vor.u32 %v863, %v866
          %v869 = vsel %vm281, %v867, 0
          %v872 = vsel %vm285, %v856, 0
          %874 = vmatprep.subr.bf16.mxu0 0
          %875 = vmatpush1.bf16.msra.mxu0 %v872
          %876 = vmatprep.subr.bf16.mxu0 0
          %877 = vmatpush1.bf16.msra.mxu0 0
          %878 = vmatprep.subr.bf16.mxu0 0
          %879 = vmatpush1.bf16.msra.mxu0 0
          %880 = vmatprep.subr.bf16.mxu0 0
          %881 = vmatpush1.bf16.msra.mxu0 0
          %882 = vmatprep.subr.bf16.mxu0 0
          %883 = vmatpush1.bf16.msra.mxu0 0
          %884 = vmatprep.subr.bf16.mxu0 0
          %885 = vmatpush1.bf16.msra.mxu0 0
          %886 = vmatprep.subr.bf16.mxu0 0
          %887 = vmatpush1.bf16.msra.mxu0 0
          %888 = vmatprep.subr.bf16.mxu0 0
          %889 = vmatpush1.bf16.msra.mxu0 0
          %890 = vmatprep.subr.bf16.mxu0 0
          %891 = vmatpush1.bf16.msra.mxu0 0
          %892 = vmatprep.subr.bf16.mxu0 0
          %893 = vmatpush1.bf16.msra.mxu0 0
          %894 = vmatprep.subr.bf16.mxu0 0
          %895 = vmatpush1.bf16.msra.mxu0 0
          %896 = vmatprep.subr.bf16.mxu0 0
          %897 = vmatpush1.bf16.msra.mxu0 0
          %898 = vmatprep.subr.bf16.mxu0 0
          %899 = vmatpush1.bf16.msra.mxu0 0
          %900 = vmatprep.subr.bf16.mxu0 0
          %901 = vmatpush1.bf16.msra.mxu0 0
          %902 = vmatprep.subr.bf16.mxu0 0
          %903 = vmatpush1.bf16.msra.mxu0 0
          %904 = vmatprep.subr.bf16.mxu0 0
          %905 = vmatpush1.bf16.msra.mxu0 0
          %906 = vmatprep.mubr.bf16.mxu0 0
          %907 = vmatmul.mubr.bf16.gmra.mrb[0].mxu0 %v869
          %v908 = vpop.f32.mrb[0].mxu0
          %v909 = vadd.f32 0.0, %v908
          %v910 = vpop.f32.mrb[0].mxu0
          %v911 = vpop.f32.mrb[0].mxu0
          %v912 = vadd.f32 0.0, %v911
          %v913 = vpop.f32.mrb[0].mxu0
          %914 = vdwg.mxu0
          %v915 = vadd.f32 %v852, %v909
          %v916 = vadd.f32 %v853, %v912
          %v917 = vld [vmem:[%s677] sm:$0xc]
          %s918 = scalar_lea.vmem %s1, 44
          %v919 = vld [vmem:[%s918] sm:$0xf]
          %v921 = vunpack.c.l.b16 %v917
          %v922 = vpack.c.b16 %v858, %v921
          %v923 = vrot.slane %v922, 2
          %v925 = vsel %vm281, %v923, 0
          %v928 = vsel %vm285, %v919, 0
          %930 = vmatprep.subr.bf16.mxu0 0
          %931 = vmatpush1.bf16.msra.mxu0 %v928
          %932 = vmatprep.subr.bf16.mxu0 0
          %933 = vmatpush1.bf16.msra.mxu0 0
          %934 = vmatprep.subr.bf16.mxu0 0
          %935 = vmatpush1.bf16.msra.mxu0 0
          %936 = vmatprep.subr.bf16.mxu0 0
          %937 = vmatpush1.bf16.msra.mxu0 0
          %938 = vmatprep.subr.bf16.mxu0 0
          %939 = vmatpush1.bf16.msra.mxu0 0
          %940 = vmatprep.subr.bf16.mxu0 0
          %941 = vmatpush1.bf16.msra.mxu0 0
          %942 = vmatprep.subr.bf16.mxu0 0
          %943 = vmatpush1.bf16.msra.mxu0 0
          %944 = vmatprep.subr.bf16.mxu0 0
          %945 = vmatpush1.bf16.msra.mxu0 0
          %946 = vmatprep.subr.bf16.mxu0 0
          %947 = vmatpush1.bf16.msra.mxu0 0
          %948 = vmatprep.subr.bf16.mxu0 0
          %949 = vmatpush1.bf16.msra.mxu0 0
          %950 = vmatprep.subr.bf16.mxu0 0
          %951 = vmatpush1.bf16.msra.mxu0 0
          %952 = vmatprep.subr.bf16.mxu0 0
          %953 = vmatpush1.bf16.msra.mxu0 0
          %954 = vmatprep.subr.bf16.mxu0 0
          %955 = vmatpush1.bf16.msra.mxu0 0
          %956 = vmatprep.subr.bf16.mxu0 0
          %957 = vmatpush1.bf16.msra.mxu0 0
          %958 = vmatprep.subr.bf16.mxu0 0
          %959 = vmatpush1.bf16.msra.mxu0 0
          %960 = vmatprep.subr.bf16.mxu0 0
          %961 = vmatpush1.bf16.msra.mxu0 0
          %962 = vmatprep.mubr.bf16.mxu0 0
          %963 = vmatmul.mubr.bf16.gmra.mrb[0].mxu0 %v925
          %v964 = vpop.f32.mrb[0].mxu0
          %v965 = vadd.f32 0.0, %v964
          %v966 = vpop.f32.mrb[0].mxu0
          %v967 = vpop.f32.mrb[0].mxu0
          %v968 = vadd.f32 0.0, %v967
          %v969 = vpop.f32.mrb[0].mxu0
          %970 = vdwg.mxu0
          %v971 = vadd.f32 %v915, %v965
          %v972 = vadd.f32 %v916, %v968
          %v973 = vld [vmem:[%s677 + $0x4] sm:$0xf]
          %s974 = scalar_lea.vmem %s1, 48
          %v975 = vld [vmem:[%s974] sm:$0xf]
          %v977 = vunpack.c.l.b16 %v973
          %v978 = vpack.c.b16 %v977, %v921
          %v980 = vshrl.u32 %v978, 16
          %v982 = vrot.slane %v980, 2
          %v983 = vshll.u32 %v978, 16
          %v985 = vrot.slane %v983, 3
          %v986 = vor.u32 %v982, %v985
          %v988 = vsel %vm281, %v986, 0
          %v991 = vsel %vm285, %v975, 0
          %993 = vmatprep.subr.bf16.mxu0 0
          %994 = vmatpush1.bf16.msra.mxu0 %v991
          %995 = vmatprep.subr.bf16.mxu0 0
          %996 = vmatpush1.bf16.msra.mxu0 0
          %997 = vmatprep.subr.bf16.mxu0 0
          %998 = vmatpush1.bf16.msra.mxu0 0
          %999 = vmatprep.subr.bf16.mxu0 0
          %1000 = vmatpush1.bf16.msra.mxu0 0
          %1001 = vmatprep.subr.bf16.mxu0 0
          %1002 = vmatpush1.bf16.msra.mxu0 0
          %1003 = vmatprep.subr.bf16.mxu0 0
          %1004 = vmatpush1.bf16.msra.mxu0 0
          %1005 = vmatprep.subr.bf16.mxu0 0
          %1006 = vmatpush1.bf16.msra.mxu0 0
          %1007 = vmatprep.subr.bf16.mxu0 0
          %1008 = vmatpush1.bf16.msra.mxu0 0
          %1009 = vmatprep.subr.bf16.mxu0 0
          %1010 = vmatpush1.bf16.msra.mxu0 0
          %1011 = vmatprep.subr.bf16.mxu0 0
          %1012 = vmatpush1.bf16.msra.mxu0 0
          %1013 = vmatprep.subr.bf16.mxu0 0
          %1014 = vmatpush1.bf16.msra.mxu0 0
          %1015 = vmatprep.subr.bf16.mxu0 0
          %1016 = vmatpush1.bf16.msra.mxu0 0
          %1017 = vmatprep.subr.bf16.mxu0 0
          %1018 = vmatpush1.bf16.msra.mxu0 0
          %1019 = vmatprep.subr.bf16.mxu0 0
          %1020 = vmatpush1.bf16.msra.mxu0 0
          %1021 = vmatprep.subr.bf16.mxu0 0
          %1022 = vmatpush1.bf16.msra.mxu0 0
          %1023 = vmatprep.subr.bf16.mxu0 0
          %1024 = vmatpush1.bf16.msra.mxu0 0
          %1025 = vmatprep.mubr.bf16.mxu0 0
          %1026 = vmatmul.mubr.bf16.gmra.mrb[0].mxu0 %v988
          %v1027 = vpop.f32.mrb[0].mxu0
          %v1028 = vadd.f32 0.0, %v1027
          %v1029 = vpop.f32.mrb[0].mxu0
          %v1030 = vpop.f32.mrb[0].mxu0
          %v1031 = vadd.f32 0.0, %v1030
          %v1032 = vpop.f32.mrb[0].mxu0
          %1033 = vdwg.mxu0
          %v1034 = vadd.f32 %v971, %v1028
          %v1035 = vadd.f32 %v972, %v1031
          %v1036 = vld [vmem:[%s677] sm:$0x8]
          %s1037 = scalar_lea.vmem %s1, 52
          %v1038 = vld [vmem:[%s1037] sm:$0xf]
          %v1040 = vunpack.c.l.b16 %v1036
          %v1041 = vpack.c.b16 %v977, %v1040
          %v1042 = vrot.slane %v1041, 3
          %v1044 = vsel %vm281, %v1042, 0
          %v1047 = vsel %vm285, %v1038, 0
          %1049 = vmatprep.subr.bf16.mxu0 0
          %1050 = vmatpush1.bf16.msra.mxu0 %v1047
          %1051 = vmatprep.subr.bf16.mxu0 0
          %1052 = vmatpush1.bf16.msra.mxu0 0
          %1053 = vmatprep.subr.bf16.mxu0 0
          %1054 = vmatpush1.bf16.msra.mxu0 0
          %1055 = vmatprep.subr.bf16.mxu0 0
          %1056 = vmatpush1.bf16.msra.mxu0 0
          %1057 = vmatprep.subr.bf16.mxu0 0
          %1058 = vmatpush1.bf16.msra.mxu0 0
          %1059 = vmatprep.subr.bf16.mxu0 0
          %1060 = vmatpush1.bf16.msra.mxu0 0
          %1061 = vmatprep.subr.bf16.mxu0 0
          %1062 = vmatpush1.bf16.msra.mxu0 0
          %1063 = vmatprep.subr.bf16.mxu0 0
          %1064 = vmatpush1.bf16.msra.mxu0 0
          %1065 = vmatprep.subr.bf16.mxu0 0
          %1066 = vmatpush1.bf16.msra.mxu0 0
          %1067 = vmatprep.subr.bf16.mxu0 0
          %1068 = vmatpush1.bf16.msra.mxu0 0
          %1069 = vmatprep.subr.bf16.mxu0 0
          %1070 = vmatpush1.bf16.msra.mxu0 0
          %1071 = vmatprep.subr.bf16.mxu0 0
          %1072 = vmatpush1.bf16.msra.mxu0 0
          %1073 = vmatprep.subr.bf16.mxu0 0
          %1074 = vmatpush1.bf16.msra.mxu0 0
          %1075 = vmatprep.subr.bf16.mxu0 0
          %1076 = vmatpush1.bf16.msra.mxu0 0
          %1077 = vmatprep.subr.bf16.mxu0 0
          %1078 = vmatpush1.bf16.msra.mxu0 0
          %1079 = vmatprep.subr.bf16.mxu0 0
          %1080 = vmatpush1.bf16.msra.mxu0 0
          %1081 = vmatprep.mubr.bf16.mxu0 0
          %1082 = vmatmul.mubr.bf16.gmra.mrb[0].mxu0 %v1044
          %v1083 = vpop.f32.mrb[0].mxu0
          %v1084 = vadd.f32 0.0, %v1083
          %v1085 = vpop.f32.mrb[0].mxu0
          %v1086 = vpop.f32.mrb[0].mxu0
          %v1087 = vadd.f32 0.0, %v1086
          %v1088 = vpop.f32.mrb[0].mxu0
          %1089 = vdwg.mxu0
          %v1090 = vadd.f32 %v1034, %v1084
          %v1091 = vadd.f32 %v1035, %v1087
          %s1092 = sadd.s32 %s259, 2
          %s1093 = smul.u32 %s1092, 2
          %s1094 = smul.addr %s1093, 4
          %s1095 = scalar_lea.vmem %s230, %s1094
          %v1096 = vld [vmem:[%s1095] sm:$0xf]
          %v1097 = vld [vmem:[%s1095 + $0x4] sm:$0x1]
          %s1098 = scalar_lea.vmem %s1, 56
          %v1099 = vld [vmem:[%s1098] sm:$0xf]
          %v1102 = vunpack.c.l.b16 %v1096
          %v1103 = vunpack.c.l.b16 %v1097
          %v1104 = vpack.c.b16 %v1103, %v1102
          %v1106 = vsel %vm281, %v1104, 0
          %v1109 = vsel %vm285, %v1099, 0
          %1111 = vmatprep.subr.bf16.mxu0 0
          %1112 = vmatpush1.bf16.msra.mxu0 %v1109
          %1113 = vmatprep.subr.bf16.mxu0 0
          %1114 = vmatpush1.bf16.msra.mxu0 0
          %1115 = vmatprep.subr.bf16.mxu0 0
          %1116 = vmatpush1.bf16.msra.mxu0 0
          %1117 = vmatprep.subr.bf16.mxu0 0
          %1118 = vmatpush1.bf16.msra.mxu0 0
          %1119 = vmatprep.subr.bf16.mxu0 0
          %1120 = vmatpush1.bf16.msra.mxu0 0
          %1121 = vmatprep.subr.bf16.mxu0 0
          %1122 = vmatpush1.bf16.msra.mxu0 0
          %1123 = vmatprep.subr.bf16.mxu0 0
          %1124 = vmatpush1.bf16.msra.mxu0 0
          %1125 = vmatprep.subr.bf16.mxu0 0
          %1126 = vmatpush1.bf16.msra.mxu0 0
          %1127 = vmatprep.subr.bf16.mxu0 0
          %1128 = vmatpush1.bf16.msra.mxu0 0
          %1129 = vmatprep.subr.bf16.mxu0 0
          %1130 = vmatpush1.bf16.msra.mxu0 0
          %1131 = vmatprep.subr.bf16.mxu0 0
          %1132 = vmatpush1.bf16.msra.mxu0 0
          %1133 = vmatprep.subr.bf16.mxu0 0
          %1134 = vmatpush1.bf16.msra.mxu0 0
          %1135 = vmatprep.subr.bf16.mxu0 0
          %1136 = vmatpush1.bf16.msra.mxu0 0
          %1137 = vmatprep.subr.bf16.mxu0 0
          %1138 = vmatpush1.bf16.msra.mxu0 0
          %1139 = vmatprep.subr.bf16.mxu0 0
          %1140 = vmatpush1.bf16.msra.mxu0 0
          %1141 = vmatprep.subr.bf16.mxu0 0
          %1142 = vmatpush1.bf16.msra.mxu0 0
          %1143 = vmatprep.mubr.bf16.mxu0 0
          %1144 = vmatmul.mubr.bf16.gmra.mrb[0].mxu0 %v1106
          %v1145 = vpop.f32.mrb[0].mxu0
          %v1146 = vadd.f32 0.0, %v1145
          %v1147 = vpop.f32.mrb[0].mxu0
          %v1148 = vpop.f32.mrb[0].mxu0
          %v1149 = vadd.f32 0.0, %v1148
          %v1150 = vpop.f32.mrb[0].mxu0
          %1151 = vdwg.mxu0
          %v1152 = vadd.f32 %v1090, %v1146
          %v1153 = vadd.f32 %v1091, %v1149
          %v1154 = vld [vmem:[%s1095 + $0x4] sm:$0x3]
          %s1155 = scalar_lea.vmem %s1, 60
          %v1156 = vld [vmem:[%s1155] sm:$0xf]
          %v1158 = vunpack.c.l.b16 %v1154
          %v1159 = vpack.c.b16 %v1158, %v1102
          %v1161 = vshrl.u32 %v1159, 16
          %v1163 = vshll.u32 %v1159, 16
          %v1165 = vrot.slane %v1163, 1
          %v1166 = vor.u32 %v1161, %v1165
          %v1168 = vsel %vm281, %v1166, 0
          %v1171 = vsel %vm285, %v1156, 0
          %1173 = vmatprep.subr.bf16.mxu0 0
          %1174 = vmatpush1.bf16.msra.mxu0 %v1171
          %1175 = vmatprep.subr.bf16.mxu0 0
          %1176 = vmatpush1.bf16.msra.mxu0 0
          %1177 = vmatprep.subr.bf16.mxu0 0
          %1178 = vmatpush1.bf16.msra.mxu0 0
          %1179 = vmatprep.subr.bf16.mxu0 0
          %1180 = vmatpush1.bf16.msra.mxu0 0
          %1181 = vmatprep.subr.bf16.mxu0 0
          %1182 = vmatpush1.bf16.msra.mxu0 0
          %1183 = vmatprep.subr.bf16.mxu0 0
          %1184 = vmatpush1.bf16.msra.mxu0 0
          %1185 = vmatprep.subr.bf16.mxu0 0
          %1186 = vmatpush1.bf16.msra.mxu0 0
          %1187 = vmatprep.subr.bf16.mxu0 0
          %1188 = vmatpush1.bf16.msra.mxu0 0
          %1189 = vmatprep.subr.bf16.mxu0 0
          %1190 = vmatpush1.bf16.msra.mxu0 0
          %1191 = vmatprep.subr.bf16.mxu0 0
          %1192 = vmatpush1.bf16.msra.mxu0 0
          %1193 = vmatprep.subr.bf16.mxu0 0
          %1194 = vmatpush1.bf16.msra.mxu0 0
          %1195 = vmatprep.subr.bf16.mxu0 0
          %1196 = vmatpush1.bf16.msra.mxu0 0
          %1197 = vmatprep.subr.bf16.mxu0 0
          %1198 = vmatpush1.bf16.msra.mxu0 0
          %1199 = vmatprep.subr.bf16.mxu0 0
          %1200 = vmatpush1.bf16.msra.mxu0 0
          %1201 = vmatprep.subr.bf16.mxu0 0
          %1202 = vmatpush1.bf16.msra.mxu0 0
          %1203 = vmatprep.subr.bf16.mxu0 0
          %1204 = vmatpush1.bf16.msra.mxu0 0
          %1205 = vmatprep.mubr.bf16.mxu0 0
          %1206 = vmatmul.mubr.bf16.gmra.mrb[0].mxu0 %v1168
          %v1207 = vpop.f32.mrb[0].mxu0
          %v1208 = vadd.f32 0.0, %v1207
          %v1209 = vpop.f32.mrb[0].mxu0
          %v1210 = vpop.f32.mrb[0].mxu0
          %v1211 = vadd.f32 0.0, %v1210
          %v1212 = vpop.f32.mrb[0].mxu0
          %1213 = vdwg.mxu0
          %v1214 = vadd.f32 %v1152, %v1208
          %v1215 = vadd.f32 %v1153, %v1211
          %v1216 = vld [vmem:[%s1095] sm:$0xe]
          %s1217 = scalar_lea.vmem %s1, 64
          %v1218 = vld [vmem:[%s1217] sm:$0xf]
          %v1220 = vunpack.c.l.b16 %v1216
          %v1221 = vpack.c.b16 %v1158, %v1220
          %v1222 = vrot.slane %v1221, 1
          %v1224 = vsel %vm281, %v1222, 0
          %v1227 = vsel %vm285, %v1218, 0
          %1229 = vmatprep.subr.bf16.mxu0 0
          %1230 = vmatpush1.bf16.msra.mxu0 %v1227
          %1231 = vmatprep.subr.bf16.mxu0 0
          %1232 = vmatpush1.bf16.msra.mxu0 0
          %1233 = vmatprep.subr.bf16.mxu0 0
          %1234 = vmatpush1.bf16.msra.mxu0 0
          %1235 = vmatprep.subr.bf16.mxu0 0
          %1236 = vmatpush1.bf16.msra.mxu0 0
          %1237 = vmatprep.subr.bf16.mxu0 0
          %1238 = vmatpush1.bf16.msra.mxu0 0
          %1239 = vmatprep.subr.bf16.mxu0 0
          %1240 = vmatpush1.bf16.msra.mxu0 0
          %1241 = vmatprep.subr.bf16.mxu0 0
          %1242 = vmatpush1.bf16.msra.mxu0 0
          %1243 = vmatprep.subr.bf16.mxu0 0
          %1244 = vmatpush1.bf16.msra.mxu0 0
          %1245 = vmatprep.subr.bf16.mxu0 0
          %1246 = vmatpush1.bf16.msra.mxu0 0
          %1247 = vmatprep.subr.bf16.mxu0 0
          %1248 = vmatpush1.bf16.msra.mxu0 0
          %1249 = vmatprep.subr.bf16.mxu0 0
          %1250 = vmatpush1.bf16.msra.mxu0 0
          %1251 = vmatprep.subr.bf16.mxu0 0
          %1252 = vmatpush1.bf16.msra.mxu0 0
          %1253 = vmatprep.subr.bf16.mxu0 0
          %1254 = vmatpush1.bf16.msra.mxu0 0
          %1255 = vmatprep.subr.bf16.mxu0 0
          %1256 = vmatpush1.bf16.msra.mxu0 0
          %1257 = vmatprep.subr.bf16.mxu0 0
          %1258 = vmatpush1.bf16.msra.mxu0 0
          %1259 = vmatprep.subr.bf16.mxu0 0
          %1260 = vmatpush1.bf16.msra.mxu0 0
          %1261 = vmatprep.mubr.bf16.mxu0 0
          %1262 = vmatmul.mubr.bf16.gmra.mrb[0].mxu0 %v1224
          %v1263 = vpop.f32.mrb[0].mxu0
          %v1264 = vadd.f32 0.0, %v1263
          %v1265 = vpop.f32.mrb[0].mxu0
          %v1266 = vpop.f32.mrb[0].mxu0
          %v1267 = vadd.f32 0.0, %v1266
          %v1268 = vpop.f32.mrb[0].mxu0
          %1269 = vdwg.mxu0
          %v1270 = vadd.f32 %v1214, %v1264
          %v1271 = vadd.f32 %v1215, %v1267
          %v1272 = vld [vmem:[%s1095 + $0x4] sm:$0x7]
          %s1273 = scalar_lea.vmem %s1, 68
          %v1274 = vld [vmem:[%s1273] sm:$0xf]
          %v1276 = vunpack.c.l.b16 %v1272
          %v1277 = vpack.c.b16 %v1276, %v1220
          %v1279 = vshrl.u32 %v1277, 16
          %v1281 = vrot.slane %v1279, 1
          %v1282 = vshll.u32 %v1277, 16
          %v1284 = vrot.slane %v1282, 2
          %v1285 = vor.u32 %v1281, %v1284
          %v1287 = vsel %vm281, %v1285, 0
          %v1290 = vsel %vm285, %v1274, 0
          %1292 = vmatprep.subr.bf16.mxu0 0
          %1293 = vmatpush1.bf16.msra.mxu0 %v1290
          %1294 = vmatprep.subr.bf16.mxu0 0
          %1295 = vmatpush1.bf16.msra.mxu0 0
          %1296 = vmatprep.subr.bf16.mxu0 0
          %1297 = vmatpush1.bf16.msra.mxu0 0
          %1298 = vmatprep.subr.bf16.mxu0 0
          %1299 = vmatpush1.bf16.msra.mxu0 0
          %1300 = vmatprep.subr.bf16.mxu0 0
          %1301 = vmatpush1.bf16.msra.mxu0 0
          %1302 = vmatprep.subr.bf16.mxu0 0
          %1303 = vmatpush1.bf16.msra.mxu0 0
          %1304 = vmatprep.subr.bf16.mxu0 0
          %1305 = vmatpush1.bf16.msra.mxu0 0
          %1306 = vmatprep.subr.bf16.mxu0 0
          %1307 = vmatpush1.bf16.msra.mxu0 0
          %1308 = vmatprep.subr.bf16.mxu0 0
          %1309 = vmatpush1.bf16.msra.mxu0 0
          %1310 = vmatprep.subr.bf16.mxu0 0
          %1311 = vmatpush1.bf16.msra.mxu0 0
          %1312 = vmatprep.subr.bf16.mxu0 0
          %1313 = vmatpush1.bf16.msra.mxu0 0
          %1314 = vmatprep.subr.bf16.mxu0 0
          %1315 = vmatpush1.bf16.msra.mxu0 0
          %1316 = vmatprep.subr.bf16.mxu0 0
          %1317 = vmatpush1.bf16.msra.mxu0 0
          %1318 = vmatprep.subr.bf16.mxu0 0
          %1319 = vmatpush1.bf16.msra.mxu0 0
          %1320 = vmatprep.subr.bf16.mxu0 0
          %1321 = vmatpush1.bf16.msra.mxu0 0
          %1322 = vmatprep.subr.bf16.mxu0 0
          %1323 = vmatpush1.bf16.msra.mxu0 0
          %1324 = vmatprep.mubr.bf16.mxu0 0
          %1325 = vmatmul.mubr.bf16.gmra.mrb[0].mxu0 %v1287
          %v1326 = vpop.f32.mrb[0].mxu0
          %v1327 = vadd.f32 0.0, %v1326
          %v1328 = vpop.f32.mrb[0].mxu0
          %v1329 = vpop.f32.mrb[0].mxu0
          %v1330 = vadd.f32 0.0, %v1329
          %v1331 = vpop.f32.mrb[0].mxu0
          %1332 = vdwg.mxu0
          %v1333 = vadd.f32 %v1270, %v1327
          %v1334 = vadd.f32 %v1271, %v1330
          %v1335 = vld [vmem:[%s1095] sm:$0xc]
          %s1336 = scalar_lea.vmem %s1, 72
          %v1337 = vld [vmem:[%s1336] sm:$0xf]
          %v1339 = vunpack.c.l.b16 %v1335
          %v1340 = vpack.c.b16 %v1276, %v1339
          %v1341 = vrot.slane %v1340, 2
          %v1343 = vsel %vm281, %v1341, 0
          %v1346 = vsel %vm285, %v1337, 0
          %1348 = vmatprep.subr.bf16.mxu0 0
          %1349 = vmatpush1.bf16.msra.mxu0 %v1346
          %1350 = vmatprep.subr.bf16.mxu0 0
          %1351 = vmatpush1.bf16.msra.mxu0 0
          %1352 = vmatprep.subr.bf16.mxu0 0
          %1353 = vmatpush1.bf16.msra.mxu0 0
          %1354 = vmatprep.subr.bf16.mxu0 0
          %1355 = vmatpush1.bf16.msra.mxu0 0
          %1356 = vmatprep.subr.bf16.mxu0 0
          %1357 = vmatpush1.bf16.msra.mxu0 0
          %1358 = vmatprep.subr.bf16.mxu0 0
          %1359 = vmatpush1.bf16.msra.mxu0 0
          %1360 = vmatprep.subr.bf16.mxu0 0
          %1361 = vmatpush1.bf16.msra.mxu0 0
          %1362 = vmatprep.subr.bf16.mxu0 0
          %1363 = vmatpush1.bf16.msra.mxu0 0
          %1364 = vmatprep.subr.bf16.mxu0 0
          %1365 = vmatpush1.bf16.msra.mxu0 0
          %1366 = vmatprep.subr.bf16.mxu0 0
          %1367 = vmatpush1.bf16.msra.mxu0 0
          %1368 = vmatprep.subr.bf16.mxu0 0
          %1369 = vmatpush1.bf16.msra.mxu0 0
          %1370 = vmatprep.subr.bf16.mxu0 0
          %1371 = vmatpush1.bf16.msra.mxu0 0
          %1372 = vmatprep.subr.bf16.mxu0 0
          %1373 = vmatpush1.bf16.msra.mxu0 0
          %1374 = vmatprep.subr.bf16.mxu0 0
          %1375 = vmatpush1.bf16.msra.mxu0 0
          %1376 = vmatprep.subr.bf16.mxu0 0
          %1377 = vmatpush1.bf16.msra.mxu0 0
          %1378 = vmatprep.subr.bf16.mxu0 0
          %1379 = vmatpush1.bf16.msra.mxu0 0
          %1380 = vmatprep.mubr.bf16.mxu0 0
          %1381 = vmatmul.mubr.bf16.gmra.mrb[0].mxu0 %v1343
          %v1382 = vpop.f32.mrb[0].mxu0
          %v1383 = vadd.f32 0.0, %v1382
          %v1384 = vpop.f32.mrb[0].mxu0
          %v1385 = vpop.f32.mrb[0].mxu0
          %v1386 = vadd.f32 0.0, %v1385
          %v1387 = vpop.f32.mrb[0].mxu0
          %1388 = vdwg.mxu0
          %v1389 = vadd.f32 %v1333, %v1383
          %v1390 = vadd.f32 %v1334, %v1386
          %v1391 = vld [vmem:[%s1095 + $0x4] sm:$0xf]
          %s1392 = scalar_lea.vmem %s1, 76
          %v1393 = vld [vmem:[%s1392] sm:$0xf]
          %v1395 = vunpack.c.l.b16 %v1391
          %v1396 = vpack.c.b16 %v1395, %v1339
          %v1398 = vshrl.u32 %v1396, 16
          %v1400 = vrot.slane %v1398, 2
          %v1401 = vshll.u32 %v1396, 16
          %v1403 = vrot.slane %v1401, 3
          %v1404 = vor.u32 %v1400, %v1403
          %v1406 = vsel %vm281, %v1404, 0
          %v1409 = vsel %vm285, %v1393, 0
          %1411 = vmatprep.subr.bf16.mxu0 0
          %1412 = vmatpush1.bf16.msra.mxu0 %v1409
          %1413 = vmatprep.subr.bf16.mxu0 0
          %1414 = vmatpush1.bf16.msra.mxu0 0
          %1415 = vmatprep.subr.bf16.mxu0 0
          %1416 = vmatpush1.bf16.msra.mxu0 0
          %1417 = vmatprep.subr.bf16.mxu0 0
          %1418 = vmatpush1.bf16.msra.mxu0 0
          %1419 = vmatprep.subr.bf16.mxu0 0
          %1420 = vmatpush1.bf16.msra.mxu0 0
          %1421 = vmatprep.subr.bf16.mxu0 0
          %1422 = vmatpush1.bf16.msra.mxu0 0
          %1423 = vmatprep.subr.bf16.mxu0 0
          %1424 = vmatpush1.bf16.msra.mxu0 0
          %1425 = vmatprep.subr.bf16.mxu0 0
          %1426 = vmatpush1.bf16.msra.mxu0 0
          %1427 = vmatprep.subr.bf16.mxu0 0
          %1428 = vmatpush1.bf16.msra.mxu0 0
          %1429 = vmatprep.subr.bf16.mxu0 0
          %1430 = vmatpush1.bf16.msra.mxu0 0
          %1431 = vmatprep.subr.bf16.mxu0 0
          %1432 = vmatpush1.bf16.msra.mxu0 0
          %1433 = vmatprep.subr.bf16.mxu0 0
          %1434 = vmatpush1.bf16.msra.mxu0 0
          %1435 = vmatprep.subr.bf16.mxu0 0
          %1436 = vmatpush1.bf16.msra.mxu0 0
          %1437 = vmatprep.subr.bf16.mxu0 0
          %1438 = vmatpush1.bf16.msra.mxu0 0
          %1439 = vmatprep.subr.bf16.mxu0 0
          %1440 = vmatpush1.bf16.msra.mxu0 0
          %1441 = vmatprep.subr.bf16.mxu0 0
          %1442 = vmatpush1.bf16.msra.mxu0 0
          %1443 = vmatprep.mubr.bf16.mxu0 0
          %1444 = vmatmul.mubr.bf16.gmra.mrb[0].mxu0 %v1406
          %v1445 = vpop.f32.mrb[0].mxu0
          %v1446 = vadd.f32 0.0, %v1445
          %v1447 = vpop.f32.mrb[0].mxu0
          %v1448 = vpop.f32.mrb[0].mxu0
          %v1449 = vadd.f32 0.0, %v1448
          %v1450 = vpop.f32.mrb[0].mxu0
          %1451 = vdwg.mxu0
          %v1452 = vadd.f32 %v1389, %v1446
          %v1453 = vadd.f32 %v1390, %v1449
          %v1454 = vld [vmem:[%s1095] sm:$0x8]
          %s1455 = scalar_lea.vmem %s1, 80
          %v1456 = vld [vmem:[%s1455] sm:$0xf]
          %v1458 = vunpack.c.l.b16 %v1454
          %v1459 = vpack.c.b16 %v1395, %v1458
          %v1460 = vrot.slane %v1459, 3
          %v1462 = vsel %vm281, %v1460, 0
          %v1465 = vsel %vm285, %v1456, 0
          %1467 = vmatprep.subr.bf16.mxu0 0
          %1468 = vmatpush1.bf16.msra.mxu0 %v1465
          %1469 = vmatprep.subr.bf16.mxu0 0
          %1470 = vmatpush1.bf16.msra.mxu0 0
          %1471 = vmatprep.subr.bf16.mxu0 0
          %1472 = vmatpush1.bf16.msra.mxu0 0
          %1473 = vmatprep.subr.bf16.mxu0 0
          %1474 = vmatpush1.bf16.msra.mxu0 0
          %1475 = vmatprep.subr.bf16.mxu0 0
          %1476 = vmatpush1.bf16.msra.mxu0 0
          %1477 = vmatprep.subr.bf16.mxu0 0
          %1478 = vmatpush1.bf16.msra.mxu0 0
          %1479 = vmatprep.subr.bf16.mxu0 0
          %1480 = vmatpush1.bf16.msra.mxu0 0
          %1481 = vmatprep.subr.bf16.mxu0 0
          %1482 = vmatpush1.bf16.msra.mxu0 0
          %1483 = vmatprep.subr.bf16.mxu0 0
          %1484 = vmatpush1.bf16.msra.mxu0 0
          %1485 = vmatprep.subr.bf16.mxu0 0
          %1486 = vmatpush1.bf16.msra.mxu0 0
          %1487 = vmatprep.subr.bf16.mxu0 0
          %1488 = vmatpush1.bf16.msra.mxu0 0
          %1489 = vmatprep.subr.bf16.mxu0 0
          %1490 = vmatpush1.bf16.msra.mxu0 0
          %1491 = vmatprep.subr.bf16.mxu0 0
          %1492 = vmatpush1.bf16.msra.mxu0 0
          %1493 = vmatprep.subr.bf16.mxu0 0
          %1494 = vmatpush1.bf16.msra.mxu0 0
          %1495 = vmatprep.subr.bf16.mxu0 0
          %1496 = vmatpush1.bf16.msra.mxu0 0
          %1497 = vmatprep.subr.bf16.mxu0 0
          %1498 = vmatpush1.bf16.msra.mxu0 0
          %1499 = vmatprep.mubr.bf16.mxu0 0
          %1500 = vmatmul.mubr.bf16.gmra.mrb[0].mxu0 %v1462
          %v1501 = vpop.f32.mrb[0].mxu0
          %v1502 = vadd.f32 0.0, %v1501
          %v1503 = vpop.f32.mrb[0].mxu0
          %v1504 = vpop.f32.mrb[0].mxu0
          %v1505 = vadd.f32 0.0, %v1504
          %v1506 = vpop.f32.mrb[0].mxu0
          %1507 = vdwg.mxu0
          %v1508 = vadd.f32 %v1452, %v1502
          %v1509 = vadd.f32 %v1453, %v1505
          %s1510 = sadd.s32 %s259, 3
          %s1511 = smul.u32 %s1510, 2
          %s1512 = smul.addr %s1511, 4
          %s1513 = scalar_lea.vmem %s230, %s1512
          %v1514 = vld [vmem:[%s1513] sm:$0xf]
          %v1515 = vld [vmem:[%s1513 + $0x4] sm:$0x1]
          %s1516 = scalar_lea.vmem %s1, 84
          %v1517 = vld [vmem:[%s1516] sm:$0xf]
          %v1520 = vunpack.c.l.b16 %v1514
          %v1521 = vunpack.c.l.b16 %v1515
          %v1522 = vpack.c.b16 %v1521, %v1520
          %v1524 = vsel %vm281, %v1522, 0
          %v1527 = vsel %vm285, %v1517, 0
          %1529 = vmatprep.subr.bf16.mxu0 0
          %1530 = vmatpush1.bf16.msra.mxu0 %v1527
          %1531 = vmatprep.subr.bf16.mxu0 0
          %1532 = vmatpush1.bf16.msra.mxu0 0
          %1533 = vmatprep.subr.bf16.mxu0 0
          %1534 = vmatpush1.bf16.msra.mxu0 0
          %1535 = vmatprep.subr.bf16.mxu0 0
          %1536 = vmatpush1.bf16.msra.mxu0 0
          %1537 = vmatprep.subr.bf16.mxu0 0
          %1538 = vmatpush1.bf16.msra.mxu0 0
          %1539 = vmatprep.subr.bf16.mxu0 0
          %1540 = vmatpush1.bf16.msra.mxu0 0
          %1541 = vmatprep.subr.bf16.mxu0 0
          %1542 = vmatpush1.bf16.msra.mxu0 0
          %1543 = vmatprep.subr.bf16.mxu0 0
          %1544 = vmatpush1.bf16.msra.mxu0 0
          %1545 = vmatprep.subr.bf16.mxu0 0
          %1546 = vmatpush1.bf16.msra.mxu0 0
          %1547 = vmatprep.subr.bf16.mxu0 0
          %1548 = vmatpush1.bf16.msra.mxu0 0
          %1549 = vmatprep.subr.bf16.mxu0 0
          %1550 = vmatpush1.bf16.msra.mxu0 0
          %1551 = vmatprep.subr.bf16.mxu0 0
          %1552 = vmatpush1.bf16.msra.mxu0 0
          %1553 = vmatprep.subr.bf16.mxu0 0
          %1554 = vmatpush1.bf16.msra.mxu0 0
          %1555 = vmatprep.subr.bf16.mxu0 0
          %1556 = vmatpush1.bf16.msra.mxu0 0
          %1557 = vmatprep.subr.bf16.mxu0 0
          %1558 = vmatpush1.bf16.msra.mxu0 0
          %1559 = vmatprep.subr.bf16.mxu0 0
          %1560 = vmatpush1.bf16.msra.mxu0 0
          %1561 = vmatprep.mubr.bf16.mxu0 0
          %1562 = vmatmul.mubr.bf16.gmra.mrb[0].mxu0 %v1524
          %v1563 = vpop.f32.mrb[0].mxu0
          %v1564 = vadd.f32 0.0, %v1563
          %v1565 = vpop.f32.mrb[0].mxu0
          %v1566 = vpop.f32.mrb[0].mxu0
          %v1567 = vadd.f32 0.0, %v1566
          %v1568 = vpop.f32.mrb[0].mxu0
          %1569 = vdwg.mxu0
          %v1570 = vadd.f32 %v1508, %v1564
          %v1571 = vadd.f32 %v1509, %v1567
          %v1572 = vld [vmem:[%s1513 + $0x4] sm:$0x3]
          %s1573 = scalar_lea.vmem %s1, 88
          %v1574 = vld [vmem:[%s1573] sm:$0xf]
          %v1576 = vunpack.c.l.b16 %v1572
          %v1577 = vpack.c.b16 %v1576, %v1520
          %v1579 = vshrl.u32 %v1577, 16
          %v1581 = vshll.u32 %v1577, 16
          %v1583 = vrot.slane %v1581, 1
          %v1584 = vor.u32 %v1579, %v1583
          %v1586 = vsel %vm281, %v1584, 0
          %v1589 = vsel %vm285, %v1574, 0
          %1591 = vmatprep.subr.bf16.mxu0 0
          %1592 = vmatpush1.bf16.msra.mxu0 %v1589
          %1593 = vmatprep.subr.bf16.mxu0 0
          %1594 = vmatpush1.bf16.msra.mxu0 0
          %1595 = vmatprep.subr.bf16.mxu0 0
          %1596 = vmatpush1.bf16.msra.mxu0 0
          %1597 = vmatprep.subr.bf16.mxu0 0
          %1598 = vmatpush1.bf16.msra.mxu0 0
          %1599 = vmatprep.subr.bf16.mxu0 0
          %1600 = vmatpush1.bf16.msra.mxu0 0
          %1601 = vmatprep.subr.bf16.mxu0 0
          %1602 = vmatpush1.bf16.msra.mxu0 0
          %1603 = vmatprep.subr.bf16.mxu0 0
          %1604 = vmatpush1.bf16.msra.mxu0 0
          %1605 = vmatprep.subr.bf16.mxu0 0
          %1606 = vmatpush1.bf16.msra.mxu0 0
          %1607 = vmatprep.subr.bf16.mxu0 0
          %1608 = vmatpush1.bf16.msra.mxu0 0
          %1609 = vmatprep.subr.bf16.mxu0 0
          %1610 = vmatpush1.bf16.msra.mxu0 0
          %1611 = vmatprep.subr.bf16.mxu0 0
          %1612 = vmatpush1.bf16.msra.mxu0 0
          %1613 = vmatprep.subr.bf16.mxu0 0
          %1614 = vmatpush1.bf16.msra.mxu0 0
          %1615 = vmatprep.subr.bf16.mxu0 0
          %1616 = vmatpush1.bf16.msra.mxu0 0
          %1617 = vmatprep.subr.bf16.mxu0 0
          %1618 = vmatpush1.bf16.msra.mxu0 0
          %1619 = vmatprep.subr.bf16.mxu0 0
          %1620 = vmatpush1.bf16.msra.mxu0 0
          %1621 = vmatprep.subr.bf16.mxu0 0
          %1622 = vmatpush1.bf16.msra.mxu0 0
          %1623 = vmatprep.mubr.bf16.mxu0 0
          %1624 = vmatmul.mubr.bf16.gmra.mrb[0].mxu0 %v1586
          %v1625 = vpop.f32.mrb[0].mxu0
          %v1626 = vadd.f32 0.0, %v1625
          %v1627 = vpop.f32.mrb[0].mxu0
          %v1628 = vpop.f32.mrb[0].mxu0
          %v1629 = vadd.f32 0.0, %v1628
          %v1630 = vpop.f32.mrb[0].mxu0
          %1631 = vdwg.mxu0
          %v1632 = vadd.f32 %v1570, %v1626
          %v1633 = vadd.f32 %v1571, %v1629
          %v1634 = vld [vmem:[%s1513] sm:$0xe]
          %s1635 = scalar_lea.vmem %s1, 92
          %v1636 = vld [vmem:[%s1635] sm:$0xf]
          %v1638 = vunpack.c.l.b16 %v1634
          %v1639 = vpack.c.b16 %v1576, %v1638
          %v1640 = vrot.slane %v1639, 1
          %v1642 = vsel %vm281, %v1640, 0
          %v1645 = vsel %vm285, %v1636, 0
          %1647 = vmatprep.subr.bf16.mxu0 0
          %1648 = vmatpush1.bf16.msra.mxu0 %v1645
          %1649 = vmatprep.subr.bf16.mxu0 0
          %1650 = vmatpush1.bf16.msra.mxu0 0
          %1651 = vmatprep.subr.bf16.mxu0 0
          %1652 = vmatpush1.bf16.msra.mxu0 0
          %1653 = vmatprep.subr.bf16.mxu0 0
          %1654 = vmatpush1.bf16.msra.mxu0 0
          %1655 = vmatprep.subr.bf16.mxu0 0
          %1656 = vmatpush1.bf16.msra.mxu0 0
          %1657 = vmatprep.subr.bf16.mxu0 0
          %1658 = vmatpush1.bf16.msra.mxu0 0
          %1659 = vmatprep.subr.bf16.mxu0 0
          %1660 = vmatpush1.bf16.msra.mxu0 0
          %1661 = vmatprep.subr.bf16.mxu0 0
          %1662 = vmatpush1.bf16.msra.mxu0 0
          %1663 = vmatprep.subr.bf16.mxu0 0
          %1664 = vmatpush1.bf16.msra.mxu0 0
          %1665 = vmatprep.subr.bf16.mxu0 0
          %1666 = vmatpush1.bf16.msra.mxu0 0
          %1667 = vmatprep.subr.bf16.mxu0 0
          %1668 = vmatpush1.bf16.msra.mxu0 0
          %1669 = vmatprep.subr.bf16.mxu0 0
          %1670 = vmatpush1.bf16.msra.mxu0 0
          %1671 = vmatprep.subr.bf16.mxu0 0
          %1672 = vmatpush1.bf16.msra.mxu0 0
          %1673 = vmatprep.subr.bf16.mxu0 0
          %1674 = vmatpush1.bf16.msra.mxu0 0
          %1675 = vmatprep.subr.bf16.mxu0 0
          %1676 = vmatpush1.bf16.msra.mxu0 0
          %1677 = vmatprep.subr.bf16.mxu0 0
          %1678 = vmatpush1.bf16.msra.mxu0 0
          %1679 = vmatprep.mubr.bf16.mxu0 0
          %1680 = vmatmul.mubr.bf16.gmra.mrb[0].mxu0 %v1642
          %v1681 = vpop.f32.mrb[0].mxu0
          %v1682 = vadd.f32 0.0, %v1681
          %v1683 = vpop.f32.mrb[0].mxu0
          %v1684 = vpop.f32.mrb[0].mxu0
          %v1685 = vadd.f32 0.0, %v1684
          %v1686 = vpop.f32.mrb[0].mxu0
          %1687 = vdwg.mxu0
          %v1688 = vadd.f32 %v1632, %v1682
          %v1689 = vadd.f32 %v1633, %v1685
          %v1690 = vld [vmem:[%s1513 + $0x4] sm:$0x7]
          %s1691 = scalar_lea.vmem %s1, 96
          %v1692 = vld [vmem:[%s1691] sm:$0xf]
          %v1694 = vunpack.c.l.b16 %v1690
          %v1695 = vpack.c.b16 %v1694, %v1638
          %v1697 = vshrl.u32 %v1695, 16
          %v1699 = vrot.slane %v1697, 1
          %v1700 = vshll.u32 %v1695, 16
          %v1702 = vrot.slane %v1700, 2
          %v1703 = vor.u32 %v1699, %v1702
          %v1705 = vsel %vm281, %v1703, 0
          %v1708 = vsel %vm285, %v1692, 0
          %1710 = vmatprep.subr.bf16.mxu0 0
          %1711 = vmatpush1.bf16.msra.mxu0 %v1708
          %1712 = vmatprep.subr.bf16.mxu0 0
          %1713 = vmatpush1.bf16.msra.mxu0 0
          %1714 = vmatprep.subr.bf16.mxu0 0
          %1715 = vmatpush1.bf16.msra.mxu0 0
          %1716 = vmatprep.subr.bf16.mxu0 0
          %1717 = vmatpush1.bf16.msra.mxu0 0
          %1718 = vmatprep.subr.bf16.mxu0 0
          %1719 = vmatpush1.bf16.msra.mxu0 0
          %1720 = vmatprep.subr.bf16.mxu0 0
          %1721 = vmatpush1.bf16.msra.mxu0 0
          %1722 = vmatprep.subr.bf16.mxu0 0
          %1723 = vmatpush1.bf16.msra.mxu0 0
          %1724 = vmatprep.subr.bf16.mxu0 0
          %1725 = vmatpush1.bf16.msra.mxu0 0
          %1726 = vmatprep.subr.bf16.mxu0 0
          %1727 = vmatpush1.bf16.msra.mxu0 0
          %1728 = vmatprep.subr.bf16.mxu0 0
          %1729 = vmatpush1.bf16.msra.mxu0 0
          %1730 = vmatprep.subr.bf16.mxu0 0
          %1731 = vmatpush1.bf16.msra.mxu0 0
          %1732 = vmatprep.subr.bf16.mxu0 0
          %1733 = vmatpush1.bf16.msra.mxu0 0
          %1734 = vmatprep.subr.bf16.mxu0 0
          %1735 = vmatpush1.bf16.msra.mxu0 0
          %1736 = vmatprep.subr.bf16.mxu0 0
          %1737 = vmatpush1.bf16.msra.mxu0 0
          %1738 = vmatprep.subr.bf16.mxu0 0
          %1739 = vmatpush1.bf16.msra.mxu0 0
          %1740 = vmatprep.subr.bf16.mxu0 0
          %1741 = vmatpush1.bf16.msra.mxu0 0
          %1742 = vmatprep.mubr.bf16.mxu0 0
          %1743 = vmatmul.mubr.bf16.gmra.mrb[0].mxu0 %v1705
          %v1744 = vpop.f32.mrb[0].mxu0
          %v1745 = vadd.f32 0.0, %v1744
          %v1746 = vpop.f32.mrb[0].mxu0
          %v1747 = vpop.f32.mrb[0].mxu0
          %v1748 = vadd.f32 0.0, %v1747
          %v1749 = vpop.f32.mrb[0].mxu0
          %1750 = vdwg.mxu0
          %v1751 = vadd.f32 %v1688, %v1745
          %v1752 = vadd.f32 %v1689, %v1748
          %v1753 = vld [vmem:[%s1513] sm:$0xc]
          %s1754 = scalar_lea.vmem %s1, 100
          %v1755 = vld [vmem:[%s1754] sm:$0xf]
          %v1757 = vunpack.c.l.b16 %v1753
          %v1758 = vpack.c.b16 %v1694, %v1757
          %v1759 = vrot.slane %v1758, 2
          %v1761 = vsel %vm281, %v1759, 0
          %v1764 = vsel %vm285, %v1755, 0
          %1766 = vmatprep.subr.bf16.mxu0 0
          %1767 = vmatpush1.bf16.msra.mxu0 %v1764
          %1768 = vmatprep.subr.bf16.mxu0 0
          %1769 = vmatpush1.bf16.msra.mxu0 0
          %1770 = vmatprep.subr.bf16.mxu0 0
          %1771 = vmatpush1.bf16.msra.mxu0 0
          %1772 = vmatprep.subr.bf16.mxu0 0
          %1773 = vmatpush1.bf16.msra.mxu0 0
          %1774 = vmatprep.subr.bf16.mxu0 0
          %1775 = vmatpush1.bf16.msra.mxu0 0
          %1776 = vmatprep.subr.bf16.mxu0 0
          %1777 = vmatpush1.bf16.msra.mxu0 0
          %1778 = vmatprep.subr.bf16.mxu0 0
          %1779 = vmatpush1.bf16.msra.mxu0 0
          %1780 = vmatprep.subr.bf16.mxu0 0
          %1781 = vmatpush1.bf16.msra.mxu0 0
          %1782 = vmatprep.subr.bf16.mxu0 0
          %1783 = vmatpush1.bf16.msra.mxu0 0
          %1784 = vmatprep.subr.bf16.mxu0 0
          %1785 = vmatpush1.bf16.msra.mxu0 0
          %1786 = vmatprep.subr.bf16.mxu0 0
          %1787 = vmatpush1.bf16.msra.mxu0 0
          %1788 = vmatprep.subr.bf16.mxu0 0
          %1789 = vmatpush1.bf16.msra.mxu0 0
          %1790 = vmatprep.subr.bf16.mxu0 0
          %1791 = vmatpush1.bf16.msra.mxu0 0
          %1792 = vmatprep.subr.bf16.mxu0 0
          %1793 = vmatpush1.bf16.msra.mxu0 0
          %1794 = vmatprep.subr.bf16.mxu0 0
          %1795 = vmatpush1.bf16.msra.mxu0 0
          %1796 = vmatprep.subr.bf16.mxu0 0
          %1797 = vmatpush1.bf16.msra.mxu0 0
          %1798 = vmatprep.mubr.bf16.mxu0 0
          %1799 = vmatmul.mubr.bf16.gmra.mrb[0].mxu0 %v1761
          %v1800 = vpop.f32.mrb[0].mxu0
          %v1801 = vadd.f32 0.0, %v1800
          %v1802 = vpop.f32.mrb[0].mxu0
          %v1803 = vpop.f32.mrb[0].mxu0
          %v1804 = vadd.f32 0.0, %v1803
          %v1805 = vpop.f32.mrb[0].mxu0
          %1806 = vdwg.mxu0
          %v1807 = vadd.f32 %v1751, %v1801
          %v1808 = vadd.f32 %v1752, %v1804
          %v1809 = vld [vmem:[%s1513 + $0x4] sm:$0xf]
          %s1810 = scalar_lea.vmem %s1, 104
          %v1811 = vld [vmem:[%s1810] sm:$0xf]
          %v1813 = vunpack.c.l.b16 %v1809
          %v1814 = vpack.c.b16 %v1813, %v1757
          %v1816 = vshrl.u32 %v1814, 16
          %v1818 = vrot.slane %v1816, 2
          %v1819 = vshll.u32 %v1814, 16
          %v1821 = vrot.slane %v1819, 3
          %v1822 = vor.u32 %v1818, %v1821
          %v1824 = vsel %vm281, %v1822, 0
          %v1827 = vsel %vm285, %v1811, 0
          %1829 = vmatprep.subr.bf16.mxu0 0
          %1830 = vmatpush1.bf16.msra.mxu0 %v1827
          %1831 = vmatprep.subr.bf16.mxu0 0
          %1832 = vmatpush1.bf16.msra.mxu0 0
          %1833 = vmatprep.subr.bf16.mxu0 0
          %1834 = vmatpush1.bf16.msra.mxu0 0
          %1835 = vmatprep.subr.bf16.mxu0 0
          %1836 = vmatpush1.bf16.msra.mxu0 0
          %1837 = vmatprep.subr.bf16.mxu0 0
          %1838 = vmatpush1.bf16.msra.mxu0 0
          %1839 = vmatprep.subr.bf16.mxu0 0
          %1840 = vmatpush1.bf16.msra.mxu0 0
          %1841 = vmatprep.subr.bf16.mxu0 0
          %1842 = vmatpush1.bf16.msra.mxu0 0
          %1843 = vmatprep.subr.bf16.mxu0 0
          %1844 = vmatpush1.bf16.msra.mxu0 0
          %1845 = vmatprep.subr.bf16.mxu0 0
          %1846 = vmatpush1.bf16.msra.mxu0 0
          %1847 = vmatprep.subr.bf16.mxu0 0
          %1848 = vmatpush1.bf16.msra.mxu0 0
          %1849 = vmatprep.subr.bf16.mxu0 0
          %1850 = vmatpush1.bf16.msra.mxu0 0
          %1851 = vmatprep.subr.bf16.mxu0 0
          %1852 = vmatpush1.bf16.msra.mxu0 0
          %1853 = vmatprep.subr.bf16.mxu0 0
          %1854 = vmatpush1.bf16.msra.mxu0 0
          %1855 = vmatprep.subr.bf16.mxu0 0
          %1856 = vmatpush1.bf16.msra.mxu0 0
          %1857 = vmatprep.subr.bf16.mxu0 0
          %1858 = vmatpush1.bf16.msra.mxu0 0
          %1859 = vmatprep.subr.bf16.mxu0 0
          %1860 = vmatpush1.bf16.msra.mxu0 0
          %1861 = vmatprep.mubr.bf16.mxu0 0
          %1862 = vmatmul.mubr.bf16.gmra.mrb[0].mxu0 %v1824
          %v1863 = vpop.f32.mrb[0].mxu0
          %v1864 = vadd.f32 0.0, %v1863
          %v1865 = vpop.f32.mrb[0].mxu0
          %v1866 = vpop.f32.mrb[0].mxu0
          %v1867 = vadd.f32 0.0, %v1866
          %v1868 = vpop.f32.mrb[0].mxu0
          %1869 = vdwg.mxu0
          %v1870 = vadd.f32 %v1807, %v1864
          %v1871 = vadd.f32 %v1808, %v1867
          %v1872 = vld [vmem:[%s1513] sm:$0x8]
          %s1873 = scalar_lea.vmem %s1, 108
          %v1874 = vld [vmem:[%s1873] sm:$0xf]
          %v1876 = vunpack.c.l.b16 %v1872
          %v1877 = vpack.c.b16 %v1813, %v1876
          %v1878 = vrot.slane %v1877, 3
          %v1880 = vsel %vm281, %v1878, 0
          %v1883 = vsel %vm285, %v1874, 0
          %1885 = vmatprep.subr.bf16.mxu0 0
          %1886 = vmatpush1.bf16.msra.mxu0 %v1883
          %1887 = vmatprep.subr.bf16.mxu0 0
          %1888 = vmatpush1.bf16.msra.mxu0 0
          %1889 = vmatprep.subr.bf16.mxu0 0
          %1890 = vmatpush1.bf16.msra.mxu0 0
          %1891 = vmatprep.subr.bf16.mxu0 0
          %1892 = vmatpush1.bf16.msra.mxu0 0
          %1893 = vmatprep.subr.bf16.mxu0 0
          %1894 = vmatpush1.bf16.msra.mxu0 0
          %1895 = vmatprep.subr.bf16.mxu0 0
          %1896 = vmatpush1.bf16.msra.mxu0 0
          %1897 = vmatprep.subr.bf16.mxu0 0
          %1898 = vmatpush1.bf16.msra.mxu0 0
          %1899 = vmatprep.subr.bf16.mxu0 0
          %1900 = vmatpush1.bf16.msra.mxu0 0
          %1901 = vmatprep.subr.bf16.mxu0 0
          %1902 = vmatpush1.bf16.msra.mxu0 0
          %1903 = vmatprep.subr.bf16.mxu0 0
          %1904 = vmatpush1.bf16.msra.mxu0 0
          %1905 = vmatprep.subr.bf16.mxu0 0
          %1906 = vmatpush1.bf16.msra.mxu0 0
          %1907 = vmatprep.subr.bf16.mxu0 0
          %1908 = vmatpush1.bf16.msra.mxu0 0
          %1909 = vmatprep.subr.bf16.mxu0 0
          %1910 = vmatpush1.bf16.msra.mxu0 0
          %1911 = vmatprep.subr.bf16.mxu0 0
          %1912 = vmatpush1.bf16.msra.mxu0 0
          %1913 = vmatprep.subr.bf16.mxu0 0
          %1914 = vmatpush1.bf16.msra.mxu0 0
          %1915 = vmatprep.subr.bf16.mxu0 0
          %1916 = vmatpush1.bf16.msra.mxu0 0
          %1917 = vmatprep.mubr.bf16.mxu0 0
          %1918 = vmatmul.mubr.bf16.gmra.mrb[0].mxu0 %v1880
          %v1919 = vpop.f32.mrb[0].mxu0
          %v1920 = vadd.f32 0.0, %v1919
          %v1921 = vpop.f32.mrb[0].mxu0
          %v1922 = vpop.f32.mrb[0].mxu0
          %v1923 = vadd.f32 0.0, %v1922
          %v1924 = vpop.f32.mrb[0].mxu0
          %1925 = vdwg.mxu0
          %v1926 = vadd.f32 %v1870, %v1920
          %v1927 = vadd.f32 %v1871, %v1923
          %s1928 = sadd.s32 %s259, 4
          %s1929 = smul.u32 %s1928, 2
          %s1930 = smul.addr %s1929, 4
          %s1931 = scalar_lea.vmem %s230, %s1930
          %v1932 = vld [vmem:[%s1931] sm:$0xf]
          %v1933 = vld [vmem:[%s1931 + $0x4] sm:$0x1]
          %s1934 = scalar_lea.vmem %s1, 112
          %v1935 = vld [vmem:[%s1934] sm:$0xf]
          %v1938 = vunpack.c.l.b16 %v1932
          %v1939 = vunpack.c.l.b16 %v1933
          %v1940 = vpack.c.b16 %v1939, %v1938
          %v1942 = vsel %vm281, %v1940, 0
          %v1945 = vsel %vm285, %v1935, 0
          %1947 = vmatprep.subr.bf16.mxu0 0
          %1948 = vmatpush1.bf16.msra.mxu0 %v1945
          %1949 = vmatprep.subr.bf16.mxu0 0
          %1950 = vmatpush1.bf16.msra.mxu0 0
          %1951 = vmatprep.subr.bf16.mxu0 0
          %1952 = vmatpush1.bf16.msra.mxu0 0
          %1953 = vmatprep.subr.bf16.mxu0 0
          %1954 = vmatpush1.bf16.msra.mxu0 0
          %1955 = vmatprep.subr.bf16.mxu0 0
          %1956 = vmatpush1.bf16.msra.mxu0 0
          %1957 = vmatprep.subr.bf16.mxu0 0
          %1958 = vmatpush1.bf16.msra.mxu0 0
          %1959 = vmatprep.subr.bf16.mxu0 0
          %1960 = vmatpush1.bf16.msra.mxu0 0
          %1961 = vmatprep.subr.bf16.mxu0 0
          %1962 = vmatpush1.bf16.msra.mxu0 0
          %1963 = vmatprep.subr.bf16.mxu0 0
          %1964 = vmatpush1.bf16.msra.mxu0 0
          %1965 = vmatprep.subr.bf16.mxu0 0
          %1966 = vmatpush1.bf16.msra.mxu0 0
          %1967 = vmatprep.subr.bf16.mxu0 0
          %1968 = vmatpush1.bf16.msra.mxu0 0
          %1969 = vmatprep.subr.bf16.mxu0 0
          %1970 = vmatpush1.bf16.msra.mxu0 0
          %1971 = vmatprep.subr.bf16.mxu0 0
          %1972 = vmatpush1.bf16.msra.mxu0 0
          %1973 = vmatprep.subr.bf16.mxu0 0
          %1974 = vmatpush1.bf16.msra.mxu0 0
          %1975 = vmatprep.subr.bf16.mxu0 0
          %1976 = vmatpush1.bf16.msra.mxu0 0
          %1977 = vmatprep.subr.bf16.mxu0 0
          %1978 = vmatpush1.bf16.msra.mxu0 0
          %1979 = vmatprep.mubr.bf16.mxu0 0
          %1980 = vmatmul.mubr.bf16.gmra.mrb[0].mxu0 %v1942
          %v1981 = vpop.f32.mrb[0].mxu0
          %v1982 = vadd.f32 0.0, %v1981
          %v1983 = vpop.f32.mrb[0].mxu0
          %v1984 = vpop.f32.mrb[0].mxu0
          %v1985 = vadd.f32 0.0, %v1984
          %v1986 = vpop.f32.mrb[0].mxu0
          %1987 = vdwg.mxu0
          %v1988 = vadd.f32 %v1926, %v1982
          %v1989 = vadd.f32 %v1927, %v1985
          %v1990 = vld [vmem:[%s1931 + $0x4] sm:$0x3]
          %s1991 = scalar_lea.vmem %s1, 116
          %v1992 = vld [vmem:[%s1991] sm:$0xf]
          %v1994 = vunpack.c.l.b16 %v1990
          %v1995 = vpack.c.b16 %v1994, %v1938
          %v1997 = vshrl.u32 %v1995, 16
          %v1999 = vshll.u32 %v1995, 16
          %v2001 = vrot.slane %v1999, 1
          %v2002 = vor.u32 %v1997, %v2001
          %v2004 = vsel %vm281, %v2002, 0
          %v2007 = vsel %vm285, %v1992, 0
          %2009 = vmatprep.subr.bf16.mxu0 0
          %2010 = vmatpush1.bf16.msra.mxu0 %v2007
          %2011 = vmatprep.subr.bf16.mxu0 0
          %2012 = vmatpush1.bf16.msra.mxu0 0
          %2013 = vmatprep.subr.bf16.mxu0 0
          %2014 = vmatpush1.bf16.msra.mxu0 0
          %2015 = vmatprep.subr.bf16.mxu0 0
          %2016 = vmatpush1.bf16.msra.mxu0 0
          %2017 = vmatprep.subr.bf16.mxu0 0
          %2018 = vmatpush1.bf16.msra.mxu0 0
          %2019 = vmatprep.subr.bf16.mxu0 0
          %2020 = vmatpush1.bf16.msra.mxu0 0
          %2021 = vmatprep.subr.bf16.mxu0 0
          %2022 = vmatpush1.bf16.msra.mxu0 0
          %2023 = vmatprep.subr.bf16.mxu0 0
          %2024 = vmatpush1.bf16.msra.mxu0 0
          %2025 = vmatprep.subr.bf16.mxu0 0
          %2026 = vmatpush1.bf16.msra.mxu0 0
          %2027 = vmatprep.subr.bf16.mxu0 0
          %2028 = vmatpush1.bf16.msra.mxu0 0
          %2029 = vmatprep.subr.bf16.mxu0 0
          %2030 = vmatpush1.bf16.msra.mxu0 0
          %2031 = vmatprep.subr.bf16.mxu0 0
          %2032 = vmatpush1.bf16.msra.mxu0 0
          %2033 = vmatprep.subr.bf16.mxu0 0
          %2034 = vmatpush1.bf16.msra.mxu0 0
          %2035 = vmatprep.subr.bf16.mxu0 0
          %2036 = vmatpush1.bf16.msra.mxu0 0
          %2037 = vmatprep.subr.bf16.mxu0 0
          %2038 = vmatpush1.bf16.msra.mxu0 0
          %2039 = vmatprep.subr.bf16.mxu0 0
          %2040 = vmatpush1.bf16.msra.mxu0 0
          %2041 = vmatprep.mubr.bf16.mxu0 0
          %2042 = vmatmul.mubr.bf16.gmra.mrb[0].mxu0 %v2004
          %v2043 = vpop.f32.mrb[0].mxu0
          %v2044 = vadd.f32 0.0, %v2043
          %v2045 = vpop.f32.mrb[0].mxu0
          %v2046 = vpop.f32.mrb[0].mxu0
          %v2047 = vadd.f32 0.0, %v2046
          %v2048 = vpop.f32.mrb[0].mxu0
          %2049 = vdwg.mxu0
          %v2050 = vadd.f32 %v1988, %v2044
          %v2051 = vadd.f32 %v1989, %v2047
          %v2052 = vld [vmem:[%s1931] sm:$0xe]
          %s2053 = scalar_lea.vmem %s1, 120
          %v2054 = vld [vmem:[%s2053] sm:$0xf]
          %v2056 = vunpack.c.l.b16 %v2052
          %v2057 = vpack.c.b16 %v1994, %v2056
          %v2058 = vrot.slane %v2057, 1
          %v2060 = vsel %vm281, %v2058, 0
          %v2063 = vsel %vm285, %v2054, 0
          %2065 = vmatprep.subr.bf16.mxu0 0
          %2066 = vmatpush1.bf16.msra.mxu0 %v2063
          %2067 = vmatprep.subr.bf16.mxu0 0
          %2068 = vmatpush1.bf16.msra.mxu0 0
          %2069 = vmatprep.subr.bf16.mxu0 0
          %2070 = vmatpush1.bf16.msra.mxu0 0
          %2071 = vmatprep.subr.bf16.mxu0 0
          %2072 = vmatpush1.bf16.msra.mxu0 0
          %2073 = vmatprep.subr.bf16.mxu0 0
          %2074 = vmatpush1.bf16.msra.mxu0 0
          %2075 = vmatprep.subr.bf16.mxu0 0
          %2076 = vmatpush1.bf16.msra.mxu0 0
          %2077 = vmatprep.subr.bf16.mxu0 0
          %2078 = vmatpush1.bf16.msra.mxu0 0
          %2079 = vmatprep.subr.bf16.mxu0 0
          %2080 = vmatpush1.bf16.msra.mxu0 0
          %2081 = vmatprep.subr.bf16.mxu0 0
          %2082 = vmatpush1.bf16.msra.mxu0 0
          %2083 = vmatprep.subr.bf16.mxu0 0
          %2084 = vmatpush1.bf16.msra.mxu0 0
          %2085 = vmatprep.subr.bf16.mxu0 0
          %2086 = vmatpush1.bf16.msra.mxu0 0
          %2087 = vmatprep.subr.bf16.mxu0 0
          %2088 = vmatpush1.bf16.msra.mxu0 0
          %2089 = vmatprep.subr.bf16.mxu0 0
          %2090 = vmatpush1.bf16.msra.mxu0 0
          %2091 = vmatprep.subr.bf16.mxu0 0
          %2092 = vmatpush1.bf16.msra.mxu0 0
          %2093 = vmatprep.subr.bf16.mxu0 0
          %2094 = vmatpush1.bf16.msra.mxu0 0
          %2095 = vmatprep.subr.bf16.mxu0 0
          %2096 = vmatpush1.bf16.msra.mxu0 0
          %2097 = vmatprep.mubr.bf16.mxu0 0
          %2098 = vmatmul.mubr.bf16.gmra.mrb[0].mxu0 %v2060
          %v2099 = vpop.f32.mrb[0].mxu0
          %v2100 = vadd.f32 0.0, %v2099
          %v2101 = vpop.f32.mrb[0].mxu0
          %v2102 = vpop.f32.mrb[0].mxu0
          %v2103 = vadd.f32 0.0, %v2102
          %v2104 = vpop.f32.mrb[0].mxu0
          %2105 = vdwg.mxu0
          %v2106 = vadd.f32 %v2050, %v2100
          %v2107 = vadd.f32 %v2051, %v2103
          %v2108 = vld [vmem:[%s1931 + $0x4] sm:$0x7]
          %s2109 = scalar_lea.vmem %s1, 124
          %v2110 = vld [vmem:[%s2109] sm:$0xf]
          %v2112 = vunpack.c.l.b16 %v2108
          %v2113 = vpack.c.b16 %v2112, %v2056
          %v2115 = vshrl.u32 %v2113, 16
          %v2117 = vrot.slane %v2115, 1
          %v2118 = vshll.u32 %v2113, 16
          %v2120 = vrot.slane %v2118, 2
          %v2121 = vor.u32 %v2117, %v2120
          %v2123 = vsel %vm281, %v2121, 0
          %v2126 = vsel %vm285, %v2110, 0
          %2128 = vmatprep.subr.bf16.mxu0 0
          %2129 = vmatpush1.bf16.msra.mxu0 %v2126
          %2130 = vmatprep.subr.bf16.mxu0 0
          %2131 = vmatpush1.bf16.msra.mxu0 0
          %2132 = vmatprep.subr.bf16.mxu0 0
          %2133 = vmatpush1.bf16.msra.mxu0 0
          %2134 = vmatprep.subr.bf16.mxu0 0
          %2135 = vmatpush1.bf16.msra.mxu0 0
          %2136 = vmatprep.subr.bf16.mxu0 0
          %2137 = vmatpush1.bf16.msra.mxu0 0
          %2138 = vmatprep.subr.bf16.mxu0 0
          %2139 = vmatpush1.bf16.msra.mxu0 0
          %2140 = vmatprep.subr.bf16.mxu0 0
          %2141 = vmatpush1.bf16.msra.mxu0 0
          %2142 = vmatprep.subr.bf16.mxu0 0
          %2143 = vmatpush1.bf16.msra.mxu0 0
          %2144 = vmatprep.subr.bf16.mxu0 0
          %2145 = vmatpush1.bf16.msra.mxu0 0
          %2146 = vmatprep.subr.bf16.mxu0 0
          %2147 = vmatpush1.bf16.msra.mxu0 0
          %2148 = vmatprep.subr.bf16.mxu0 0
          %2149 = vmatpush1.bf16.msra.mxu0 0
          %2150 = vmatprep.subr.bf16.mxu0 0
          %2151 = vmatpush1.bf16.msra.mxu0 0
          %2152 = vmatprep.subr.bf16.mxu0 0
          %2153 = vmatpush1.bf16.msra.mxu0 0
          %2154 = vmatprep.subr.bf16.mxu0 0
          %2155 = vmatpush1.bf16.msra.mxu0 0
          %2156 = vmatprep.subr.bf16.mxu0 0
          %2157 = vmatpush1.bf16.msra.mxu0 0
          %2158 = vmatprep.subr.bf16.mxu0 0
          %2159 = vmatpush1.bf16.msra.mxu0 0
          %2160 = vmatprep.mubr.bf16.mxu0 0
          %2161 = vmatmul.mubr.bf16.gmra.mrb[0].mxu0 %v2123
          %v2162 = vpop.f32.mrb[0].mxu0
          %v2163 = vadd.f32 0.0, %v2162
          %v2164 = vpop.f32.mrb[0].mxu0
          %v2165 = vpop.f32.mrb[0].mxu0
          %v2166 = vadd.f32 0.0, %v2165
          %v2167 = vpop.f32.mrb[0].mxu0
          %2168 = vdwg.mxu0
          %v2169 = vadd.f32 %v2106, %v2163
          %v2170 = vadd.f32 %v2107, %v2166
          %v2171 = vld [vmem:[%s1931] sm:$0xc]
          %s2172 = scalar_lea.vmem %s1, 128
          %v2173 = vld [vmem:[%s2172] sm:$0xf]
          %v2175 = vunpack.c.l.b16 %v2171
          %v2176 = vpack.c.b16 %v2112, %v2175
          %v2177 = vrot.slane %v2176, 2
          %v2179 = vsel %vm281, %v2177, 0
          %v2182 = vsel %vm285, %v2173, 0
          %2184 = vmatprep.subr.bf16.mxu0 0
          %2185 = vmatpush1.bf16.msra.mxu0 %v2182
          %2186 = vmatprep.subr.bf16.mxu0 0
          %2187 = vmatpush1.bf16.msra.mxu0 0
          %2188 = vmatprep.subr.bf16.mxu0 0
          %2189 = vmatpush1.bf16.msra.mxu0 0
          %2190 = vmatprep.subr.bf16.mxu0 0
          %2191 = vmatpush1.bf16.msra.mxu0 0
          %2192 = vmatprep.subr.bf16.mxu0 0
          %2193 = vmatpush1.bf16.msra.mxu0 0
          %2194 = vmatprep.subr.bf16.mxu0 0
          %2195 = vmatpush1.bf16.msra.mxu0 0
          %2196 = vmatprep.subr.bf16.mxu0 0
          %2197 = vmatpush1.bf16.msra.mxu0 0
          %2198 = vmatprep.subr.bf16.mxu0 0
          %2199 = vmatpush1.bf16.msra.mxu0 0
          %2200 = vmatprep.subr.bf16.mxu0 0
          %2201 = vmatpush1.bf16.msra.mxu0 0
          %2202 = vmatprep.subr.bf16.mxu0 0
          %2203 = vmatpush1.bf16.msra.mxu0 0
          %2204 = vmatprep.subr.bf16.mxu0 0
          %2205 = vmatpush1.bf16.msra.mxu0 0
          %2206 = vmatprep.subr.bf16.mxu0 0
          %2207 = vmatpush1.bf16.msra.mxu0 0
          %2208 = vmatprep.subr.bf16.mxu0 0
          %2209 = vmatpush1.bf16.msra.mxu0 0
          %2210 = vmatprep.subr.bf16.mxu0 0
          %2211 = vmatpush1.bf16.msra.mxu0 0
          %2212 = vmatprep.subr.bf16.mxu0 0
          %2213 = vmatpush1.bf16.msra.mxu0 0
          %2214 = vmatprep.subr.bf16.mxu0 0
          %2215 = vmatpush1.bf16.msra.mxu0 0
          %2216 = vmatprep.mubr.bf16.mxu0 0
          %2217 = vmatmul.mubr.bf16.gmra.mrb[0].mxu0 %v2179
          %v2218 = vpop.f32.mrb[0].mxu0
          %v2219 = vadd.f32 0.0, %v2218
          %v2220 = vpop.f32.mrb[0].mxu0
          %v2221 = vpop.f32.mrb[0].mxu0
          %v2222 = vadd.f32 0.0, %v2221
          %v2223 = vpop.f32.mrb[0].mxu0
          %2224 = vdwg.mxu0
          %v2225 = vadd.f32 %v2169, %v2219
          %v2226 = vadd.f32 %v2170, %v2222
          %v2227 = vld [vmem:[%s1931 + $0x4] sm:$0xf]
          %s2228 = scalar_lea.vmem %s1, 132
          %v2229 = vld [vmem:[%s2228] sm:$0xf]
          %v2231 = vunpack.c.l.b16 %v2227
          %v2232 = vpack.c.b16 %v2231, %v2175
          %v2234 = vshrl.u32 %v2232, 16
          %v2236 = vrot.slane %v2234, 2
          %v2237 = vshll.u32 %v2232, 16
          %v2239 = vrot.slane %v2237, 3
          %v2240 = vor.u32 %v2236, %v2239
          %v2242 = vsel %vm281, %v2240, 0
          %v2245 = vsel %vm285, %v2229, 0
          %2247 = vmatprep.subr.bf16.mxu0 0
          %2248 = vmatpush1.bf16.msra.mxu0 %v2245
          %2249 = vmatprep.subr.bf16.mxu0 0
          %2250 = vmatpush1.bf16.msra.mxu0 0
          %2251 = vmatprep.subr.bf16.mxu0 0
          %2252 = vmatpush1.bf16.msra.mxu0 0
          %2253 = vmatprep.subr.bf16.mxu0 0
          %2254 = vmatpush1.bf16.msra.mxu0 0
          %2255 = vmatprep.subr.bf16.mxu0 0
          %2256 = vmatpush1.bf16.msra.mxu0 0
          %2257 = vmatprep.subr.bf16.mxu0 0
          %2258 = vmatpush1.bf16.msra.mxu0 0
          %2259 = vmatprep.subr.bf16.mxu0 0
          %2260 = vmatpush1.bf16.msra.mxu0 0
          %2261 = vmatprep.subr.bf16.mxu0 0
          %2262 = vmatpush1.bf16.msra.mxu0 0
          %2263 = vmatprep.subr.bf16.mxu0 0
          %2264 = vmatpush1.bf16.msra.mxu0 0
          %2265 = vmatprep.subr.bf16.mxu0 0
          %2266 = vmatpush1.bf16.msra.mxu0 0
          %2267 = vmatprep.subr.bf16.mxu0 0
          %2268 = vmatpush1.bf16.msra.mxu0 0
          %2269 = vmatprep.subr.bf16.mxu0 0
          %2270 = vmatpush1.bf16.msra.mxu0 0
          %2271 = vmatprep.subr.bf16.mxu0 0
          %2272 = vmatpush1.bf16.msra.mxu0 0
          %2273 = vmatprep.subr.bf16.mxu0 0
          %2274 = vmatpush1.bf16.msra.mxu0 0
          %2275 = vmatprep.subr.bf16.mxu0 0
          %2276 = vmatpush1.bf16.msra.mxu0 0
          %2277 = vmatprep.subr.bf16.mxu0 0
          %2278 = vmatpush1.bf16.msra.mxu0 0
          %2279 = vmatprep.mubr.bf16.mxu0 0
          %2280 = vmatmul.mubr.bf16.gmra.mrb[0].mxu0 %v2242
          %v2281 = vpop.f32.mrb[0].mxu0
          %v2282 = vadd.f32 0.0, %v2281
          %v2283 = vpop.f32.mrb[0].mxu0
          %v2284 = vpop.f32.mrb[0].mxu0
          %v2285 = vadd.f32 0.0, %v2284
          %v2286 = vpop.f32.mrb[0].mxu0
          %2287 = vdwg.mxu0
          %v2288 = vadd.f32 %v2225, %v2282
          %v2289 = vadd.f32 %v2226, %v2285
          %v2290 = vld [vmem:[%s1931] sm:$0x8]
          %s2291 = scalar_lea.vmem %s1, 136
          %v2292 = vld [vmem:[%s2291] sm:$0xf]
          %v2294 = vunpack.c.l.b16 %v2290
          %v2295 = vpack.c.b16 %v2231, %v2294
          %v2296 = vrot.slane %v2295, 3
          %v2298 = vsel %vm281, %v2296, 0
          %v2301 = vsel %vm285, %v2292, 0
          %2303 = vmatprep.subr.bf16.mxu0 0
          %2304 = vmatpush1.bf16.msra.mxu0 %v2301
          %2305 = vmatprep.subr.bf16.mxu0 0
          %2306 = vmatpush1.bf16.msra.mxu0 0
          %2307 = vmatprep.subr.bf16.mxu0 0
          %2308 = vmatpush1.bf16.msra.mxu0 0
          %2309 = vmatprep.subr.bf16.mxu0 0
          %2310 = vmatpush1.bf16.msra.mxu0 0
          %2311 = vmatprep.subr.bf16.mxu0 0
          %2312 = vmatpush1.bf16.msra.mxu0 0
          %2313 = vmatprep.subr.bf16.mxu0 0
          %2314 = vmatpush1.bf16.msra.mxu0 0
          %2315 = vmatprep.subr.bf16.mxu0 0
          %2316 = vmatpush1.bf16.msra.mxu0 0
          %2317 = vmatprep.subr.bf16.mxu0 0
          %2318 = vmatpush1.bf16.msra.mxu0 0
          %2319 = vmatprep.subr.bf16.mxu0 0
          %2320 = vmatpush1.bf16.msra.mxu0 0
          %2321 = vmatprep.subr.bf16.mxu0 0
          %2322 = vmatpush1.bf16.msra.mxu0 0
          %2323 = vmatprep.subr.bf16.mxu0 0
          %2324 = vmatpush1.bf16.msra.mxu0 0
          %2325 = vmatprep.subr.bf16.mxu0 0
          %2326 = vmatpush1.bf16.msra.mxu0 0
          %2327 = vmatprep.subr.bf16.mxu0 0
          %2328 = vmatpush1.bf16.msra.mxu0 0
          %2329 = vmatprep.subr.bf16.mxu0 0
          %2330 = vmatpush1.bf16.msra.mxu0 0
          %2331 = vmatprep.subr.bf16.mxu0 0
          %2332 = vmatpush1.bf16.msra.mxu0 0
          %2333 = vmatprep.subr.bf16.mxu0 0
          %2334 = vmatpush1.bf16.msra.mxu0 0
          %2335 = vmatprep.mubr.bf16.mxu0 0
          %2336 = vmatmul.mubr.bf16.gmra.mrb[0].mxu0 %v2298
          %v2337 = vpop.f32.mrb[0].mxu0
          %v2338 = vadd.f32 0.0, %v2337
          %v2339 = vpop.f32.mrb[0].mxu0
          %v2340 = vpop.f32.mrb[0].mxu0
          %v2341 = vadd.f32 0.0, %v2340
          %v2342 = vpop.f32.mrb[0].mxu0
          %2343 = vdwg.mxu0
          %v2344 = vadd.f32 %v2288, %v2338
          %v2345 = vadd.f32 %v2289, %v2341
          %s2346 = sadd.s32 %s259, 5
          %s2347 = smul.u32 %s2346, 2
          %s2348 = smul.addr %s2347, 4
          %s2349 = scalar_lea.vmem %s230, %s2348
          %v2350 = vld [vmem:[%s2349] sm:$0xf]
          %v2351 = vld [vmem:[%s2349 + $0x4] sm:$0x1]
          %s2352 = scalar_lea.vmem %s1, 140
          %v2353 = vld [vmem:[%s2352] sm:$0xf]
          %v2356 = vunpack.c.l.b16 %v2350
          %v2357 = vunpack.c.l.b16 %v2351
          %v2358 = vpack.c.b16 %v2357, %v2356
          %v2360 = vsel %vm281, %v2358, 0
          %v2363 = vsel %vm285, %v2353, 0
          %2365 = vmatprep.subr.bf16.mxu0 0
          %2366 = vmatpush1.bf16.msra.mxu0 %v2363
          %2367 = vmatprep.subr.bf16.mxu0 0
          %2368 = vmatpush1.bf16.msra.mxu0 0
          %2369 = vmatprep.subr.bf16.mxu0 0
          %2370 = vmatpush1.bf16.msra.mxu0 0
          %2371 = vmatprep.subr.bf16.mxu0 0
          %2372 = vmatpush1.bf16.msra.mxu0 0
          %2373 = vmatprep.subr.bf16.mxu0 0
          %2374 = vmatpush1.bf16.msra.mxu0 0
          %2375 = vmatprep.subr.bf16.mxu0 0
          %2376 = vmatpush1.bf16.msra.mxu0 0
          %2377 = vmatprep.subr.bf16.mxu0 0
          %2378 = vmatpush1.bf16.msra.mxu0 0
          %2379 = vmatprep.subr.bf16.mxu0 0
          %2380 = vmatpush1.bf16.msra.mxu0 0
          %2381 = vmatprep.subr.bf16.mxu0 0
          %2382 = vmatpush1.bf16.msra.mxu0 0
          %2383 = vmatprep.subr.bf16.mxu0 0
          %2384 = vmatpush1.bf16.msra.mxu0 0
          %2385 = vmatprep.subr.bf16.mxu0 0
          %2386 = vmatpush1.bf16.msra.mxu0 0
          %2387 = vmatprep.subr.bf16.mxu0 0
          %2388 = vmatpush1.bf16.msra.mxu0 0
          %2389 = vmatprep.subr.bf16.mxu0 0
          %2390 = vmatpush1.bf16.msra.mxu0 0
          %2391 = vmatprep.subr.bf16.mxu0 0
          %2392 = vmatpush1.bf16.msra.mxu0 0
          %2393 = vmatprep.subr.bf16.mxu0 0
          %2394 = vmatpush1.bf16.msra.mxu0 0
          %2395 = vmatprep.subr.bf16.mxu0 0
          %2396 = vmatpush1.bf16.msra.mxu0 0
          %2397 = vmatprep.mubr.bf16.mxu0 0
          %2398 = vmatmul.mubr.bf16.gmra.mrb[0].mxu0 %v2360
          %v2399 = vpop.f32.mrb[0].mxu0
          %v2400 = vadd.f32 0.0, %v2399
          %v2401 = vpop.f32.mrb[0].mxu0
          %v2402 = vpop.f32.mrb[0].mxu0
          %v2403 = vadd.f32 0.0, %v2402
          %v2404 = vpop.f32.mrb[0].mxu0
          %2405 = vdwg.mxu0
          %v2406 = vadd.f32 %v2344, %v2400
          %v2407 = vadd.f32 %v2345, %v2403
          %v2408 = vld [vmem:[%s2349 + $0x4] sm:$0x3]
          %s2409 = scalar_lea.vmem %s1, 144
          %v2410 = vld [vmem:[%s2409] sm:$0xf]
          %v2412 = vunpack.c.l.b16 %v2408
          %v2413 = vpack.c.b16 %v2412, %v2356
          %v2415 = vshrl.u32 %v2413, 16
          %v2417 = vshll.u32 %v2413, 16
          %v2419 = vrot.slane %v2417, 1
          %v2420 = vor.u32 %v2415, %v2419
          %v2422 = vsel %vm281, %v2420, 0
          %v2425 = vsel %vm285, %v2410, 0
          %2427 = vmatprep.subr.bf16.mxu0 0
          %2428 = vmatpush1.bf16.msra.mxu0 %v2425
          %2429 = vmatprep.subr.bf16.mxu0 0
          %2430 = vmatpush1.bf16.msra.mxu0 0
          %2431 = vmatprep.subr.bf16.mxu0 0
          %2432 = vmatpush1.bf16.msra.mxu0 0
          %2433 = vmatprep.subr.bf16.mxu0 0
          %2434 = vmatpush1.bf16.msra.mxu0 0
          %2435 = vmatprep.subr.bf16.mxu0 0
          %2436 = vmatpush1.bf16.msra.mxu0 0
          %2437 = vmatprep.subr.bf16.mxu0 0
          %2438 = vmatpush1.bf16.msra.mxu0 0
          %2439 = vmatprep.subr.bf16.mxu0 0
          %2440 = vmatpush1.bf16.msra.mxu0 0
          %2441 = vmatprep.subr.bf16.mxu0 0
          %2442 = vmatpush1.bf16.msra.mxu0 0
          %2443 = vmatprep.subr.bf16.mxu0 0
          %2444 = vmatpush1.bf16.msra.mxu0 0
          %2445 = vmatprep.subr.bf16.mxu0 0
          %2446 = vmatpush1.bf16.msra.mxu0 0
          %2447 = vmatprep.subr.bf16.mxu0 0
          %2448 = vmatpush1.bf16.msra.mxu0 0
          %2449 = vmatprep.subr.bf16.mxu0 0
          %2450 = vmatpush1.bf16.msra.mxu0 0
          %2451 = vmatprep.subr.bf16.mxu0 0
          %2452 = vmatpush1.bf16.msra.mxu0 0
          %2453 = vmatprep.subr.bf16.mxu0 0
          %2454 = vmatpush1.bf16.msra.mxu0 0
          %2455 = vmatprep.subr.bf16.mxu0 0
          %2456 = vmatpush1.bf16.msra.mxu0 0
          %2457 = vmatprep.subr.bf16.mxu0 0
          %2458 = vmatpush1.bf16.msra.mxu0 0
          %2459 = vmatprep.mubr.bf16.mxu0 0
          %2460 = vmatmul.mubr.bf16.gmra.mrb[0].mxu0 %v2422
          %v2461 = vpop.f32.mrb[0].mxu0
          %v2462 = vadd.f32 0.0, %v2461
          %v2463 = vpop.f32.mrb[0].mxu0
          %v2464 = vpop.f32.mrb[0].mxu0
          %v2465 = vadd.f32 0.0, %v2464
          %v2466 = vpop.f32.mrb[0].mxu0
          %2467 = vdwg.mxu0
          %v2468 = vadd.f32 %v2406, %v2462
          %v2469 = vadd.f32 %v2407, %v2465
          %v2470 = vld [vmem:[%s2349] sm:$0xe]
          %s2471 = scalar_lea.vmem %s1, 148
          %v2472 = vld [vmem:[%s2471] sm:$0xf]
          %v2474 = vunpack.c.l.b16 %v2470
          %v2475 = vpack.c.b16 %v2412, %v2474
          %v2476 = vrot.slane %v2475, 1
          %v2478 = vsel %vm281, %v2476, 0
          %v2481 = vsel %vm285, %v2472, 0
          %2483 = vmatprep.subr.bf16.mxu0 0
          %2484 = vmatpush1.bf16.msra.mxu0 %v2481
          %2485 = vmatprep.subr.bf16.mxu0 0
          %2486 = vmatpush1.bf16.msra.mxu0 0
          %2487 = vmatprep.subr.bf16.mxu0 0
          %2488 = vmatpush1.bf16.msra.mxu0 0
          %2489 = vmatprep.subr.bf16.mxu0 0
          %2490 = vmatpush1.bf16.msra.mxu0 0
          %2491 = vmatprep.subr.bf16.mxu0 0
          %2492 = vmatpush1.bf16.msra.mxu0 0
          %2493 = vmatprep.subr.bf16.mxu0 0
          %2494 = vmatpush1.bf16.msra.mxu0 0
          %2495 = vmatprep.subr.bf16.mxu0 0
          %2496 = vmatpush1.bf16.msra.mxu0 0
          %2497 = vmatprep.subr.bf16.mxu0 0
          %2498 = vmatpush1.bf16.msra.mxu0 0
          %2499 = vmatprep.subr.bf16.mxu0 0
          %2500 = vmatpush1.bf16.msra.mxu0 0
          %2501 = vmatprep.subr.bf16.mxu0 0
          %2502 = vmatpush1.bf16.msra.mxu0 0
          %2503 = vmatprep.subr.bf16.mxu0 0
          %2504 = vmatpush1.bf16.msra.mxu0 0
          %2505 = vmatprep.subr.bf16.mxu0 0
          %2506 = vmatpush1.bf16.msra.mxu0 0
          %2507 = vmatprep.subr.bf16.mxu0 0
          %2508 = vmatpush1.bf16.msra.mxu0 0
          %2509 = vmatprep.subr.bf16.mxu0 0
          %2510 = vmatpush1.bf16.msra.mxu0 0
          %2511 = vmatprep.subr.bf16.mxu0 0
          %2512 = vmatpush1.bf16.msra.mxu0 0
          %2513 = vmatprep.subr.bf16.mxu0 0
          %2514 = vmatpush1.bf16.msra.mxu0 0
          %2515 = vmatprep.mubr.bf16.mxu0 0
          %2516 = vmatmul.mubr.bf16.gmra.mrb[0].mxu0 %v2478
          %v2517 = vpop.f32.mrb[0].mxu0
          %v2518 = vadd.f32 0.0, %v2517
          %v2519 = vpop.f32.mrb[0].mxu0
          %v2520 = vpop.f32.mrb[0].mxu0
          %v2521 = vadd.f32 0.0, %v2520
          %v2522 = vpop.f32.mrb[0].mxu0
          %2523 = vdwg.mxu0
          %v2524 = vadd.f32 %v2468, %v2518
          %v2525 = vadd.f32 %v2469, %v2521
          %v2526 = vld [vmem:[%s2349 + $0x4] sm:$0x7]
          %s2527 = scalar_lea.vmem %s1, 152
          %v2528 = vld [vmem:[%s2527] sm:$0xf]
          %v2530 = vunpack.c.l.b16 %v2526
          %v2531 = vpack.c.b16 %v2530, %v2474
          %v2533 = vshrl.u32 %v2531, 16
          %v2535 = vrot.slane %v2533, 1
          %v2536 = vshll.u32 %v2531, 16
          %v2538 = vrot.slane %v2536, 2
          %v2539 = vor.u32 %v2535, %v2538
          %v2541 = vsel %vm281, %v2539, 0
          %v2544 = vsel %vm285, %v2528, 0
          %2546 = vmatprep.subr.bf16.mxu0 0
          %2547 = vmatpush1.bf16.msra.mxu0 %v2544
          %2548 = vmatprep.subr.bf16.mxu0 0
          %2549 = vmatpush1.bf16.msra.mxu0 0
          %2550 = vmatprep.subr.bf16.mxu0 0
          %2551 = vmatpush1.bf16.msra.mxu0 0
          %2552 = vmatprep.subr.bf16.mxu0 0
          %2553 = vmatpush1.bf16.msra.mxu0 0
          %2554 = vmatprep.subr.bf16.mxu0 0
          %2555 = vmatpush1.bf16.msra.mxu0 0
          %2556 = vmatprep.subr.bf16.mxu0 0
          %2557 = vmatpush1.bf16.msra.mxu0 0
          %2558 = vmatprep.subr.bf16.mxu0 0
          %2559 = vmatpush1.bf16.msra.mxu0 0
          %2560 = vmatprep.subr.bf16.mxu0 0
          %2561 = vmatpush1.bf16.msra.mxu0 0
          %2562 = vmatprep.subr.bf16.mxu0 0
          %2563 = vmatpush1.bf16.msra.mxu0 0
          %2564 = vmatprep.subr.bf16.mxu0 0
          %2565 = vmatpush1.bf16.msra.mxu0 0
          %2566 = vmatprep.subr.bf16.mxu0 0
          %2567 = vmatpush1.bf16.msra.mxu0 0
          %2568 = vmatprep.subr.bf16.mxu0 0
          %2569 = vmatpush1.bf16.msra.mxu0 0
          %2570 = vmatprep.subr.bf16.mxu0 0
          %2571 = vmatpush1.bf16.msra.mxu0 0
          %2572 = vmatprep.subr.bf16.mxu0 0
          %2573 = vmatpush1.bf16.msra.mxu0 0
          %2574 = vmatprep.subr.bf16.mxu0 0
          %2575 = vmatpush1.bf16.msra.mxu0 0
          %2576 = vmatprep.subr.bf16.mxu0 0
          %2577 = vmatpush1.bf16.msra.mxu0 0
          %2578 = vmatprep.mubr.bf16.mxu0 0
          %2579 = vmatmul.mubr.bf16.gmra.mrb[0].mxu0 %v2541
          %v2580 = vpop.f32.mrb[0].mxu0
          %v2581 = vadd.f32 0.0, %v2580
          %v2582 = vpop.f32.mrb[0].mxu0
          %v2583 = vpop.f32.mrb[0].mxu0
          %v2584 = vadd.f32 0.0, %v2583
          %v2585 = vpop.f32.mrb[0].mxu0
          %2586 = vdwg.mxu0
          %v2587 = vadd.f32 %v2524, %v2581
          %v2588 = vadd.f32 %v2525, %v2584
          %v2589 = vld [vmem:[%s2349] sm:$0xc]
          %s2590 = scalar_lea.vmem %s1, 156
          %v2591 = vld [vmem:[%s2590] sm:$0xf]
          %v2593 = vunpack.c.l.b16 %v2589
          %v2594 = vpack.c.b16 %v2530, %v2593
          %v2595 = vrot.slane %v2594, 2
          %v2597 = vsel %vm281, %v2595, 0
          %v2600 = vsel %vm285, %v2591, 0
          %2602 = vmatprep.subr.bf16.mxu0 0
          %2603 = vmatpush1.bf16.msra.mxu0 %v2600
          %2604 = vmatprep.subr.bf16.mxu0 0
          %2605 = vmatpush1.bf16.msra.mxu0 0
          %2606 = vmatprep.subr.bf16.mxu0 0
          %2607 = vmatpush1.bf16.msra.mxu0 0
          %2608 = vmatprep.subr.bf16.mxu0 0
          %2609 = vmatpush1.bf16.msra.mxu0 0
          %2610 = vmatprep.subr.bf16.mxu0 0
          %2611 = vmatpush1.bf16.msra.mxu0 0
          %2612 = vmatprep.subr.bf16.mxu0 0
          %2613 = vmatpush1.bf16.msra.mxu0 0
          %2614 = vmatprep.subr.bf16.mxu0 0
          %2615 = vmatpush1.bf16.msra.mxu0 0
          %2616 = vmatprep.subr.bf16.mxu0 0
          %2617 = vmatpush1.bf16.msra.mxu0 0
          %2618 = vmatprep.subr.bf16.mxu0 0
          %2619 = vmatpush1.bf16.msra.mxu0 0
          %2620 = vmatprep.subr.bf16.mxu0 0
          %2621 = vmatpush1.bf16.msra.mxu0 0
          %2622 = vmatprep.subr.bf16.mxu0 0
          %2623 = vmatpush1.bf16.msra.mxu0 0
          %2624 = vmatprep.subr.bf16.mxu0 0
          %2625 = vmatpush1.bf16.msra.mxu0 0
          %2626 = vmatprep.subr.bf16.mxu0 0
          %2627 = vmatpush1.bf16.msra.mxu0 0
          %2628 = vmatprep.subr.bf16.mxu0 0
          %2629 = vmatpush1.bf16.msra.mxu0 0
          %2630 = vmatprep.subr.bf16.mxu0 0
          %2631 = vmatpush1.bf16.msra.mxu0 0
          %2632 = vmatprep.subr.bf16.mxu0 0
          %2633 = vmatpush1.bf16.msra.mxu0 0
          %2634 = vmatprep.mubr.bf16.mxu0 0
          %2635 = vmatmul.mubr.bf16.gmra.mrb[0].mxu0 %v2597
          %v2636 = vpop.f32.mrb[0].mxu0
          %v2637 = vadd.f32 0.0, %v2636
          %v2638 = vpop.f32.mrb[0].mxu0
          %v2639 = vpop.f32.mrb[0].mxu0
          %v2640 = vadd.f32 0.0, %v2639
          %v2641 = vpop.f32.mrb[0].mxu0
          %2642 = vdwg.mxu0
          %v2643 = vadd.f32 %v2587, %v2637
          %v2644 = vadd.f32 %v2588, %v2640
          %v2645 = vld [vmem:[%s2349 + $0x4] sm:$0xf]
          %s2646 = scalar_lea.vmem %s1, 160
          %v2647 = vld [vmem:[%s2646] sm:$0xf]
          %v2649 = vunpack.c.l.b16 %v2645
          %v2650 = vpack.c.b16 %v2649, %v2593
          %v2652 = vshrl.u32 %v2650, 16
          %v2654 = vrot.slane %v2652, 2
          %v2655 = vshll.u32 %v2650, 16
          %v2657 = vrot.slane %v2655, 3
          %v2658 = vor.u32 %v2654, %v2657
          %v2660 = vsel %vm281, %v2658, 0
          %v2663 = vsel %vm285, %v2647, 0
          %2665 = vmatprep.subr.bf16.mxu0 0
          %2666 = vmatpush1.bf16.msra.mxu0 %v2663
          %2667 = vmatprep.subr.bf16.mxu0 0
          %2668 = vmatpush1.bf16.msra.mxu0 0
          %2669 = vmatprep.subr.bf16.mxu0 0
          %2670 = vmatpush1.bf16.msra.mxu0 0
          %2671 = vmatprep.subr.bf16.mxu0 0
          %2672 = vmatpush1.bf16.msra.mxu0 0
          %2673 = vmatprep.subr.bf16.mxu0 0
          %2674 = vmatpush1.bf16.msra.mxu0 0
          %2675 = vmatprep.subr.bf16.mxu0 0
          %2676 = vmatpush1.bf16.msra.mxu0 0
          %2677 = vmatprep.subr.bf16.mxu0 0
          %2678 = vmatpush1.bf16.msra.mxu0 0
          %2679 = vmatprep.subr.bf16.mxu0 0
          %2680 = vmatpush1.bf16.msra.mxu0 0
          %2681 = vmatprep.subr.bf16.mxu0 0
          %2682 = vmatpush1.bf16.msra.mxu0 0
          %2683 = vmatprep.subr.bf16.mxu0 0
          %2684 = vmatpush1.bf16.msra.mxu0 0
          %2685 = vmatprep.subr.bf16.mxu0 0
          %2686 = vmatpush1.bf16.msra.mxu0 0
          %2687 = vmatprep.subr.bf16.mxu0 0
          %2688 = vmatpush1.bf16.msra.mxu0 0
          %2689 = vmatprep.subr.bf16.mxu0 0
          %2690 = vmatpush1.bf16.msra.mxu0 0
          %2691 = vmatprep.subr.bf16.mxu0 0
          %2692 = vmatpush1.bf16.msra.mxu0 0
          %2693 = vmatprep.subr.bf16.mxu0 0
          %2694 = vmatpush1.bf16.msra.mxu0 0
          %2695 = vmatprep.subr.bf16.mxu0 0
          %2696 = vmatpush1.bf16.msra.mxu0 0
          %2697 = vmatprep.mubr.bf16.mxu0 0
          %2698 = vmatmul.mubr.bf16.gmra.mrb[0].mxu0 %v2660
          %v2699 = vpop.f32.mrb[0].mxu0
          %v2700 = vadd.f32 0.0, %v2699
          %v2701 = vpop.f32.mrb[0].mxu0
          %v2702 = vpop.f32.mrb[0].mxu0
          %v2703 = vadd.f32 0.0, %v2702
          %v2704 = vpop.f32.mrb[0].mxu0
          %2705 = vdwg.mxu0
          %v2706 = vadd.f32 %v2643, %v2700
          %v2707 = vadd.f32 %v2644, %v2703
          %v2708 = vld [vmem:[%s2349] sm:$0x8]
          %s2709 = scalar_lea.vmem %s1, 164
          %v2710 = vld [vmem:[%s2709] sm:$0xf]
          %v2712 = vunpack.c.l.b16 %v2708
          %v2713 = vpack.c.b16 %v2649, %v2712
          %v2714 = vrot.slane %v2713, 3
          %v2716 = vsel %vm281, %v2714, 0
          %v2719 = vsel %vm285, %v2710, 0
          %2721 = vmatprep.subr.bf16.mxu0 0
          %2722 = vmatpush1.bf16.msra.mxu0 %v2719
          %2723 = vmatprep.subr.bf16.mxu0 0
          %2724 = vmatpush1.bf16.msra.mxu0 0
          %2725 = vmatprep.subr.bf16.mxu0 0
          %2726 = vmatpush1.bf16.msra.mxu0 0
          %2727 = vmatprep.subr.bf16.mxu0 0
          %2728 = vmatpush1.bf16.msra.mxu0 0
          %2729 = vmatprep.subr.bf16.mxu0 0
          %2730 = vmatpush1.bf16.msra.mxu0 0
          %2731 = vmatprep.subr.bf16.mxu0 0
          %2732 = vmatpush1.bf16.msra.mxu0 0
          %2733 = vmatprep.subr.bf16.mxu0 0
          %2734 = vmatpush1.bf16.msra.mxu0 0
          %2735 = vmatprep.subr.bf16.mxu0 0
          %2736 = vmatpush1.bf16.msra.mxu0 0
          %2737 = vmatprep.subr.bf16.mxu0 0
          %2738 = vmatpush1.bf16.msra.mxu0 0
          %2739 = vmatprep.subr.bf16.mxu0 0
          %2740 = vmatpush1.bf16.msra.mxu0 0
          %2741 = vmatprep.subr.bf16.mxu0 0
          %2742 = vmatpush1.bf16.msra.mxu0 0
          %2743 = vmatprep.subr.bf16.mxu0 0
          %2744 = vmatpush1.bf16.msra.mxu0 0
          %2745 = vmatprep.subr.bf16.mxu0 0
          %2746 = vmatpush1.bf16.msra.mxu0 0
          %2747 = vmatprep.subr.bf16.mxu0 0
          %2748 = vmatpush1.bf16.msra.mxu0 0
          %2749 = vmatprep.subr.bf16.mxu0 0
          %2750 = vmatpush1.bf16.msra.mxu0 0
          %2751 = vmatprep.subr.bf16.mxu0 0
          %2752 = vmatpush1.bf16.msra.mxu0 0
          %2753 = vmatprep.mubr.bf16.mxu0 0
          %2754 = vmatmul.mubr.bf16.gmra.mrb[0].mxu0 %v2716
          %v2755 = vpop.f32.mrb[0].mxu0
          %v2756 = vadd.f32 0.0, %v2755
          %v2757 = vpop.f32.mrb[0].mxu0
          %v2758 = vpop.f32.mrb[0].mxu0
          %v2759 = vadd.f32 0.0, %v2758
          %v2760 = vpop.f32.mrb[0].mxu0
          %2761 = vdwg.mxu0
          %v2762 = vadd.f32 %v2706, %v2756
          %v2763 = vadd.f32 %v2707, %v2759
          %s2764 = sadd.s32 %s259, 6
          %s2765 = smul.u32 %s2764, 2
          %s2766 = smul.addr %s2765, 4
          %s2767 = scalar_lea.vmem %s230, %s2766
          %v2768 = vld [vmem:[%s2767] sm:$0xf]
          %v2769 = vld [vmem:[%s2767 + $0x4] sm:$0x1]
          %s2770 = scalar_lea.vmem %s1, 168
          %v2771 = vld [vmem:[%s2770] sm:$0xf]
          %v2774 = vunpack.c.l.b16 %v2768
          %v2775 = vunpack.c.l.b16 %v2769
          %v2776 = vpack.c.b16 %v2775, %v2774
          %v2778 = vsel %vm281, %v2776, 0
          %v2781 = vsel %vm285, %v2771, 0
          %2783 = vmatprep.subr.bf16.mxu0 0
          %2784 = vmatpush1.bf16.msra.mxu0 %v2781
          %2785 = vmatprep.subr.bf16.mxu0 0
          %2786 = vmatpush1.bf16.msra.mxu0 0
          %2787 = vmatprep.subr.bf16.mxu0 0
          %2788 = vmatpush1.bf16.msra.mxu0 0
          %2789 = vmatprep.subr.bf16.mxu0 0
          %2790 = vmatpush1.bf16.msra.mxu0 0
          %2791 = vmatprep.subr.bf16.mxu0 0
          %2792 = vmatpush1.bf16.msra.mxu0 0
          %2793 = vmatprep.subr.bf16.mxu0 0
          %2794 = vmatpush1.bf16.msra.mxu0 0
          %2795 = vmatprep.subr.bf16.mxu0 0
          %2796 = vmatpush1.bf16.msra.mxu0 0
          %2797 = vmatprep.subr.bf16.mxu0 0
          %2798 = vmatpush1.bf16.msra.mxu0 0
          %2799 = vmatprep.subr.bf16.mxu0 0
          %2800 = vmatpush1.bf16.msra.mxu0 0
          %2801 = vmatprep.subr.bf16.mxu0 0
          %2802 = vmatpush1.bf16.msra.mxu0 0
          %2803 = vmatprep.subr.bf16.mxu0 0
          %2804 = vmatpush1.bf16.msra.mxu0 0
          %2805 = vmatprep.subr.bf16.mxu0 0
          %2806 = vmatpush1.bf16.msra.mxu0 0
          %2807 = vmatprep.subr.bf16.mxu0 0
          %2808 = vmatpush1.bf16.msra.mxu0 0
          %2809 = vmatprep.subr.bf16.mxu0 0
          %2810 = vmatpush1.bf16.msra.mxu0 0
          %2811 = vmatprep.subr.bf16.mxu0 0
          %2812 = vmatpush1.bf16.msra.mxu0 0
          %2813 = vmatprep.subr.bf16.mxu0 0
          %2814 = vmatpush1.bf16.msra.mxu0 0
          %2815 = vmatprep.mubr.bf16.mxu0 0
          %2816 = vmatmul.mubr.bf16.gmra.mrb[0].mxu0 %v2778
          %v2817 = vpop.f32.mrb[0].mxu0
          %v2818 = vadd.f32 0.0, %v2817
          %v2819 = vpop.f32.mrb[0].mxu0
          %v2820 = vpop.f32.mrb[0].mxu0
          %v2821 = vadd.f32 0.0, %v2820
          %v2822 = vpop.f32.mrb[0].mxu0
          %2823 = vdwg.mxu0
          %v2824 = vadd.f32 %v2762, %v2818
          %v2825 = vadd.f32 %v2763, %v2821
          %v2826 = vld [vmem:[%s2767 + $0x4] sm:$0x3]
          %s2827 = scalar_lea.vmem %s1, 172
          %v2828 = vld [vmem:[%s2827] sm:$0xf]
          %v2830 = vunpack.c.l.b16 %v2826
          %v2831 = vpack.c.b16 %v2830, %v2774
          %v2833 = vshrl.u32 %v2831, 16
          %v2835 = vshll.u32 %v2831, 16
          %v2837 = vrot.slane %v2835, 1
          %v2838 = vor.u32 %v2833, %v2837
          %v2840 = vsel %vm281, %v2838, 0
          %v2843 = vsel %vm285, %v2828, 0
          %2845 = vmatprep.subr.bf16.mxu0 0
          %2846 = vmatpush1.bf16.msra.mxu0 %v2843
          %2847 = vmatprep.subr.bf16.mxu0 0
          %2848 = vmatpush1.bf16.msra.mxu0 0
          %2849 = vmatprep.subr.bf16.mxu0 0
          %2850 = vmatpush1.bf16.msra.mxu0 0
          %2851 = vmatprep.subr.bf16.mxu0 0
          %2852 = vmatpush1.bf16.msra.mxu0 0
          %2853 = vmatprep.subr.bf16.mxu0 0
          %2854 = vmatpush1.bf16.msra.mxu0 0
          %2855 = vmatprep.subr.bf16.mxu0 0
          %2856 = vmatpush1.bf16.msra.mxu0 0
          %2857 = vmatprep.subr.bf16.mxu0 0
          %2858 = vmatpush1.bf16.msra.mxu0 0
          %2859 = vmatprep.subr.bf16.mxu0 0
          %2860 = vmatpush1.bf16.msra.mxu0 0
          %2861 = vmatprep.subr.bf16.mxu0 0
          %2862 = vmatpush1.bf16.msra.mxu0 0
          %2863 = vmatprep.subr.bf16.mxu0 0
          %2864 = vmatpush1.bf16.msra.mxu0 0
          %2865 = vmatprep.subr.bf16.mxu0 0
          %2866 = vmatpush1.bf16.msra.mxu0 0
          %2867 = vmatprep.subr.bf16.mxu0 0
          %2868 = vmatpush1.bf16.msra.mxu0 0
          %2869 = vmatprep.subr.bf16.mxu0 0
          %2870 = vmatpush1.bf16.msra.mxu0 0
          %2871 = vmatprep.subr.bf16.mxu0 0
          %2872 = vmatpush1.bf16.msra.mxu0 0
          %2873 = vmatprep.subr.bf16.mxu0 0
          %2874 = vmatpush1.bf16.msra.mxu0 0
          %2875 = vmatprep.subr.bf16.mxu0 0
          %2876 = vmatpush1.bf16.msra.mxu0 0
          %2877 = vmatprep.mubr.bf16.mxu0 0
          %2878 = vmatmul.mubr.bf16.gmra.mrb[0].mxu0 %v2840
          %v2879 = vpop.f32.mrb[0].mxu0
          %v2880 = vadd.f32 0.0, %v2879
          %v2881 = vpop.f32.mrb[0].mxu0
          %v2882 = vpop.f32.mrb[0].mxu0
          %v2883 = vadd.f32 0.0, %v2882
          %v2884 = vpop.f32.mrb[0].mxu0
          %2885 = vdwg.mxu0
          %v2886 = vadd.f32 %v2824, %v2880
          %v2887 = vadd.f32 %v2825, %v2883
          %v2888 = vld [vmem:[%s2767] sm:$0xe]
          %s2889 = scalar_lea.vmem %s1, 176
          %v2890 = vld [vmem:[%s2889] sm:$0xf]
          %v2892 = vunpack.c.l.b16 %v2888
          %v2893 = vpack.c.b16 %v2830, %v2892
          %v2894 = vrot.slane %v2893, 1
          %v2896 = vsel %vm281, %v2894, 0
          %v2899 = vsel %vm285, %v2890, 0
          %2901 = vmatprep.subr.bf16.mxu0 0
          %2902 = vmatpush1.bf16.msra.mxu0 %v2899
          %2903 = vmatprep.subr.bf16.mxu0 0
          %2904 = vmatpush1.bf16.msra.mxu0 0
          %2905 = vmatprep.subr.bf16.mxu0 0
          %2906 = vmatpush1.bf16.msra.mxu0 0
          %2907 = vmatprep.subr.bf16.mxu0 0
          %2908 = vmatpush1.bf16.msra.mxu0 0
          %2909 = vmatprep.subr.bf16.mxu0 0
          %2910 = vmatpush1.bf16.msra.mxu0 0
          %2911 = vmatprep.subr.bf16.mxu0 0
          %2912 = vmatpush1.bf16.msra.mxu0 0
          %2913 = vmatprep.subr.bf16.mxu0 0
          %2914 = vmatpush1.bf16.msra.mxu0 0
          %2915 = vmatprep.subr.bf16.mxu0 0
          %2916 = vmatpush1.bf16.msra.mxu0 0
          %2917 = vmatprep.subr.bf16.mxu0 0
          %2918 = vmatpush1.bf16.msra.mxu0 0
          %2919 = vmatprep.subr.bf16.mxu0 0
          %2920 = vmatpush1.bf16.msra.mxu0 0
          %2921 = vmatprep.subr.bf16.mxu0 0
          %2922 = vmatpush1.bf16.msra.mxu0 0
          %2923 = vmatprep.subr.bf16.mxu0 0
          %2924 = vmatpush1.bf16.msra.mxu0 0
          %2925 = vmatprep.subr.bf16.mxu0 0
          %2926 = vmatpush1.bf16.msra.mxu0 0
          %2927 = vmatprep.subr.bf16.mxu0 0
          %2928 = vmatpush1.bf16.msra.mxu0 0
          %2929 = vmatprep.subr.bf16.mxu0 0
          %2930 = vmatpush1.bf16.msra.mxu0 0
          %2931 = vmatprep.subr.bf16.mxu0 0
          %2932 = vmatpush1.bf16.msra.mxu0 0
          %2933 = vmatprep.mubr.bf16.mxu0 0
          %2934 = vmatmul.mubr.bf16.gmra.mrb[0].mxu0 %v2896
          %v2935 = vpop.f32.mrb[0].mxu0
          %v2936 = vadd.f32 0.0, %v2935
          %v2937 = vpop.f32.mrb[0].mxu0
          %v2938 = vpop.f32.mrb[0].mxu0
          %v2939 = vadd.f32 0.0, %v2938
          %v2940 = vpop.f32.mrb[0].mxu0
          %2941 = vdwg.mxu0
          %v2942 = vadd.f32 %v2886, %v2936
          %v2943 = vadd.f32 %v2887, %v2939
          %v2944 = vld [vmem:[%s2767 + $0x4] sm:$0x7]
          %s2945 = scalar_lea.vmem %s1, 180
          %v2946 = vld [vmem:[%s2945] sm:$0xf]
          %v2948 = vunpack.c.l.b16 %v2944
          %v2949 = vpack.c.b16 %v2948, %v2892
          %v2951 = vshrl.u32 %v2949, 16
          %v2953 = vrot.slane %v2951, 1
          %v2954 = vshll.u32 %v2949, 16
          %v2956 = vrot.slane %v2954, 2
          %v2957 = vor.u32 %v2953, %v2956
          %v2959 = vsel %vm281, %v2957, 0
          %v2962 = vsel %vm285, %v2946, 0
          %2964 = vmatprep.subr.bf16.mxu0 0
          %2965 = vmatpush1.bf16.msra.mxu0 %v2962
          %2966 = vmatprep.subr.bf16.mxu0 0
          %2967 = vmatpush1.bf16.msra.mxu0 0
          %2968 = vmatprep.subr.bf16.mxu0 0
          %2969 = vmatpush1.bf16.msra.mxu0 0
          %2970 = vmatprep.subr.bf16.mxu0 0
          %2971 = vmatpush1.bf16.msra.mxu0 0
          %2972 = vmatprep.subr.bf16.mxu0 0
          %2973 = vmatpush1.bf16.msra.mxu0 0
          %2974 = vmatprep.subr.bf16.mxu0 0
          %2975 = vmatpush1.bf16.msra.mxu0 0
          %2976 = vmatprep.subr.bf16.mxu0 0
          %2977 = vmatpush1.bf16.msra.mxu0 0
          %2978 = vmatprep.subr.bf16.mxu0 0
          %2979 = vmatpush1.bf16.msra.mxu0 0
          %2980 = vmatprep.subr.bf16.mxu0 0
          %2981 = vmatpush1.bf16.msra.mxu0 0
          %2982 = vmatprep.subr.bf16.mxu0 0
          %2983 = vmatpush1.bf16.msra.mxu0 0
          %2984 = vmatprep.subr.bf16.mxu0 0
          %2985 = vmatpush1.bf16.msra.mxu0 0
          %2986 = vmatprep.subr.bf16.mxu0 0
          %2987 = vmatpush1.bf16.msra.mxu0 0
          %2988 = vmatprep.subr.bf16.mxu0 0
          %2989 = vmatpush1.bf16.msra.mxu0 0
          %2990 = vmatprep.subr.bf16.mxu0 0
          %2991 = vmatpush1.bf16.msra.mxu0 0
          %2992 = vmatprep.subr.bf16.mxu0 0
          %2993 = vmatpush1.bf16.msra.mxu0 0
          %2994 = vmatprep.subr.bf16.mxu0 0
          %2995 = vmatpush1.bf16.msra.mxu0 0
          %2996 = vmatprep.mubr.bf16.mxu0 0
          %2997 = vmatmul.mubr.bf16.gmra.mrb[0].mxu0 %v2959
          %v2998 = vpop.f32.mrb[0].mxu0
          %v2999 = vadd.f32 0.0, %v2998
          %v3000 = vpop.f32.mrb[0].mxu0
          %v3001 = vpop.f32.mrb[0].mxu0
          %v3002 = vadd.f32 0.0, %v3001
          %v3003 = vpop.f32.mrb[0].mxu0
          %3004 = vdwg.mxu0
          %v3005 = vadd.f32 %v2942, %v2999
          %v3006 = vadd.f32 %v2943, %v3002
          %v3007 = vld [vmem:[%s2767] sm:$0xc]
          %s3008 = scalar_lea.vmem %s1, 184
          %v3009 = vld [vmem:[%s3008] sm:$0xf]
          %v3011 = vunpack.c.l.b16 %v3007
          %v3012 = vpack.c.b16 %v2948, %v3011
          %v3013 = vrot.slane %v3012, 2
          %v3015 = vsel %vm281, %v3013, 0
          %v3018 = vsel %vm285, %v3009, 0
          %3020 = vmatprep.subr.bf16.mxu0 0
          %3021 = vmatpush1.bf16.msra.mxu0 %v3018
          %3022 = vmatprep.subr.bf16.mxu0 0
          %3023 = vmatpush1.bf16.msra.mxu0 0
          %3024 = vmatprep.subr.bf16.mxu0 0
          %3025 = vmatpush1.bf16.msra.mxu0 0
          %3026 = vmatprep.subr.bf16.mxu0 0
          %3027 = vmatpush1.bf16.msra.mxu0 0
          %3028 = vmatprep.subr.bf16.mxu0 0
          %3029 = vmatpush1.bf16.msra.mxu0 0
          %3030 = vmatprep.subr.bf16.mxu0 0
          %3031 = vmatpush1.bf16.msra.mxu0 0
          %3032 = vmatprep.subr.bf16.mxu0 0
          %3033 = vmatpush1.bf16.msra.mxu0 0
          %3034 = vmatprep.subr.bf16.mxu0 0
          %3035 = vmatpush1.bf16.msra.mxu0 0
          %3036 = vmatprep.subr.bf16.mxu0 0
          %3037 = vmatpush1.bf16.msra.mxu0 0
          %3038 = vmatprep.subr.bf16.mxu0 0
          %3039 = vmatpush1.bf16.msra.mxu0 0
          %3040 = vmatprep.subr.bf16.mxu0 0
          %3041 = vmatpush1.bf16.msra.mxu0 0
          %3042 = vmatprep.subr.bf16.mxu0 0
          %3043 = vmatpush1.bf16.msra.mxu0 0
          %3044 = vmatprep.subr.bf16.mxu0 0
          %3045 = vmatpush1.bf16.msra.mxu0 0
          %3046 = vmatprep.subr.bf16.mxu0 0
          %3047 = vmatpush1.bf16.msra.mxu0 0
          %3048 = vmatprep.subr.bf16.mxu0 0
          %3049 = vmatpush1.bf16.msra.mxu0 0
          %3050 = vmatprep.subr.bf16.mxu0 0
          %3051 = vmatpush1.bf16.msra.mxu0 0
          %3052 = vmatprep.mubr.bf16.mxu0 0
          %3053 = vmatmul.mubr.bf16.gmra.mrb[0].mxu0 %v3015
          %v3054 = vpop.f32.mrb[0].mxu0
          %v3055 = vadd.f32 0.0, %v3054
          %v3056 = vpop.f32.mrb[0].mxu0
          %v3057 = vpop.f32.mrb[0].mxu0
          %v3058 = vadd.f32 0.0, %v3057
          %v3059 = vpop.f32.mrb[0].mxu0
          %3060 = vdwg.mxu0
          %v3061 = vadd.f32 %v3005, %v3055
          %v3062 = vadd.f32 %v3006, %v3058
          %v3063 = vld [vmem:[%s2767 + $0x4] sm:$0xf]
          %s3064 = scalar_lea.vmem %s1, 188
          %v3065 = vld [vmem:[%s3064] sm:$0xf]
          %v3067 = vunpack.c.l.b16 %v3063
          %v3068 = vpack.c.b16 %v3067, %v3011
          %v3070 = vshrl.u32 %v3068, 16
          %v3072 = vrot.slane %v3070, 2
          %v3073 = vshll.u32 %v3068, 16
          %v3075 = vrot.slane %v3073, 3
          %v3076 = vor.u32 %v3072, %v3075
          %v3078 = vsel %vm281, %v3076, 0
          %v3081 = vsel %vm285, %v3065, 0
          %3083 = vmatprep.subr.bf16.mxu0 0
          %3084 = vmatpush1.bf16.msra.mxu0 %v3081
          %3085 = vmatprep.subr.bf16.mxu0 0
          %3086 = vmatpush1.bf16.msra.mxu0 0
          %3087 = vmatprep.subr.bf16.mxu0 0
          %3088 = vmatpush1.bf16.msra.mxu0 0
          %3089 = vmatprep.subr.bf16.mxu0 0
          %3090 = vmatpush1.bf16.msra.mxu0 0
          %3091 = vmatprep.subr.bf16.mxu0 0
          %3092 = vmatpush1.bf16.msra.mxu0 0
          %3093 = vmatprep.subr.bf16.mxu0 0
          %3094 = vmatpush1.bf16.msra.mxu0 0
          %3095 = vmatprep.subr.bf16.mxu0 0
          %3096 = vmatpush1.bf16.msra.mxu0 0
          %3097 = vmatprep.subr.bf16.mxu0 0
          %3098 = vmatpush1.bf16.msra.mxu0 0
          %3099 = vmatprep.subr.bf16.mxu0 0
          %3100 = vmatpush1.bf16.msra.mxu0 0
          %3101 = vmatprep.subr.bf16.mxu0 0
          %3102 = vmatpush1.bf16.msra.mxu0 0
          %3103 = vmatprep.subr.bf16.mxu0 0
          %3104 = vmatpush1.bf16.msra.mxu0 0
          %3105 = vmatprep.subr.bf16.mxu0 0
          %3106 = vmatpush1.bf16.msra.mxu0 0
          %3107 = vmatprep.subr.bf16.mxu0 0
          %3108 = vmatpush1.bf16.msra.mxu0 0
          %3109 = vmatprep.subr.bf16.mxu0 0
          %3110 = vmatpush1.bf16.msra.mxu0 0
          %3111 = vmatprep.subr.bf16.mxu0 0
          %3112 = vmatpush1.bf16.msra.mxu0 0
          %3113 = vmatprep.subr.bf16.mxu0 0
          %3114 = vmatpush1.bf16.msra.mxu0 0
          %3115 = vmatprep.mubr.bf16.mxu0 0
          %3116 = vmatmul.mubr.bf16.gmra.mrb[0].mxu0 %v3078
          %v3117 = vpop.f32.mrb[0].mxu0
          %v3118 = vadd.f32 0.0, %v3117
          %v3119 = vpop.f32.mrb[0].mxu0
          %v3120 = vpop.f32.mrb[0].mxu0
          %v3121 = vadd.f32 0.0, %v3120
          %v3122 = vpop.f32.mrb[0].mxu0
          %3123 = vdwg.mxu0
          %v3124 = vadd.f32 %v3061, %v3118
          %v3125 = vadd.f32 %v3062, %v3121
          %v3126 = vld [vmem:[%s2767] sm:$0x8]
          %s3127 = scalar_lea.vmem %s1, 192
          %v3128 = vld [vmem:[%s3127] sm:$0xf]
          %v3130 = vunpack.c.l.b16 %v3126
          %v3131 = vpack.c.b16 %v3067, %v3130
          %v3132 = vrot.slane %v3131, 3
          %v3134 = vsel %vm281, %v3132, 0
          %v3137 = vsel %vm285, %v3128, 0
          %3139 = vmatprep.subr.bf16.mxu0 0
          %3140 = vmatpush1.bf16.msra.mxu0 %v3137
          %3141 = vmatprep.subr.bf16.mxu0 0
          %3142 = vmatpush1.bf16.msra.mxu0 0
          %3143 = vmatprep.subr.bf16.mxu0 0
          %3144 = vmatpush1.bf16.msra.mxu0 0
          %3145 = vmatprep.subr.bf16.mxu0 0
          %3146 = vmatpush1.bf16.msra.mxu0 0
          %3147 = vmatprep.subr.bf16.mxu0 0
          %3148 = vmatpush1.bf16.msra.mxu0 0
          %3149 = vmatprep.subr.bf16.mxu0 0
          %3150 = vmatpush1.bf16.msra.mxu0 0
          %3151 = vmatprep.subr.bf16.mxu0 0
          %3152 = vmatpush1.bf16.msra.mxu0 0
          %3153 = vmatprep.subr.bf16.mxu0 0
          %3154 = vmatpush1.bf16.msra.mxu0 0
          %3155 = vmatprep.subr.bf16.mxu0 0
          %3156 = vmatpush1.bf16.msra.mxu0 0
          %3157 = vmatprep.subr.bf16.mxu0 0
          %3158 = vmatpush1.bf16.msra.mxu0 0
          %3159 = vmatprep.subr.bf16.mxu0 0
          %3160 = vmatpush1.bf16.msra.mxu0 0
          %3161 = vmatprep.subr.bf16.mxu0 0
          %3162 = vmatpush1.bf16.msra.mxu0 0
          %3163 = vmatprep.subr.bf16.mxu0 0
          %3164 = vmatpush1.bf16.msra.mxu0 0
          %3165 = vmatprep.subr.bf16.mxu0 0
          %3166 = vmatpush1.bf16.msra.mxu0 0
          %3167 = vmatprep.subr.bf16.mxu0 0
          %3168 = vmatpush1.bf16.msra.mxu0 0
          %3169 = vmatprep.subr.bf16.mxu0 0
          %3170 = vmatpush1.bf16.msra.mxu0 0
          %3171 = vmatprep.mubr.bf16.mxu0 0
          %3172 = vmatmul.mubr.bf16.gmra.mrb[0].mxu0 %v3134
          %v3173 = vpop.f32.mrb[0].mxu0
          %v3174 = vadd.f32 0.0, %v3173
          %v3175 = vpop.f32.mrb[0].mxu0
          %v3176 = vpop.f32.mrb[0].mxu0
          %v3177 = vadd.f32 0.0, %v3176
          %v3178 = vpop.f32.mrb[0].mxu0
          %3179 = vdwg.mxu0
          %v3180 = vadd.f32 %v3124, %v3174
          %v3181 = vadd.f32 %v3125, %v3177
          %s3182 = smul.u32 %s252, 16
          %s3183 = scalar_lea.vmem %s240, %s3182
          %vm3184 = vcmask 130048
          %3185 = vst.msk [vmem:[%s3183] sm:$0xff] %vm3184, %v3180
          %vm3186 = vcmask 123904
          %3187 = vst.msk [vmem:[%s3183 + $0x8] sm:$0x3] %vm3186, %v3181
          %p3188 = scmp.lt.s32.totalorder %s259, 12
          %s3189 = scalar_select %p3188, 1, 0
          %s3190 = scvt.s32.f32 %s3189
          %v3191 = vsel %vm3184, %v3180, 0.0
          %v3192 = vsel %vm3186, %v3181, 0.0
          %v3193 = vadd.f32 %v3191, %v3192
          %v3194 = vrot.slane %v3193, 4
          %v3195 = vadd.f32 %v3193, %v3194
          %v3196 = vrot.slane %v3195, 2
          %v3197 = vadd.f32 %v3195, %v3196
          %v3198 = vrot.slane %v3197, 1
          %v3199 = vadd.f32 %v3197, %v3198
          %v3200 = vstv %s3190
          %v3201 = vmul.f32 %v3200, %v3199
          %v3202 = vadd.f32 %v257, %v3201
          %v3203 = vmul.f32 %v3180, %v3180
          %v3204 = vmul.f32 %v3181, %v3181
          %v3205 = vsel %vm3184, %v3203, 0.0
          %v3206 = vsel %vm3186, %v3204, 0.0
          %v3207 = vadd.f32 %v3205, %v3206
          %v3208 = vrot.slane %v3207, 4
          %v3209 = vadd.f32 %v3207, %v3208
          %v3210 = vrot.slane %v3209, 2
          %v3211 = vadd.f32 %v3209, %v3210
          %v3212 = vrot.slane %v3211, 1
          %v3213 = vadd.f32 %v3211, %v3212
          %v3214 = vmul.f32 %v3200, %v3213
          %v3215 = vadd.f32 %v258, %v3214
        $region37: #{tpu_custom_call.1} parent=27 // loop_footer
          %s256 = sadd.s32 1, %s252
        $region38: #{tpu_custom_call.1} parent=27 // loop_footer_branch
          %251 = sbr.rel target = $region34
        $region39: #{tpu_custom_call.1} parent=27 // loop_exit
          _
        %v3216 = vld [vmem:[%s219] sm:$0x1]
        %v3217 = vadd.f32 %v3216, %v257
        %vm3218 = vcmask 122880
        %3219 = vst.msk [vmem:[%s219] sm:$0x1] %vm3218, %v3217
        %v3220 = vld [vmem:[%s225] sm:$0x1]
        %v3221 = vadd.f32 %v3220, %v258
        %3222 = vst.msk [vmem:[%s225] sm:$0x1] %vm3218, %v3221
        %s3223 = smul.u32 8, %s27
        %p3224 = scmp.lt.s32.totalorder %s26, 1
        %s3225 = scalar_select %p3224, %s26, 1
        %p3226 = scmp.lt.s32.totalorder %s3223, 15
        %s3227 = scalar_select %p3226, %s3223, 15
        %s3228 = smul.addr %s3227, 2
        %s3229 = smul.addr %s3225, 32
        %s3230 = sadd.s32 %s3228, %s3229
        %s3231 = smul.addr %s3230, 8
        %s3232 = scalar_lea.vmem %s2, %s3231
        %s3233 = sand.u32 %s117, 1
        %s3234 = scalar_lea.sflag [#allocation3], %s3233
        %s3235 = sand.u32 %s117, 1
        %s3236 = scalar_lea.vmem [#allocation2], %s3235
        %s3237 = sand.u32 %s143, 1
        %s3238 = scalar_lea.sflag [#allocation5], %s3237
        %s3239 = sand.u32 %s143, 1
        %s3240 = scalar_lea.vmem [#allocation4], %s3239
        // Predicated region
        $region40: #{tpu_custom_call.1} parent=27 // pred_check
          %p3241 = pneg %p101
        $region41: #{tpu_custom_call.1} parent=27 // pred_check_branch
          %3243 = sbr.rel (%p3241) target = $region43
        $region42: #{tpu_custom_call.1} parent=27 // pred_region
          %s3244 = smul.u32 8, %s27
        $region43: #{tpu_custom_call.1} parent=27 // pred_fallthru
          _
        // Predicated region
        $region44: #{tpu_custom_call.1} parent=27 // pred_check
          %p3245 = pneg %p127
        $region45: #{tpu_custom_call.1} parent=27 // pred_check_branch
          %3247 = sbr.rel (%p3245) target = $region47
        $region46: #{tpu_custom_call.1} parent=27 // pred_region
          %s3249 = ssub.s32 16, 16
          %3250 = vsyncadd %s3234, %s3249
          %s3251 = smul.addr %s26, 16
          %s3252 = scalar_lea.hbm %s3, %s3251
          %s3254 = sshll.u32 %s3236, 4
          %s3255 = int_to_ptr.vmem [resolvable:$true] %s3254
          %3257 = dma.vmem_to_hbm [thread:$0]  %s3255, 16, %s3252, %s3234
        $region47: #{tpu_custom_call.1} parent=27 // pred_fallthru
          _
        // Predicated region
        $region48: #{tpu_custom_call.1} parent=27 // pred_check
          %p3258 = pneg %p153
        $region49: #{tpu_custom_call.1} parent=27 // pred_check_branch
          %3260 = sbr.rel (%p3258) target = $region51
        $region50: #{tpu_custom_call.1} parent=27 // pred_region
          %s3262 = ssub.s32 16, 16
          %3263 = vsyncadd %s3238, %s3262
          %s3264 = smul.addr %s26, 16
          %s3265 = scalar_lea.hbm %s4, %s3264
          %s3267 = sshll.u32 %s3240, 4
          %s3268 = int_to_ptr.vmem [resolvable:$true] %s3267
          %3270 = dma.vmem_to_hbm [thread:$0]  %s3268, 16, %s3265, %s3238
        $region51: #{tpu_custom_call.1} parent=27 // pred_fallthru
          _
      $region28: #{tpu_custom_call.1} parent=5 // pred_fallthru
        _
      %p3271 = scmp.le.s32.totalorder 2, %s17
      // Predicated region
      $region52: #{tpu_custom_call.1} parent=5 // pred_check
        %p3272 = pneg %p3271
      $region53: #{tpu_custom_call.1} parent=5 // pred_check_branch
        %3274 = sbr.rel (%p3272) target = $region55
      $region54: #{tpu_custom_call.1} parent=5 // pred_region
        %s3275 = ssub.s32 %s17, 2
        // Predicated region
        $region56: #{tpu_custom_call.1} parent=54 // pred_check
          %p3276 = pneg %p107
        $region57: #{tpu_custom_call.1} parent=54 // pred_check_branch
          %3278 = sbr.rel (%p3276) target = $region59
        $region58: #{tpu_custom_call.1} parent=54 // pred_region
          %s3279 = smul.u32 8, %s29
          %p3280 = scmp.lt.s32.totalorder %s28, 1
          %s3281 = scalar_select %p3280, %s28, 1
          %p3282 = scmp.lt.s32.totalorder %s3279, 15
          %s3283 = scalar_select %p3282, %s3279, 15
          %s3284 = smul.addr %s3283, 2
          %s3285 = smul.addr %s3281, 32
          %s3286 = sadd.s32 %s3284, %s3285
          %s3287 = smul.addr %s3286, 8
          %s3288 = scalar_lea.vmem %s2, %s3287
        $region59: #{tpu_custom_call.1} parent=54 // pred_fallthru
          _
        // Predicated region
        $region60: #{tpu_custom_call.1} parent=54 // pred_check
          %p3289 = pneg %p133
        $region61: #{tpu_custom_call.1} parent=54 // pred_check_branch
          %3291 = sbr.rel (%p3289) target = $region63
        $region62: #{tpu_custom_call.1} parent=54 // pred_region
          %s3292 = sand.u32 %s118, 1
          %s3293 = scalar_lea.sflag [#allocation3], %s3292
          %s3294 = sand.u32 %s118, 1
          %s3295 = scalar_lea.vmem [#allocation2], %s3294
          %3296 = dma.done %s3293, 16
        $region63: #{tpu_custom_call.1} parent=54 // pred_fallthru
          _
        // Predicated region
        $region64: #{tpu_custom_call.1} parent=54 // pred_check
          %p3297 = pneg %p159
        $region65: #{tpu_custom_call.1} parent=54 // pred_check_branch
          %3299 = sbr.rel (%p3297) target = $region67
        $region66: #{tpu_custom_call.1} parent=54 // pred_region
          %s3300 = sand.u32 %s144, 1
          %s3301 = scalar_lea.sflag [#allocation5], %s3300
          %s3302 = sand.u32 %s144, 1
          %s3303 = scalar_lea.vmem [#allocation4], %s3302
          %3304 = dma.done %s3301, 16
        $region67: #{tpu_custom_call.1} parent=54 // pred_fallthru
          _
      $region55: #{tpu_custom_call.1} parent=5 // pred_fallthru
        _
    $region6: #{tpu_custom_call.1} parent=1 // loop_footer
      %s21 = sadd.s32 1, %s17
    $region7: #{tpu_custom_call.1} parent=1 // loop_footer_branch
      %16 = sbr.rel target = $region3
    $region8: #{tpu_custom_call.1} parent=1 // loop_exit
      _
    %3305 = vsyncpa [#allocation3], 1
    %s3306 = scalar_lea.sflag [#allocation3], 1
    %3307 = vsyncpa %s3306, 1
    %3308 = vsyncpa [#allocation5], 1
    %s3309 = scalar_lea.sflag [#allocation5], 1
    %3310 = vsyncpa %s3309, 1

</llo_original>
